<compile_context>
chip_gen: v7x
topology: tpu7x:2x2x1
jax: 0.10.0
libtpu: 0.0.40
codegen_flags: <defaults>
</compile_context>

<pallas_src>
import jax
import jax.numpy as jnp
from jax import lax
from jax.experimental import pallas as pl
from jax.experimental.pallas import tpu as pltpu

HID = 8
N_CLASSES = 5
LEAK = 0.01       # nn.LeakyReLU default negative_slope
BN_EPS = 1e-5     # nn.BatchNorm1d default eps


def _leaky(x):
    # max(x, 0.01*x) == LeakyReLU for slope in (0,1); cheaper than where()
    return jnp.maximum(x, LEAK * x)


def bilstm_kernel(tokf_ref, tokb_ref, emb_ref,
                  w1ih_ref, w1hh_ref, b1_ref,
                  w2ih_ref, w2hh_ref, b2_ref,
                  fc1w_ref, fc1b_ref, bn_ref, fc2w_ref, fc2b_ref,
                  out_ref,
                  gbuf_ref, seq_ref):
    T, B, _ = seq_ref.shape
    H = HID
    TB = T * B
    NT = emb_ref.shape[0]
    f32 = jnp.float32

    # ---------- fused embedding lookup (one-hot matmul) ----------
    iota = lax.broadcasted_iota(jnp.int32, (TB, NT), 1)
    oh_f = (iota == tokf_ref[...]).astype(f32)                          # (TB, NT)
    oh_b = (iota == tokb_ref[...]).astype(f32)                          # time-reversed tokens
    x_f = jnp.dot(oh_f, emb_ref[...], preferred_element_type=f32)      # (TB, H)  x(t)
    x_b = jnp.dot(oh_b, emb_ref[...], preferred_element_type=f32)      # (TB, H)  x(T-1-t)

    # ---------- hoisted layer-1 input projection (both directions in one matmul) ----------
    xd = jnp.concatenate([x_f, x_b], axis=-1)                            # (TB, 2H) [x(t)|x(T-1-t)]
    g1 = jnp.dot(xd, w1ih_ref[...], preferred_element_type=f32) + b1_ref[...]   # (TB, 8H)
    gbuf_ref[...] = g1.reshape(T, B, 8 * H)

    def step(gin, h, c, whh):
        # gin: (B, 8H) precomputed x-projection; recurrence is h@W_hh only.
        gates = gin + jnp.dot(h, whh, preferred_element_type=f32)       # (B, 8H)
        sg = jax.nn.sigmoid(gates)                                       # one EUP push, full block
        i = sg[:, 0:2 * H]
        f = sg[:, 2 * H:4 * H]
        o = sg[:, 6 * H:8 * H]
        g = jnp.tanh(gates[:, 4 * H:6 * H])
        c_new = f * c + i * g                                            # (B, 2H) [dir0|dir1]
        h_new = o * jnp.tanh(c_new)
        return h_new, c_new

    # ---------- layer 1: fwd+bwd fused, fully unrolled ----------
    whh1 = w1hh_ref[...]
    h1 = jnp.zeros((B, 2 * H), f32)
    c1 = jnp.zeros((B, 2 * H), f32)
    for t in range(T):
        h1, c1 = step(gbuf_ref[t], h1, c1, whh1)
        seq_ref[t] = h1                                                  # [h_fwd(t) | h_bwd(T-1-t)]

    # ---------- hoisted layer-2 input projection ----------
    o_fwd = seq_ref[...]                                                 # (T, B, 2H)
    o_rev = jnp.stack([seq_ref[T - 1 - t] for t in range(T)], axis=0)    # time-reversed copy
    u = jnp.concatenate([o_fwd, o_rev], axis=-1).reshape(TB, 4 * H)      # row layout matches w2ih
    g2 = jnp.dot(u, w2ih_ref[...], preferred_element_type=f32) + b2_ref[...]
    gbuf_ref[...] = g2.reshape(T, B, 8 * H)                              # reuse the same scratch

    # ---------- layer 2: fwd+bwd fused, fully unrolled ----------
    whh2 = w2hh_ref[...]
    h2 = jnp.zeros((B, 2 * H), f32)
    c2 = jnp.zeros((B, 2 * H), f32)
    for t in range(T):
        h2, c2 = step(gbuf_ref[t], h2, c2, whh2)

    # h_n cat order in PyTorch: [layer0_fwd, layer0_bwd, layer1_fwd, layer1_bwd] -> (B, 4H)
    feat = jnp.concatenate([h1, h2], axis=-1)

    # TODO(synk): Dropout(p=0.25) treated as identity and BatchNorm1d uses running stats (inference mode).
    feat = _leaky(feat)

    z = jnp.dot(feat, fc1w_ref[...], preferred_element_type=f32) + fc1b_ref[...]
    gamma = bn_ref[0:1, :]
    beta = bn_ref[1:2, :]
    mean = bn_ref[2:3, :]
    var = bn_ref[3:4, :]
    z = (z - mean) * lax.rsqrt(var + BN_EPS) * gamma + beta
    z = _leaky(z)

    logits = jnp.dot(z, fc2w_ref[...], preferred_element_type=f32) + fc2b_ref[...]
    logits = logits - jnp.max(logits, axis=-1, keepdims=True)
    e = jnp.exp(logits)
    out_ref[...] = e / jnp.sum(e, axis=-1, keepdims=True)


def fuse_params(params, hid=HID):
    """Host-side, one-time weight re-layout: per-direction (in,4H) PyTorch-order weights ->
    block-structured combined weights with gate-major columns [i0 i1 f0 f1 g0 g1 o0 o1]."""
    H = hid

    def place(w, d):
        # w: (n, 4H) gate order i|f|g|o  ->  (n, 8H), gate k dir d at cols [k*2H + d*H, k*2H + (d+1)*H)
        out = jnp.zeros((w.shape[0], 8 * H), jnp.float32)
        for k in range(4):
            out = out.at[:, k * 2 * H + d * H: k * 2 * H + (d + 1) * H].set(w[:, k * H:(k + 1) * H])
        return out

    w1ih = jnp.concatenate([place(params["l1_wih"][0], 0),
                            place(params["l1_wih"][1], 1)], axis=0)       # (2H, 8H)
    w1hh = jnp.concatenate([place(params["l1_whh"][0], 0),
                            place(params["l1_whh"][1], 1)], axis=0)       # (2H, 8H)
    b1 = place(params["l1_b"][0], 0) + place(params["l1_b"][1], 1)        # (1, 8H)

    w2f, w2b = params["l2_wih"][0], params["l2_wih"][1]                   # each (2H, 4H)
    # Kernel's layer-2 input rows per step: [h_f(t), h_b(T-1-t), h_f(T-1-t), h_b(t)]
    w2ih = jnp.concatenate([place(w2f[0:H], 0),       # h_f(t)      -> fwd dir
                            place(w2b[H:2 * H], 1),   # h_b(T-1-t)  -> bwd dir
                            place(w2b[0:H], 1),       # h_f(T-1-t)  -> bwd dir
                            place(w2f[H:2 * H], 0)],  # h_b(t)      -> fwd dir
                           axis=0)                                        # (4H, 8H)
    w2hh = jnp.concatenate([place(params["l2_whh"][0], 0),
                            place(params["l2_whh"][1], 1)], axis=0)       # (2H, 8H)
    b2 = place(params["l2_b"][0], 0) + place(params["l2_b"][1], 1)

    return {
        "embedding": params["embedding"].astype(jnp.float32),
        "w1ih": w1ih, "w1hh": w1hh, "b1": b1,
        "w2ih": w2ih, "w2hh": w2hh, "b2": b2,
        "fc1_w": params["fc1_w"], "fc1_b": params["fc1_b"], "bn": params["bn"],
        "fc2_w": params["fc2_w"], "fc2_b": params["fc2_b"],
    }


def bilstm_forward(tokens, fp):
    B, T = tokens.shape
    tok_tm = tokens.T.astype(jnp.int32)                 # (T, B) time-major
    tok_f = tok_tm.reshape(T * B, 1)                    # token at time t
    tok_b = tok_tm[::-1].reshape(T * B, 1)              # token at time T-1-t

    inputs = (tok_f, tok_b, fp["embedding"],
              fp["w1ih"], fp["w1hh"], fp["b1"],
              fp["w2ih"], fp["w2hh"], fp["b2"],
              fp["fc1_w"], fp["fc1_b"], fp["bn"],
              fp["fc2_w"], fp["fc2_b"])

    vmem = pl.BlockSpec(memory_space=pltpu.MemorySpace.VMEM)
    out = pl.pallas_call(
        bilstm_kernel,
        out_shape=jax.ShapeDtypeStruct((B, N_CLASSES), jnp.float32),
        in_specs=[vmem] * len(inputs),
        out_specs=vmem,
        scratch_shapes=[pltpu.VMEM((T, B, 8 * HID), jnp.float32),   # hoisted gate inputs (reused L1/L2)
                        pltpu.VMEM((T, B, 2 * HID), jnp.float32)],  # layer-1 hidden sequence
    )(*inputs)
    return jnp.squeeze(out)


def init_params(key, n_tokens, hid=HID):
    ks = jax.random.split(key, 12)
    s = 1.0 / float(jnp.sqrt(jnp.float32(hid)))
    u = lambda k, shape: jax.random.uniform(k, shape, jnp.float32, -s, s)
    return {
        "embedding": jax.random.normal(ks[0], (n_tokens, hid), jnp.float32),
        # Layer 1 (input size H), [0]=forward, [1]=backward. b = b_ih + b_hh combined.
        "l1_wih": u(ks[1], (2, hid, 4 * hid)),
        "l1_whh": u(ks[2], (2, hid, 4 * hid)),
        "l1_b":   u(ks[3], (2, 1, 4 * hid)),
        # Layer 2 (input size 2H = concat of layer-1 directions)
        "l2_wih": u(ks[4], (2, 2 * hid, 4 * hid)),
        "l2_whh": u(ks[5], (2, hid, 4 * hid)),
        "l2_b":   u(ks[6], (2, 1, 4 * hid)),
        # Final predictor
        "fc1_w":  u(ks[7], (4 * hid, hid)),
        "fc1_b":  u(ks[8], (1, hid)),
        # BatchNorm1d defaults: gamma=1, beta=0, running_mean=0, running_var=1
        "bn": jnp.stack([jnp.ones(hid, jnp.float32),
                         jnp.zeros(hid, jnp.float32),
                         jnp.zeros(hid, jnp.float32),
                         jnp.ones(hid, jnp.float32)], axis=0),
        "fc2_w":  u(ks[9], (hid, N_CLASSES)),
        "fc2_b":  u(ks[10], (1, N_CLASSES)),
    }


if __name__ == "__main__":
    key = jax.random.PRNGKey(0)
    n_tokens = 50
    B, T = 4, 12

    k_param, k_tok = jax.random.split(key)
    params = init_params(k_param, n_tokens)
    fused = fuse_params(params)                          # one-time host-side weight re-layout
    tokens = jax.random.randint(k_tok, (B, T), 0, n_tokens, dtype=jnp.int32)

    fwd = jax.jit(lambda t: bilstm_forward(t, fused))
    out = jax.block_until_ready(fwd(tokens))

    assert out.shape == (B, N_CLASSES), out.shape
    assert bool(jnp.all(jnp.isfinite(out)))
    assert bool(jnp.all(jnp.abs(jnp.sum(out, axis=-1) - 1.0) < 1e-4))   # softmax rows sum to 1
    print("KERNEL_OK")
</pallas_src>

<mosaic_0001>
module attributes {stable_mosaic.version = 11 : i64} {
  func.func @bilstm_kernel(%arg0: memref<48x1xi32, #tpu.memory_space<vmem>>, %arg1: memref<48x1xi32, #tpu.memory_space<vmem>>, %arg2: memref<50x8xf32, #tpu.memory_space<vmem>>, %arg3: memref<16x64xf32, #tpu.memory_space<vmem>>, %arg4: memref<16x64xf32, #tpu.memory_space<vmem>>, %arg5: memref<1x64xf32, #tpu.memory_space<vmem>>, %arg6: memref<32x64xf32, #tpu.memory_space<vmem>>, %arg7: memref<16x64xf32, #tpu.memory_space<vmem>>, %arg8: memref<1x64xf32, #tpu.memory_space<vmem>>, %arg9: memref<32x8xf32, #tpu.memory_space<vmem>>, %arg10: memref<1x8xf32, #tpu.memory_space<vmem>>, %arg11: memref<4x8xf32, #tpu.memory_space<vmem>>, %arg12: memref<8x5xf32, #tpu.memory_space<vmem>>, %arg13: memref<1x5xf32, #tpu.memory_space<vmem>>, %arg14: memref<4x5xf32, #tpu.memory_space<vmem>>, %arg15: memref<12x4x64xf32, #tpu.memory_space<vmem>>, %arg16: memref<12x4x16xf32, #tpu.memory_space<vmem>>) attributes {dimension_semantics = [], scalar_prefetch = 0 : i64, scratch_operands = 2 : i64, tpu.core_type = #tpu.core_type<tc>} {
    %0 = tpu.iota {dimensions = array<i32: 1>} : vector<48x50xi32>
    %c0 = arith.constant 0 : index
    %c0_0 = arith.constant 0 : index
    %1 = vector.load %arg0[%c0, %c0_0] : memref<48x1xi32, #tpu.memory_space<vmem>>, vector<48x1xi32>
    %2 = vector.broadcast %1 : vector<48x1xi32> to vector<48x50xi32>
    %3 = arith.cmpi eq, %0, %2 : vector<48x50xi32>
    %4 = arith.extui %3 : vector<48x50xi1> to vector<48x50xi32>
    %5 = arith.sitofp %4 : vector<48x50xi32> to vector<48x50xf32>
    %c0_1 = arith.constant 0 : index
    %c0_2 = arith.constant 0 : index
    %6 = vector.load %arg1[%c0_1, %c0_2] : memref<48x1xi32, #tpu.memory_space<vmem>>, vector<48x1xi32>
    %7 = vector.broadcast %6 : vector<48x1xi32> to vector<48x50xi32>
    %8 = arith.cmpi eq, %0, %7 : vector<48x50xi32>
    %9 = arith.extui %8 : vector<48x50xi1> to vector<48x50xi32>
    %10 = arith.sitofp %9 : vector<48x50xi32> to vector<48x50xf32>
    %c0_3 = arith.constant 0 : index
    %c0_4 = arith.constant 0 : index
    %11 = vector.load %arg2[%c0_3, %c0_4] : memref<50x8xf32, #tpu.memory_space<vmem>>, vector<50x8xf32>
    %cst = arith.constant dense<0.000000e+00> : vector<48x8xf32>
    %12 = tpu.matmul %5, %11, %cst {dimension_numbers = #tpu.dot_dimension_numbers<[1], [0], [0], [1], [0, 0, 1, 1], [], []>} : vector<48x50xf32>, vector<50x8xf32>, vector<48x8xf32> -> vector<48x8xf32>
    %c0_5 = arith.constant 0 : index
    %c0_6 = arith.constant 0 : index
    %13 = vector.load %arg2[%c0_5, %c0_6] : memref<50x8xf32, #tpu.memory_space<vmem>>, vector<50x8xf32>
    %cst_7 = arith.constant dense<0.000000e+00> : vector<48x8xf32>
    %14 = tpu.matmul %10, %13, %cst_7 {dimension_numbers = #tpu.dot_dimension_numbers<[1], [0], [0], [1], [0, 0, 1, 1], [], []>} : vector<48x50xf32>, vector<50x8xf32>, vector<48x8xf32> -> vector<48x8xf32>
    %15 = tpu.concatenate %12, %14 in 1 : vector<48x8xf32>, vector<48x8xf32> -> vector<48x16xf32>
    %c0_8 = arith.constant 0 : index
    %c0_9 = arith.constant 0 : index
    %16 = vector.load %arg3[%c0_8, %c0_9] : memref<16x64xf32, #tpu.memory_space<vmem>>, vector<16x64xf32>
    %cst_10 = arith.constant dense<0.000000e+00> : vector<48x64xf32>
    %17 = tpu.matmul %15, %16, %cst_10 {dimension_numbers = #tpu.dot_dimension_numbers<[1], [0], [0], [1], [0, 0, 1, 1], [], []>} : vector<48x16xf32>, vector<16x64xf32>, vector<48x64xf32> -> vector<48x64xf32>
    %c0_11 = arith.constant 0 : index
    %c0_12 = arith.constant 0 : index
    %18 = vector.load %arg5[%c0_11, %c0_12] : memref<1x64xf32, #tpu.memory_space<vmem>>, vector<1x64xf32>
    %19 = vector.broadcast %18 : vector<1x64xf32> to vector<48x64xf32>
    %20 = arith.addf %17, %19 : vector<48x64xf32>
    %21 = vector.shape_cast %20 : vector<48x64xf32> to vector<12x4x64xf32>
    %c0_13 = arith.constant 0 : index
    %c0_14 = arith.constant 0 : index
    %c0_15 = arith.constant 0 : index
    %22 = vector.load %arg15[%c0_13, %c0_14, %c0_15] : memref<12x4x64xf32, #tpu.memory_space<vmem>>, vector<12x4x64xf32>
    tpu.vector_store %arg15[%c0_13, %c0_14, %c0_15], %21 {strides = array<i32>} : memref<12x4x64xf32, #tpu.memory_space<vmem>>, vector<12x4x64xf32>,
    %c0_16 = arith.constant 0 : index
    %c0_17 = arith.constant 0 : index
    %23 = vector.load %arg4[%c0_16, %c0_17] : memref<16x64xf32, #tpu.memory_space<vmem>>, vector<16x64xf32>
    %cst_18 = arith.constant 0.000000e+00 : f32
    %24 = vector.broadcast %cst_18 : f32 to vector<4x16xf32>
    %cst_19 = arith.constant 0.000000e+00 : f32
    %25 = vector.broadcast %cst_19 : f32 to vector<4x16xf32>
    %c0_20 = arith.constant 0 : index
    %c0_21 = arith.constant 0 : index
    %c0_22 = arith.constant 0 : index
    %26 = vector.load %arg15[%c0_20, %c0_21, %c0_22] : memref<12x4x64xf32, #tpu.memory_space<vmem>>, vector<1x4x64xf32>
    %27 = vector.shape_cast %26 : vector<1x4x64xf32> to vector<4x64xf32>
    %cst_23 = arith.constant dense<0.000000e+00> : vector<4x64xf32>
    %28 = tpu.matmul %24, %23, %cst_23 {dimension_numbers = #tpu.dot_dimension_numbers<[1], [0], [0], [1], [0, 0, 1, 1], [], []>} : vector<4x16xf32>, vector<16x64xf32>, vector<4x64xf32> -> vector<4x64xf32>
    %29 = arith.addf %27, %28 : vector<4x64xf32>
    %30 = arith.negf %29 : vector<4x64xf32>
    %31 = math.exp %30 : vector<4x64xf32>
    %cst_24 = arith.constant 1.000000e+00 : f32
    %32 = vector.broadcast %cst_24 : f32 to vector<4x64xf32>
    %33 = arith.addf %32, %31 : vector<4x64xf32>
    %34 = arith.divf %32, %33 : vector<4x64xf32>
    %35 = vector.extract_strided_slice %34 {offsets = [0, 0], sizes = [4, 16], strides = [1, 1]} : vector<4x64xf32> to vector<4x16xf32>
    %36 = vector.extract_strided_slice %34 {offsets = [0, 16], sizes = [4, 16], strides = [1, 1]} : vector<4x64xf32> to vector<4x16xf32>
    %37 = vector.extract_strided_slice %34 {offsets = [0, 48], sizes = [4, 16], strides = [1, 1]} : vector<4x64xf32> to vector<4x16xf32>
    %38 = vector.extract_strided_slice %29 {offsets = [0, 32], sizes = [4, 16], strides = [1, 1]} : vector<4x64xf32> to vector<4x16xf32>
    %39 = math.tanh %38 : vector<4x16xf32>
    %40 = arith.mulf %36, %25 : vector<4x16xf32>
    %41 = arith.mulf %35, %39 : vector<4x16xf32>
    %42 = arith.addf %40, %41 : vector<4x16xf32>
    %43 = math.tanh %42 : vector<4x16xf32>
    %44 = arith.mulf %37, %43 : vector<4x16xf32>
    %c0_25 = arith.constant 0 : index
    %c0_26 = arith.constant 0 : index
    %c0_27 = arith.constant 0 : index
    %45 = vector.load %arg16[%c0_25, %c0_26, %c0_27] : memref<12x4x16xf32, #tpu.memory_space<vmem>>, vector<1x4x16xf32>
    %46 = vector.shape_cast %45 : vector<1x4x16xf32> to vector<4x16xf32>
    %47 = vector.shape_cast %44 : vector<4x16xf32> to vector<1x4x16xf32>
    tpu.vector_store %arg16[%c0_25, %c0_26, %c0_27], %47 {strides = array<i32>} : memref<12x4x16xf32, #tpu.memory_space<vmem>>, vector<1x4x16xf32>,
    %c1 = arith.constant 1 : index
    %c0_28 = arith.constant 0 : index
    %c0_29 = arith.constant 0 : index
    %48 = vector.load %arg15[%c1, %c0_28, %c0_29] : memref<12x4x64xf32, #tpu.memory_space<vmem>>, vector<1x4x64xf32>
    %49 = vector.shape_cast %48 : vector<1x4x64xf32> to vector<4x64xf32>
    %cst_30 = arith.constant dense<0.000000e+00> : vector<4x64xf32>
    %50 = tpu.matmul %44, %23, %cst_30 {dimension_numbers = #tpu.dot_dimension_numbers<[1], [0], [0], [1], [0, 0, 1, 1], [], []>} : vector<4x16xf32>, vector<16x64xf32>, vector<4x64xf32> -> vector<4x64xf32>
    %51 = arith.addf %49, %50 : vector<4x64xf32>
    %52 = arith.negf %51 : vector<4x64xf32>
    %53 = math.exp %52 : vector<4x64xf32>
    %cst_31 = arith.constant 1.000000e+00 : f32
    %54 = vector.broadcast %cst_31 : f32 to vector<4x64xf32>
    %55 = arith.addf %54, %53 : vector<4x64xf32>
    %56 = arith.divf %54, %55 : vector<4x64xf32>
    %57 = vector.extract_strided_slice %56 {offsets = [0, 0], sizes = [4, 16], strides = [1, 1]} : vector<4x64xf32> to vector<4x16xf32>
    %58 = vector.extract_strided_slice %56 {offsets = [0, 16], sizes = [4, 16], strides = [1, 1]} : vector<4x64xf32> to vector<4x16xf32>
    %59 = vector.extract_strided_slice %56 {offsets = [0, 48], sizes = [4, 16], strides = [1, 1]} : vector<4x64xf32> to vector<4x16xf32>
    %60 = vector.extract_strided_slice %51 {offsets = [0, 32], sizes = [4, 16], strides = [1, 1]} : vector<4x64xf32> to vector<4x16xf32>
    %61 = math.tanh %60 : vector<4x16xf32>
    %62 = arith.mulf %58, %42 : vector<4x16xf32>
    %63 = arith.mulf %57, %61 : vector<4x16xf32>
    %64 = arith.addf %62, %63 : vector<4x16xf32>
    %65 = math.tanh %64 : vector<4x16xf32>
    %66 = arith.mulf %59, %65 : vector<4x16xf32>
    %c1_32 = arith.constant 1 : index
    %c0_33 = arith.constant 0 : index
    %c0_34 = arith.constant 0 : index
    %67 = vector.load %arg16[%c1_32, %c0_33, %c0_34] : memref<12x4x16xf32, #tpu.memory_space<vmem>>, vector<1x4x16xf32>
    %68 = vector.shape_cast %67 : vector<1x4x16xf32> to vector<4x16xf32>
    %69 = vector.shape_cast %66 : vector<4x16xf32> to vector<1x4x16xf32>
    tpu.vector_store %arg16[%c1_32, %c0_33, %c0_34], %69 {strides = array<i32>} : memref<12x4x16xf32, #tpu.memory_space<vmem>>, vector<1x4x16xf32>,
    %c2 = arith.constant 2 : index
    %c0_35 = arith.constant 0 : index
    %c0_36 = arith.constant 0 : index
    %70 = vector.load %arg15[%c2, %c0_35, %c0_36] : memref<12x4x64xf32, #tpu.memory_space<vmem>>, vector<1x4x64xf32>
    %71 = vector.shape_cast %70 : vector<1x4x64xf32> to vector<4x64xf32>
    %cst_37 = arith.constant dense<0.000000e+00> : vector<4x64xf32>
    %72 = tpu.matmul %66, %23, %cst_37 {dimension_numbers = #tpu.dot_dimension_numbers<[1], [0], [0], [1], [0, 0, 1, 1], [], []>} : vector<4x16xf32>, vector<16x64xf32>, vector<4x64xf32> -> vector<4x64xf32>
    %73 = arith.addf %71, %72 : vector<4x64xf32>
    %74 = arith.negf %73 : vector<4x64xf32>
    %75 = math.exp %74 : vector<4x64xf32>
    %cst_38 = arith.constant 1.000000e+00 : f32
    %76 = vector.broadcast %cst_38 : f32 to vector<4x64xf32>
    %77 = arith.addf %76, %75 : vector<4x64xf32>
    %78 = arith.divf %76, %77 : vector<4x64xf32>
    %79 = vector.extract_strided_slice %78 {offsets = [0, 0], sizes = [4, 16], strides = [1, 1]} : vector<4x64xf32> to vector<4x16xf32>
    %80 = vector.extract_strided_slice %78 {offsets = [0, 16], sizes = [4, 16], strides = [1, 1]} : vector<4x64xf32> to vector<4x16xf32>
    %81 = vector.extract_strided_slice %78 {offsets = [0, 48], sizes = [4, 16], strides = [1, 1]} : vector<4x64xf32> to vector<4x16xf32>
    %82 = vector.extract_strided_slice %73 {offsets = [0, 32], sizes = [4, 16], strides = [1, 1]} : vector<4x64xf32> to vector<4x16xf32>
    %83 = math.tanh %82 : vector<4x16xf32>
    %84 = arith.mulf %80, %64 : vector<4x16xf32>
    %85 = arith.mulf %79, %83 : vector<4x16xf32>
    %86 = arith.addf %84, %85 : vector<4x16xf32>
    %87 = math.tanh %86 : vector<4x16xf32>
    %88 = arith.mulf %81, %87 : vector<4x16xf32>
    %c2_39 = arith.constant 2 : index
    %c0_40 = arith.constant 0 : index
    %c0_41 = arith.constant 0 : index
    %89 = vector.load %arg16[%c2_39, %c0_40, %c0_41] : memref<12x4x16xf32, #tpu.memory_space<vmem>>, vector<1x4x16xf32>
    %90 = vector.shape_cast %89 : vector<1x4x16xf32> to vector<4x16xf32>
    %91 = vector.shape_cast %88 : vector<4x16xf32> to vector<1x4x16xf32>
    tpu.vector_store %arg16[%c2_39, %c0_40, %c0_41], %91 {strides = array<i32>} : memref<12x4x16xf32, #tpu.memory_space<vmem>>, vector<1x4x16xf32>,
    %c3 = arith.constant 3 : index
    %c0_42 = arith.constant 0 : index
    %c0_43 = arith.constant 0 : index
    %92 = vector.load %arg15[%c3, %c0_42, %c0_43] : memref<12x4x64xf32, #tpu.memory_space<vmem>>, vector<1x4x64xf32>
    %93 = vector.shape_cast %92 : vector<1x4x64xf32> to vector<4x64xf32>
    %cst_44 = arith.constant dense<0.000000e+00> : vector<4x64xf32>
    %94 = tpu.matmul %88, %23, %cst_44 {dimension_numbers = #tpu.dot_dimension_numbers<[1], [0], [0], [1], [0, 0, 1, 1], [], []>} : vector<4x16xf32>, vector<16x64xf32>, vector<4x64xf32> -> vector<4x64xf32>
    %95 = arith.addf %93, %94 : vector<4x64xf32>
    %96 = arith.negf %95 : vector<4x64xf32>
    %97 = math.exp %96 : vector<4x64xf32>
    %cst_45 = arith.constant 1.000000e+00 : f32
    %98 = vector.broadcast %cst_45 : f32 to vector<4x64xf32>
    %99 = arith.addf %98, %97 : vector<4x64xf32>
    %100 = arith.divf %98, %99 : vector<4x64xf32>
    %101 = vector.extract_strided_slice %100 {offsets = [0, 0], sizes = [4, 16], strides = [1, 1]} : vector<4x64xf32> to vector<4x16xf32>
    %102 = vector.extract_strided_slice %100 {offsets = [0, 16], sizes = [4, 16], strides = [1, 1]} : vector<4x64xf32> to vector<4x16xf32>
    %103 = vector.extract_strided_slice %100 {offsets = [0, 48], sizes = [4, 16], strides = [1, 1]} : vector<4x64xf32> to vector<4x16xf32>
    %104 = vector.extract_strided_slice %95 {offsets = [0, 32], sizes = [4, 16], strides = [1, 1]} : vector<4x64xf32> to vector<4x16xf32>
    %105 = math.tanh %104 : vector<4x16xf32>
    %106 = arith.mulf %102, %86 : vector<4x16xf32>
    %107 = arith.mulf %101, %105 : vector<4x16xf32>
    %108 = arith.addf %106, %107 : vector<4x16xf32>
    %109 = math.tanh %108 : vector<4x16xf32>
    %110 = arith.mulf %103, %109 : vector<4x16xf32>
    %c3_46 = arith.constant 3 : index
    %c0_47 = arith.constant 0 : index
    %c0_48 = arith.constant 0 : index
    %111 = vector.load %arg16[%c3_46, %c0_47, %c0_48] : memref<12x4x16xf32, #tpu.memory_space<vmem>>, vector<1x4x16xf32>
    %112 = vector.shape_cast %111 : vector<1x4x16xf32> to vector<4x16xf32>
    %113 = vector.shape_cast %110 : vector<4x16xf32> to vector<1x4x16xf32>
    tpu.vector_store %arg16[%c3_46, %c0_47, %c0_48], %113 {strides = array<i32>} : memref<12x4x16xf32, #tpu.memory_space<vmem>>, vector<1x4x16xf32>,
    %c4 = arith.constant 4 : index
    %c0_49 = arith.constant 0 : index
    %c0_50 = arith.constant 0 : index
    %114 = vector.load %arg15[%c4, %c0_49, %c0_50] : memref<12x4x64xf32, #tpu.memory_space<vmem>>, vector<1x4x64xf32>
    %115 = vector.shape_cast %114 : vector<1x4x64xf32> to vector<4x64xf32>
    %cst_51 = arith.constant dense<0.000000e+00> : vector<4x64xf32>
    %116 = tpu.matmul %110, %23, %cst_51 {dimension_numbers = #tpu.dot_dimension_numbers<[1], [0], [0], [1], [0, 0, 1, 1], [], []>} : vector<4x16xf32>, vector<16x64xf32>, vector<4x64xf32> -> vector<4x64xf32>
    %117 = arith.addf %115, %116 : vector<4x64xf32>
    %118 = arith.negf %117 : vector<4x64xf32>
    %119 = math.exp %118 : vector<4x64xf32>
    %cst_52 = arith.constant 1.000000e+00 : f32
    %120 = vector.broadcast %cst_52 : f32 to vector<4x64xf32>
    %121 = arith.addf %120, %119 : vector<4x64xf32>
    %122 = arith.divf %120, %121 : vector<4x64xf32>
    %123 = vector.extract_strided_slice %122 {offsets = [0, 0], sizes = [4, 16], strides = [1, 1]} : vector<4x64xf32> to vector<4x16xf32>
    %124 = vector.extract_strided_slice %122 {offsets = [0, 16], sizes = [4, 16], strides = [1, 1]} : vector<4x64xf32> to vector<4x16xf32>
    %125 = vector.extract_strided_slice %122 {offsets = [0, 48], sizes = [4, 16], strides = [1, 1]} : vector<4x64xf32> to vector<4x16xf32>
    %126 = vector.extract_strided_slice %117 {offsets = [0, 32], sizes = [4, 16], strides = [1, 1]} : vector<4x64xf32> to vector<4x16xf32>
    %127 = math.tanh %126 : vector<4x16xf32>
    %128 = arith.mulf %124, %108 : vector<4x16xf32>
    %129 = arith.mulf %123, %127 : vector<4x16xf32>
    %130 = arith.addf %128, %129 : vector<4x16xf32>
    %131 = math.tanh %130 : vector<4x16xf32>
    %132 = arith.mulf %125, %131 : vector<4x16xf32>
    %c4_53 = arith.constant 4 : index
    %c0_54 = arith.constant 0 : index
    %c0_55 = arith.constant 0 : index
    %133 = vector.load %arg16[%c4_53, %c0_54, %c0_55] : memref<12x4x16xf32, #tpu.memory_space<vmem>>, vector<1x4x16xf32>
    %134 = vector.shape_cast %133 : vector<1x4x16xf32> to vector<4x16xf32>
    %135 = vector.shape_cast %132 : vector<4x16xf32> to vector<1x4x16xf32>
    tpu.vector_store %arg16[%c4_53, %c0_54, %c0_55], %135 {strides = array<i32>} : memref<12x4x16xf32, #tpu.memory_space<vmem>>, vector<1x4x16xf32>,
    %c5 = arith.constant 5 : index
    %c0_56 = arith.constant 0 : index
    %c0_57 = arith.constant 0 : index
    %136 = vector.load %arg15[%c5, %c0_56, %c0_57] : memref<12x4x64xf32, #tpu.memory_space<vmem>>, vector<1x4x64xf32>
    %137 = vector.shape_cast %136 : vector<1x4x64xf32> to vector<4x64xf32>
    %cst_58 = arith.constant dense<0.000000e+00> : vector<4x64xf32>
    %138 = tpu.matmul %132, %23, %cst_58 {dimension_numbers = #tpu.dot_dimension_numbers<[1], [0], [0], [1], [0, 0, 1, 1], [], []>} : vector<4x16xf32>, vector<16x64xf32>, vector<4x64xf32> -> vector<4x64xf32>
    %139 = arith.addf %137, %138 : vector<4x64xf32>
    %140 = arith.negf %139 : vector<4x64xf32>
    %141 = math.exp %140 : vector<4x64xf32>
    %cst_59 = arith.constant 1.000000e+00 : f32
    %142 = vector.broadcast %cst_59 : f32 to vector<4x64xf32>
    %143 = arith.addf %142, %141 : vector<4x64xf32>
    %144 = arith.divf %142, %143 : vector<4x64xf32>
    %145 = vector.extract_strided_slice %144 {offsets = [0, 0], sizes = [4, 16], strides = [1, 1]} : vector<4x64xf32> to vector<4x16xf32>
    %146 = vector.extract_strided_slice %144 {offsets = [0, 16], sizes = [4, 16], strides = [1, 1]} : vector<4x64xf32> to vector<4x16xf32>
    %147 = vector.extract_strided_slice %144 {offsets = [0, 48], sizes = [4, 16], strides = [1, 1]} : vector<4x64xf32> to vector<4x16xf32>
    %148 = vector.extract_strided_slice %139 {offsets = [0, 32], sizes = [4, 16], strides = [1, 1]} : vector<4x64xf32> to vector<4x16xf32>
    %149 = math.tanh %148 : vector<4x16xf32>
    %150 = arith.mulf %146, %130 : vector<4x16xf32>
    %151 = arith.mulf %145, %149 : vector<4x16xf32>
    %152 = arith.addf %150, %151 : vector<4x16xf32>
    %153 = math.tanh %152 : vector<4x16xf32>
    %154 = arith.mulf %147, %153 : vector<4x16xf32>
    %c5_60 = arith.constant 5 : index
    %c0_61 = arith.constant 0 : index
    %c0_62 = arith.constant 0 : index
    %155 = vector.load %arg16[%c5_60, %c0_61, %c0_62] : memref<12x4x16xf32, #tpu.memory_space<vmem>>, vector<1x4x16xf32>
    %156 = vector.shape_cast %155 : vector<1x4x16xf32> to vector<4x16xf32>
    %157 = vector.shape_cast %154 : vector<4x16xf32> to vector<1x4x16xf32>
    tpu.vector_store %arg16[%c5_60, %c0_61, %c0_62], %157 {strides = array<i32>} : memref<12x4x16xf32, #tpu.memory_space<vmem>>, vector<1x4x16xf32>,
    %c6 = arith.constant 6 : index
    %c0_63 = arith.constant 0 : index
    %c0_64 = arith.constant 0 : index
    %158 = vector.load %arg15[%c6, %c0_63, %c0_64] : memref<12x4x64xf32, #tpu.memory_space<vmem>>, vector<1x4x64xf32>
    %159 = vector.shape_cast %158 : vector<1x4x64xf32> to vector<4x64xf32>
    %cst_65 = arith.constant dense<0.000000e+00> : vector<4x64xf32>
    %160 = tpu.matmul %154, %23, %cst_65 {dimension_numbers = #tpu.dot_dimension_numbers<[1], [0], [0], [1], [0, 0, 1, 1], [], []>} : vector<4x16xf32>, vector<16x64xf32>, vector<4x64xf32> -> vector<4x64xf32>
    %161 = arith.addf %159, %160 : vector<4x64xf32>
    %162 = arith.negf %161 : vector<4x64xf32>
    %163 = math.exp %162 : vector<4x64xf32>
    %cst_66 = arith.constant 1.000000e+00 : f32
    %164 = vector.broadcast %cst_66 : f32 to vector<4x64xf32>
    %165 = arith.addf %164, %163 : vector<4x64xf32>
    %166 = arith.divf %164, %165 : vector<4x64xf32>
    %167 = vector.extract_strided_slice %166 {offsets = [0, 0], sizes = [4, 16], strides = [1, 1]} : vector<4x64xf32> to vector<4x16xf32>
    %168 = vector.extract_strided_slice %166 {offsets = [0, 16], sizes = [4, 16], strides = [1, 1]} : vector<4x64xf32> to vector<4x16xf32>
    %169 = vector.extract_strided_slice %166 {offsets = [0, 48], sizes = [4, 16], strides = [1, 1]} : vector<4x64xf32> to vector<4x16xf32>
    %170 = vector.extract_strided_slice %161 {offsets = [0, 32], sizes = [4, 16], strides = [1, 1]} : vector<4x64xf32> to vector<4x16xf32>
    %171 = math.tanh %170 : vector<4x16xf32>
    %172 = arith.mulf %168, %152 : vector<4x16xf32>
    %173 = arith.mulf %167, %171 : vector<4x16xf32>
    %174 = arith.addf %172, %173 : vector<4x16xf32>
    %175 = math.tanh %174 : vector<4x16xf32>
    %176 = arith.mulf %169, %175 : vector<4x16xf32>
    %c6_67 = arith.constant 6 : index
    %c0_68 = arith.constant 0 : index
    %c0_69 = arith.constant 0 : index
    %177 = vector.load %arg16[%c6_67, %c0_68, %c0_69] : memref<12x4x16xf32, #tpu.memory_space<vmem>>, vector<1x4x16xf32>
    %178 = vector.shape_cast %177 : vector<1x4x16xf32> to vector<4x16xf32>
    %179 = vector.shape_cast %176 : vector<4x16xf32> to vector<1x4x16xf32>
    tpu.vector_store %arg16[%c6_67, %c0_68, %c0_69], %179 {strides = array<i32>} : memref<12x4x16xf32, #tpu.memory_space<vmem>>, vector<1x4x16xf32>,
    %c7 = arith.constant 7 : index
    %c0_70 = arith.constant 0 : index
    %c0_71 = arith.constant 0 : index
    %180 = vector.load %arg15[%c7, %c0_70, %c0_71] : memref<12x4x64xf32, #tpu.memory_space<vmem>>, vector<1x4x64xf32>
    %181 = vector.shape_cast %180 : vector<1x4x64xf32> to vector<4x64xf32>
    %cst_72 = arith.constant dense<0.000000e+00> : vector<4x64xf32>
    %182 = tpu.matmul %176, %23, %cst_72 {dimension_numbers = #tpu.dot_dimension_numbers<[1], [0], [0], [1], [0, 0, 1, 1], [], []>} : vector<4x16xf32>, vector<16x64xf32>, vector<4x64xf32> -> vector<4x64xf32>
    %183 = arith.addf %181, %182 : vector<4x64xf32>
    %184 = arith.negf %183 : vector<4x64xf32>
    %185 = math.exp %184 : vector<4x64xf32>
    %cst_73 = arith.constant 1.000000e+00 : f32
    %186 = vector.broadcast %cst_73 : f32 to vector<4x64xf32>
    %187 = arith.addf %186, %185 : vector<4x64xf32>
    %188 = arith.divf %186, %187 : vector<4x64xf32>
    %189 = vector.extract_strided_slice %188 {offsets = [0, 0], sizes = [4, 16], strides = [1, 1]} : vector<4x64xf32> to vector<4x16xf32>
    %190 = vector.extract_strided_slice %188 {offsets = [0, 16], sizes = [4, 16], strides = [1, 1]} : vector<4x64xf32> to vector<4x16xf32>
    %191 = vector.extract_strided_slice %188 {offsets = [0, 48], sizes = [4, 16], strides = [1, 1]} : vector<4x64xf32> to vector<4x16xf32>
    %192 = vector.extract_strided_slice %183 {offsets = [0, 32], sizes = [4, 16], strides = [1, 1]} : vector<4x64xf32> to vector<4x16xf32>
    %193 = math.tanh %192 : vector<4x16xf32>
    %194 = arith.mulf %190, %174 : vector<4x16xf32>
    %195 = arith.mulf %189, %193 : vector<4x16xf32>
    %196 = arith.addf %194, %195 : vector<4x16xf32>
    %197 = math.tanh %196 : vector<4x16xf32>
    %198 = arith.mulf %191, %197 : vector<4x16xf32>
    %c7_74 = arith.constant 7 : index
    %c0_75 = arith.constant 0 : index
    %c0_76 = arith.constant 0 : index
    %199 = vector.load %arg16[%c7_74, %c0_75, %c0_76] : memref<12x4x16xf32, #tpu.memory_space<vmem>>, vector<1x4x16xf32>
    %200 = vector.shape_cast %199 : vector<1x4x16xf32> to vector<4x16xf32>
    %201 = vector.shape_cast %198 : vector<4x16xf32> to vector<1x4x16xf32>
    tpu.vector_store %arg16[%c7_74, %c0_75, %c0_76], %201 {strides = array<i32>} : memref<12x4x16xf32, #tpu.memory_space<vmem>>, vector<1x4x16xf32>,
    %c8 = arith.constant 8 : index
    %c0_77 = arith.constant 0 : index
    %c0_78 = arith.constant 0 : index
    %202 = vector.load %arg15[%c8, %c0_77, %c0_78] : memref<12x4x64xf32, #tpu.memory_space<vmem>>, vector<1x4x64xf32>
    %203 = vector.shape_cast %202 : vector<1x4x64xf32> to vector<4x64xf32>
    %cst_79 = arith.constant dense<0.000000e+00> : vector<4x64xf32>
    %204 = tpu.matmul %198, %23, %cst_79 {dimension_numbers = #tpu.dot_dimension_numbers<[1], [0], [0], [1], [0, 0, 1, 1], [], []>} : vector<4x16xf32>, vector<16x64xf32>, vector<4x64xf32> -> vector<4x64xf32>
    %205 = arith.addf %203, %204 : vector<4x64xf32>
    %206 = arith.negf %205 : vector<4x64xf32>
    %207 = math.exp %206 : vector<4x64xf32>
    %cst_80 = arith.constant 1.000000e+00 : f32
    %208 = vector.broadcast %cst_80 : f32 to vector<4x64xf32>
    %209 = arith.addf %208, %207 : vector<4x64xf32>
    %210 = arith.divf %208, %209 : vector<4x64xf32>
    %211 = vector.extract_strided_slice %210 {offsets = [0, 0], sizes = [4, 16], strides = [1, 1]} : vector<4x64xf32> to vector<4x16xf32>
    %212 = vector.extract_strided_slice %210 {offsets = [0, 16], sizes = [4, 16], strides = [1, 1]} : vector<4x64xf32> to vector<4x16xf32>
    %213 = vector.extract_strided_slice %210 {offsets = [0, 48], sizes = [4, 16], strides = [1, 1]} : vector<4x64xf32> to vector<4x16xf32>
    %214 = vector.extract_strided_slice %205 {offsets = [0, 32], sizes = [4, 16], strides = [1, 1]} : vector<4x64xf32> to vector<4x16xf32>
    %215 = math.tanh %214 : vector<4x16xf32>
    %216 = arith.mulf %212, %196 : vector<4x16xf32>
    %217 = arith.mulf %211, %215 : vector<4x16xf32>
    %218 = arith.addf %216, %217 : vector<4x16xf32>
    %219 = math.tanh %218 : vector<4x16xf32>
    %220 = arith.mulf %213, %219 : vector<4x16xf32>
    %c8_81 = arith.constant 8 : index
    %c0_82 = arith.constant 0 : index
    %c0_83 = arith.constant 0 : index
    %221 = vector.load %arg16[%c8_81, %c0_82, %c0_83] : memref<12x4x16xf32, #tpu.memory_space<vmem>>, vector<1x4x16xf32>
    %222 = vector.shape_cast %221 : vector<1x4x16xf32> to vector<4x16xf32>
    %223 = vector.shape_cast %220 : vector<4x16xf32> to vector<1x4x16xf32>
    tpu.vector_store %arg16[%c8_81, %c0_82, %c0_83], %223 {strides = array<i32>} : memref<12x4x16xf32, #tpu.memory_space<vmem>>, vector<1x4x16xf32>,
    %c9 = arith.constant 9 : index
    %c0_84 = arith.constant 0 : index
    %c0_85 = arith.constant 0 : index
    %224 = vector.load %arg15[%c9, %c0_84, %c0_85] : memref<12x4x64xf32, #tpu.memory_space<vmem>>, vector<1x4x64xf32>
    %225 = vector.shape_cast %224 : vector<1x4x64xf32> to vector<4x64xf32>
    %cst_86 = arith.constant dense<0.000000e+00> : vector<4x64xf32>
    %226 = tpu.matmul %220, %23, %cst_86 {dimension_numbers = #tpu.dot_dimension_numbers<[1], [0], [0], [1], [0, 0, 1, 1], [], []>} : vector<4x16xf32>, vector<16x64xf32>, vector<4x64xf32> -> vector<4x64xf32>
    %227 = arith.addf %225, %226 : vector<4x64xf32>
    %228 = arith.negf %227 : vector<4x64xf32>
    %229 = math.exp %228 : vector<4x64xf32>
    %cst_87 = arith.constant 1.000000e+00 : f32
    %230 = vector.broadcast %cst_87 : f32 to vector<4x64xf32>
    %231 = arith.addf %230, %229 : vector<4x64xf32>
    %232 = arith.divf %230, %231 : vector<4x64xf32>
    %233 = vector.extract_strided_slice %232 {offsets = [0, 0], sizes = [4, 16], strides = [1, 1]} : vector<4x64xf32> to vector<4x16xf32>
    %234 = vector.extract_strided_slice %232 {offsets = [0, 16], sizes = [4, 16], strides = [1, 1]} : vector<4x64xf32> to vector<4x16xf32>
    %235 = vector.extract_strided_slice %232 {offsets = [0, 48], sizes = [4, 16], strides = [1, 1]} : vector<4x64xf32> to vector<4x16xf32>
    %236 = vector.extract_strided_slice %227 {offsets = [0, 32], sizes = [4, 16], strides = [1, 1]} : vector<4x64xf32> to vector<4x16xf32>
    %237 = math.tanh %236 : vector<4x16xf32>
    %238 = arith.mulf %234, %218 : vector<4x16xf32>
    %239 = arith.mulf %233, %237 : vector<4x16xf32>
    %240 = arith.addf %238, %239 : vector<4x16xf32>
    %241 = math.tanh %240 : vector<4x16xf32>
    %242 = arith.mulf %235, %241 : vector<4x16xf32>
    %c9_88 = arith.constant 9 : index
    %c0_89 = arith.constant 0 : index
    %c0_90 = arith.constant 0 : index
    %243 = vector.load %arg16[%c9_88, %c0_89, %c0_90] : memref<12x4x16xf32, #tpu.memory_space<vmem>>, vector<1x4x16xf32>
    %244 = vector.shape_cast %243 : vector<1x4x16xf32> to vector<4x16xf32>
    %245 = vector.shape_cast %242 : vector<4x16xf32> to vector<1x4x16xf32>
    tpu.vector_store %arg16[%c9_88, %c0_89, %c0_90], %245 {strides = array<i32>} : memref<12x4x16xf32, #tpu.memory_space<vmem>>, vector<1x4x16xf32>,
    %c10 = arith.constant 10 : index
    %c0_91 = arith.constant 0 : index
    %c0_92 = arith.constant 0 : index
    %246 = vector.load %arg15[%c10, %c0_91, %c0_92] : memref<12x4x64xf32, #tpu.memory_space<vmem>>, vector<1x4x64xf32>
    %247 = vector.shape_cast %246 : vector<1x4x64xf32> to vector<4x64xf32>
    %cst_93 = arith.constant dense<0.000000e+00> : vector<4x64xf32>
    %248 = tpu.matmul %242, %23, %cst_93 {dimension_numbers = #tpu.dot_dimension_numbers<[1], [0], [0], [1], [0, 0, 1, 1], [], []>} : vector<4x16xf32>, vector<16x64xf32>, vector<4x64xf32> -> vector<4x64xf32>
    %249 = arith.addf %247, %248 : vector<4x64xf32>
    %250 = arith.negf %249 : vector<4x64xf32>
    %251 = math.exp %250 : vector<4x64xf32>
    %cst_94 = arith.constant 1.000000e+00 : f32
    %252 = vector.broadcast %cst_94 : f32 to vector<4x64xf32>
    %253 = arith.addf %252, %251 : vector<4x64xf32>
    %254 = arith.divf %252, %253 : vector<4x64xf32>
    %255 = vector.extract_strided_slice %254 {offsets = [0, 0], sizes = [4, 16], strides = [1, 1]} : vector<4x64xf32> to vector<4x16xf32>
    %256 = vector.extract_strided_slice %254 {offsets = [0, 16], sizes = [4, 16], strides = [1, 1]} : vector<4x64xf32> to vector<4x16xf32>
    %257 = vector.extract_strided_slice %254 {offsets = [0, 48], sizes = [4, 16], strides = [1, 1]} : vector<4x64xf32> to vector<4x16xf32>
    %258 = vector.extract_strided_slice %249 {offsets = [0, 32], sizes = [4, 16], strides = [1, 1]} : vector<4x64xf32> to vector<4x16xf32>
    %259 = math.tanh %258 : vector<4x16xf32>
    %260 = arith.mulf %256, %240 : vector<4x16xf32>
    %261 = arith.mulf %255, %259 : vector<4x16xf32>
    %262 = arith.addf %260, %261 : vector<4x16xf32>
    %263 = math.tanh %262 : vector<4x16xf32>
    %264 = arith.mulf %257, %263 : vector<4x16xf32>
    %c10_95 = arith.constant 10 : index
    %c0_96 = arith.constant 0 : index
    %c0_97 = arith.constant 0 : index
    %265 = vector.load %arg16[%c10_95, %c0_96, %c0_97] : memref<12x4x16xf32, #tpu.memory_space<vmem>>, vector<1x4x16xf32>
    %266 = vector.shape_cast %265 : vector<1x4x16xf32> to vector<4x16xf32>
    %267 = vector.shape_cast %264 : vector<4x16xf32> to vector<1x4x16xf32>
    tpu.vector_store %arg16[%c10_95, %c0_96, %c0_97], %267 {strides = array<i32>} : memref<12x4x16xf32, #tpu.memory_space<vmem>>, vector<1x4x16xf32>,
    %c11 = arith.constant 11 : index
    %c0_98 = arith.constant 0 : index
    %c0_99 = arith.constant 0 : index
    %268 = vector.load %arg15[%c11, %c0_98, %c0_99] : memref<12x4x64xf32, #tpu.memory_space<vmem>>, vector<1x4x64xf32>
    %269 = vector.shape_cast %268 : vector<1x4x64xf32> to vector<4x64xf32>
    %cst_100 = arith.constant dense<0.000000e+00> : vector<4x64xf32>
    %270 = tpu.matmul %264, %23, %cst_100 {dimension_numbers = #tpu.dot_dimension_numbers<[1], [0], [0], [1], [0, 0, 1, 1], [], []>} : vector<4x16xf32>, vector<16x64xf32>, vector<4x64xf32> -> vector<4x64xf32>
    %271 = arith.addf %269, %270 : vector<4x64xf32>
    %272 = arith.negf %271 : vector<4x64xf32>
    %273 = math.exp %272 : vector<4x64xf32>
    %cst_101 = arith.constant 1.000000e+00 : f32
    %274 = vector.broadcast %cst_101 : f32 to vector<4x64xf32>
    %275 = arith.addf %274, %273 : vector<4x64xf32>
    %276 = arith.divf %274, %275 : vector<4x64xf32>
    %277 = vector.extract_strided_slice %276 {offsets = [0, 0], sizes = [4, 16], strides = [1, 1]} : vector<4x64xf32> to vector<4x16xf32>
    %278 = vector.extract_strided_slice %276 {offsets = [0, 16], sizes = [4, 16], strides = [1, 1]} : vector<4x64xf32> to vector<4x16xf32>
    %279 = vector.extract_strided_slice %276 {offsets = [0, 48], sizes = [4, 16], strides = [1, 1]} : vector<4x64xf32> to vector<4x16xf32>
    %280 = vector.extract_strided_slice %271 {offsets = [0, 32], sizes = [4, 16], strides = [1, 1]} : vector<4x64xf32> to vector<4x16xf32>
    %281 = math.tanh %280 : vector<4x16xf32>
    %282 = arith.mulf %278, %262 : vector<4x16xf32>
    %283 = arith.mulf %277, %281 : vector<4x16xf32>
    %284 = arith.addf %282, %283 : vector<4x16xf32>
    %285 = math.tanh %284 : vector<4x16xf32>
    %286 = arith.mulf %279, %285 : vector<4x16xf32>
    %c11_102 = arith.constant 11 : index
    %c0_103 = arith.constant 0 : index
    %c0_104 = arith.constant 0 : index
    %287 = vector.load %arg16[%c11_102, %c0_103, %c0_104] : memref<12x4x16xf32, #tpu.memory_space<vmem>>, vector<1x4x16xf32>
    %288 = vector.shape_cast %287 : vector<1x4x16xf32> to vector<4x16xf32>
    %289 = vector.shape_cast %286 : vector<4x16xf32> to vector<1x4x16xf32>
    tpu.vector_store %arg16[%c11_102, %c0_103, %c0_104], %289 {strides = array<i32>} : memref<12x4x16xf32, #tpu.memory_space<vmem>>, vector<1x4x16xf32>,
    %c0_105 = arith.constant 0 : index
    %c0_106 = arith.constant 0 : index
    %c0_107 = arith.constant 0 : index
    %290 = vector.load %arg16[%c0_105, %c0_106, %c0_107] : memref<12x4x16xf32, #tpu.memory_space<vmem>>, vector<12x4x16xf32>
    %c11_108 = arith.constant 11 : index
    %c0_109 = arith.constant 0 : index
    %c0_110 = arith.constant 0 : index
    %291 = vector.load %arg16[%c11_108, %c0_109, %c0_110] : memref<12x4x16xf32, #tpu.memory_space<vmem>>, vector<1x4x16xf32>
    %292 = vector.shape_cast %291 : vector<1x4x16xf32> to vector<4x16xf32>
    %c10_111 = arith.constant 10 : index
    %c0_112 = arith.constant 0 : index
    %c0_113 = arith.constant 0 : index
    %293 = vector.load %arg16[%c10_111, %c0_112, %c0_113] : memref<12x4x16xf32, #tpu.memory_space<vmem>>, vector<1x4x16xf32>
    %294 = vector.shape_cast %293 : vector<1x4x16xf32> to vector<4x16xf32>
    %c9_114 = arith.constant 9 : index
    %c0_115 = arith.constant 0 : index
    %c0_116 = arith.constant 0 : index
    %295 = vector.load %arg16[%c9_114, %c0_115, %c0_116] : memref<12x4x16xf32, #tpu.memory_space<vmem>>, vector<1x4x16xf32>
    %296 = vector.shape_cast %295 : vector<1x4x16xf32> to vector<4x16xf32>
    %c8_117 = arith.constant 8 : index
    %c0_118 = arith.constant 0 : index
    %c0_119 = arith.constant 0 : index
    %297 = vector.load %arg16[%c8_117, %c0_118, %c0_119] : memref<12x4x16xf32, #tpu.memory_space<vmem>>, vector<1x4x16xf32>
    %298 = vector.shape_cast %297 : vector<1x4x16xf32> to vector<4x16xf32>
    %c7_120 = arith.constant 7 : index
    %c0_121 = arith.constant 0 : index
    %c0_122 = arith.constant 0 : index
    %299 = vector.load %arg16[%c7_120, %c0_121, %c0_122] : memref<12x4x16xf32, #tpu.memory_space<vmem>>, vector<1x4x16xf32>
    %300 = vector.shape_cast %299 : vector<1x4x16xf32> to vector<4x16xf32>
    %c6_123 = arith.constant 6 : index
    %c0_124 = arith.constant 0 : index
    %c0_125 = arith.constant 0 : index
    %301 = vector.load %arg16[%c6_123, %c0_124, %c0_125] : memref<12x4x16xf32, #tpu.memory_space<vmem>>, vector<1x4x16xf32>
    %302 = vector.shape_cast %301 : vector<1x4x16xf32> to vector<4x16xf32>
    %c5_126 = arith.constant 5 : index
    %c0_127 = arith.constant 0 : index
    %c0_128 = arith.constant 0 : index
    %303 = vector.load %arg16[%c5_126, %c0_127, %c0_128] : memref<12x4x16xf32, #tpu.memory_space<vmem>>, vector<1x4x16xf32>
    %304 = vector.shape_cast %303 : vector<1x4x16xf32> to vector<4x16xf32>
    %c4_129 = arith.constant 4 : index
    %c0_130 = arith.constant 0 : index
    %c0_131 = arith.constant 0 : index
    %305 = vector.load %arg16[%c4_129, %c0_130, %c0_131] : memref<12x4x16xf32, #tpu.memory_space<vmem>>, vector<1x4x16xf32>
    %306 = vector.shape_cast %305 : vector<1x4x16xf32> to vector<4x16xf32>
    %c3_132 = arith.constant 3 : index
    %c0_133 = arith.constant 0 : index
    %c0_134 = arith.constant 0 : index
    %307 = vector.load %arg16[%c3_132, %c0_133, %c0_134] : memref<12x4x16xf32, #tpu.memory_space<vmem>>, vector<1x4x16xf32>
    %308 = vector.shape_cast %307 : vector<1x4x16xf32> to vector<4x16xf32>
    %c2_135 = arith.constant 2 : index
    %c0_136 = arith.constant 0 : index
    %c0_137 = arith.constant 0 : index
    %309 = vector.load %arg16[%c2_135, %c0_136, %c0_137] : memref<12x4x16xf32, #tpu.memory_space<vmem>>, vector<1x4x16xf32>
    %310 = vector.shape_cast %309 : vector<1x4x16xf32> to vector<4x16xf32>
    %c1_138 = arith.constant 1 : index
    %c0_139 = arith.constant 0 : index
    %c0_140 = arith.constant 0 : index
    %311 = vector.load %arg16[%c1_138, %c0_139, %c0_140] : memref<12x4x16xf32, #tpu.memory_space<vmem>>, vector<1x4x16xf32>
    %312 = vector.shape_cast %311 : vector<1x4x16xf32> to vector<4x16xf32>
    %c0_141 = arith.constant 0 : index
    %c0_142 = arith.constant 0 : index
    %c0_143 = arith.constant 0 : index
    %313 = vector.load %arg16[%c0_141, %c0_142, %c0_143] : memref<12x4x16xf32, #tpu.memory_space<vmem>>, vector<1x4x16xf32>
    %314 = vector.shape_cast %313 : vector<1x4x16xf32> to vector<4x16xf32>
    %315 = vector.shape_cast %292 : vector<4x16xf32> to vector<1x4x16xf32>
    %316 = vector.shape_cast %294 : vector<4x16xf32> to vector<1x4x16xf32>
    %317 = vector.shape_cast %296 : vector<4x16xf32> to vector<1x4x16xf32>
    %318 = vector.shape_cast %298 : vector<4x16xf32> to vector<1x4x16xf32>
    %319 = vector.shape_cast %300 : vector<4x16xf32> to vector<1x4x16xf32>
    %320 = vector.shape_cast %302 : vector<4x16xf32> to vector<1x4x16xf32>
    %321 = vector.shape_cast %304 : vector<4x16xf32> to vector<1x4x16xf32>
    %322 = vector.shape_cast %306 : vector<4x16xf32> to vector<1x4x16xf32>
    %323 = vector.shape_cast %308 : vector<4x16xf32> to vector<1x4x16xf32>
    %324 = vector.shape_cast %310 : vector<4x16xf32> to vector<1x4x16xf32>
    %325 = vector.shape_cast %312 : vector<4x16xf32> to vector<1x4x16xf32>
    %326 = vector.shape_cast %314 : vector<4x16xf32> to vector<1x4x16xf32>
    %327 = tpu.concatenate %315, %316, %317, %318, %319, %320, %321, %322, %323, %324, %325, %326 in 0 : vector<1x4x16xf32>, vector<1x4x16xf32>, vector<1x4x16xf32>, vector<1x4x16xf32>, vector<1x4x16xf32>, vector<1x4x16xf32>, vector<1x4x16xf32>, vector<1x4x16xf32>, vector<1x4x16xf32>, vector<1x4x16xf32>, vector<1x4x16xf32>, vector<1x4x16xf32> -> vector<12x4x16xf32>
    %328 = tpu.concatenate %290, %327 in 2 : vector<12x4x16xf32>, vector<12x4x16xf32> -> vector<12x4x32xf32>
    %329 = vector.shape_cast %328 : vector<12x4x32xf32> to vector<48x32xf32>
    %c0_144 = arith.constant 0 : index
    %c0_145 = arith.constant 0 : index
    %330 = vector.load %arg6[%c0_144, %c0_145] : memref<32x64xf32, #tpu.memory_space<vmem>>, vector<32x64xf32>
    %cst_146 = arith.constant dense<0.000000e+00> : vector<48x64xf32>
    %331 = tpu.matmul %329, %330, %cst_146 {dimension_numbers = #tpu.dot_dimension_numbers<[1], [0], [0], [1], [0, 0, 1, 1], [], []>} : vector<48x32xf32>, vector<32x64xf32>, vector<48x64xf32> -> vector<48x64xf32>
    %c0_147 = arith.constant 0 : index
    %c0_148 = arith.constant 0 : index
    %332 = vector.load %arg8[%c0_147, %c0_148] : memref<1x64xf32, #tpu.memory_space<vmem>>, vector<1x64xf32>
    %333 = vector.broadcast %332 : vector<1x64xf32> to vector<48x64xf32>
    %334 = arith.addf %331, %333 : vector<48x64xf32>
    %335 = vector.shape_cast %334 : vector<48x64xf32> to vector<12x4x64xf32>
    %c0_149 = arith.constant 0 : index
    %c0_150 = arith.constant 0 : index
    %c0_151 = arith.constant 0 : index
    %336 = vector.load %arg15[%c0_149, %c0_150, %c0_151] : memref<12x4x64xf32, #tpu.memory_space<vmem>>, vector<12x4x64xf32>
    tpu.vector_store %arg15[%c0_149, %c0_150, %c0_151], %335 {strides = array<i32>} : memref<12x4x64xf32, #tpu.memory_space<vmem>>, vector<12x4x64xf32>,
    %c0_152 = arith.constant 0 : index
    %c0_153 = arith.constant 0 : index
    %337 = vector.load %arg7[%c0_152, %c0_153] : memref<16x64xf32, #tpu.memory_space<vmem>>, vector<16x64xf32>
    %cst_154 = arith.constant 0.000000e+00 : f32
    %338 = vector.broadcast %cst_154 : f32 to vector<4x16xf32>
    %cst_155 = arith.constant 0.000000e+00 : f32
    %339 = vector.broadcast %cst_155 : f32 to vector<4x16xf32>
    %c0_156 = arith.constant 0 : index
    %c0_157 = arith.constant 0 : index
    %c0_158 = arith.constant 0 : index
    %340 = vector.load %arg15[%c0_156, %c0_157, %c0_158] : memref<12x4x64xf32, #tpu.memory_space<vmem>>, vector<1x4x64xf32>
    %341 = vector.shape_cast %340 : vector<1x4x64xf32> to vector<4x64xf32>
    %cst_159 = arith.constant dense<0.000000e+00> : vector<4x64xf32>
    %342 = tpu.matmul %338, %337, %cst_159 {dimension_numbers = #tpu.dot_dimension_numbers<[1], [0], [0], [1], [0, 0, 1, 1], [], []>} : vector<4x16xf32>, vector<16x64xf32>, vector<4x64xf32> -> vector<4x64xf32>
    %343 = arith.addf %341, %342 : vector<4x64xf32>
    %344 = arith.negf %343 : vector<4x64xf32>
    %345 = math.exp %344 : vector<4x64xf32>
    %cst_160 = arith.constant 1.000000e+00 : f32
    %346 = vector.broadcast %cst_160 : f32 to vector<4x64xf32>
    %347 = arith.addf %346, %345 : vector<4x64xf32>
    %348 = arith.divf %346, %347 : vector<4x64xf32>
    %349 = vector.extract_strided_slice %348 {offsets = [0, 0], sizes = [4, 16], strides = [1, 1]} : vector<4x64xf32> to vector<4x16xf32>
    %350 = vector.extract_strided_slice %348 {offsets = [0, 16], sizes = [4, 16], strides = [1, 1]} : vector<4x64xf32> to vector<4x16xf32>
    %351 = vector.extract_strided_slice %348 {offsets = [0, 48], sizes = [4, 16], strides = [1, 1]} : vector<4x64xf32> to vector<4x16xf32>
    %352 = vector.extract_strided_slice %343 {offsets = [0, 32], sizes = [4, 16], strides = [1, 1]} : vector<4x64xf32> to vector<4x16xf32>
    %353 = math.tanh %352 : vector<4x16xf32>
    %354 = arith.mulf %350, %339 : vector<4x16xf32>
    %355 = arith.mulf %349, %353 : vector<4x16xf32>
    %356 = arith.addf %354, %355 : vector<4x16xf32>
    %357 = math.tanh %356 : vector<4x16xf32>
    %358 = arith.mulf %351, %357 : vector<4x16xf32>
    %c1_161 = arith.constant 1 : index
    %c0_162 = arith.constant 0 : index
    %c0_163 = arith.constant 0 : index
    %359 = vector.load %arg15[%c1_161, %c0_162, %c0_163] : memref<12x4x64xf32, #tpu.memory_space<vmem>>, vector<1x4x64xf32>
    %360 = vector.shape_cast %359 : vector<1x4x64xf32> to vector<4x64xf32>
    %cst_164 = arith.constant dense<0.000000e+00> : vector<4x64xf32>
    %361 = tpu.matmul %358, %337, %cst_164 {dimension_numbers = #tpu.dot_dimension_numbers<[1], [0], [0], [1], [0, 0, 1, 1], [], []>} : vector<4x16xf32>, vector<16x64xf32>, vector<4x64xf32> -> vector<4x64xf32>
    %362 = arith.addf %360, %361 : vector<4x64xf32>
    %363 = arith.negf %362 : vector<4x64xf32>
    %364 = math.exp %363 : vector<4x64xf32>
    %cst_165 = arith.constant 1.000000e+00 : f32
    %365 = vector.broadcast %cst_165 : f32 to vector<4x64xf32>
    %366 = arith.addf %365, %364 : vector<4x64xf32>
    %367 = arith.divf %365, %366 : vector<4x64xf32>
    %368 = vector.extract_strided_slice %367 {offsets = [0, 0], sizes = [4, 16], strides = [1, 1]} : vector<4x64xf32> to vector<4x16xf32>
    %369 = vector.extract_strided_slice %367 {offsets = [0, 16], sizes = [4, 16], strides = [1, 1]} : vector<4x64xf32> to vector<4x16xf32>
    %370 = vector.extract_strided_slice %367 {offsets = [0, 48], sizes = [4, 16], strides = [1, 1]} : vector<4x64xf32> to vector<4x16xf32>
    %371 = vector.extract_strided_slice %362 {offsets = [0, 32], sizes = [4, 16], strides = [1, 1]} : vector<4x64xf32> to vector<4x16xf32>
    %372 = math.tanh %371 : vector<4x16xf32>
    %373 = arith.mulf %369, %356 : vector<4x16xf32>
    %374 = arith.mulf %368, %372 : vector<4x16xf32>
    %375 = arith.addf %373, %374 : vector<4x16xf32>
    %376 = math.tanh %375 : vector<4x16xf32>
    %377 = arith.mulf %370, %376 : vector<4x16xf32>
    %c2_166 = arith.constant 2 : index
    %c0_167 = arith.constant 0 : index
    %c0_168 = arith.constant 0 : index
    %378 = vector.load %arg15[%c2_166, %c0_167, %c0_168] : memref<12x4x64xf32, #tpu.memory_space<vmem>>, vector<1x4x64xf32>
    %379 = vector.shape_cast %378 : vector<1x4x64xf32> to vector<4x64xf32>
    %cst_169 = arith.constant dense<0.000000e+00> : vector<4x64xf32>
    %380 = tpu.matmul %377, %337, %cst_169 {dimension_numbers = #tpu.dot_dimension_numbers<[1], [0], [0], [1], [0, 0, 1, 1], [], []>} : vector<4x16xf32>, vector<16x64xf32>, vector<4x64xf32> -> vector<4x64xf32>
    %381 = arith.addf %379, %380 : vector<4x64xf32>
    %382 = arith.negf %381 : vector<4x64xf32>
    %383 = math.exp %382 : vector<4x64xf32>
    %cst_170 = arith.constant 1.000000e+00 : f32
    %384 = vector.broadcast %cst_170 : f32 to vector<4x64xf32>
    %385 = arith.addf %384, %383 : vector<4x64xf32>
    %386 = arith.divf %384, %385 : vector<4x64xf32>
    %387 = vector.extract_strided_slice %386 {offsets = [0, 0], sizes = [4, 16], strides = [1, 1]} : vector<4x64xf32> to vector<4x16xf32>
    %388 = vector.extract_strided_slice %386 {offsets = [0, 16], sizes = [4, 16], strides = [1, 1]} : vector<4x64xf32> to vector<4x16xf32>
    %389 = vector.extract_strided_slice %386 {offsets = [0, 48], sizes = [4, 16], strides = [1, 1]} : vector<4x64xf32> to vector<4x16xf32>
    %390 = vector.extract_strided_slice %381 {offsets = [0, 32], sizes = [4, 16], strides = [1, 1]} : vector<4x64xf32> to vector<4x16xf32>
    %391 = math.tanh %390 : vector<4x16xf32>
    %392 = arith.mulf %388, %375 : vector<4x16xf32>
    %393 = arith.mulf %387, %391 : vector<4x16xf32>
    %394 = arith.addf %392, %393 : vector<4x16xf32>
    %395 = math.tanh %394 : vector<4x16xf32>
    %396 = arith.mulf %389, %395 : vector<4x16xf32>
    %c3_171 = arith.constant 3 : index
    %c0_172 = arith.constant 0 : index
    %c0_173 = arith.constant 0 : index
    %397 = vector.load %arg15[%c3_171, %c0_172, %c0_173] : memref<12x4x64xf32, #tpu.memory_space<vmem>>, vector<1x4x64xf32>
    %398 = vector.shape_cast %397 : vector<1x4x64xf32> to vector<4x64xf32>
    %cst_174 = arith.constant dense<0.000000e+00> : vector<4x64xf32>
    %399 = tpu.matmul %396, %337, %cst_174 {dimension_numbers = #tpu.dot_dimension_numbers<[1], [0], [0], [1], [0, 0, 1, 1], [], []>} : vector<4x16xf32>, vector<16x64xf32>, vector<4x64xf32> -> vector<4x64xf32>
    %400 = arith.addf %398, %399 : vector<4x64xf32>
    %401 = arith.negf %400 : vector<4x64xf32>
    %402 = math.exp %401 : vector<4x64xf32>
    %cst_175 = arith.constant 1.000000e+00 : f32
    %403 = vector.broadcast %cst_175 : f32 to vector<4x64xf32>
    %404 = arith.addf %403, %402 : vector<4x64xf32>
    %405 = arith.divf %403, %404 : vector<4x64xf32>
    %406 = vector.extract_strided_slice %405 {offsets = [0, 0], sizes = [4, 16], strides = [1, 1]} : vector<4x64xf32> to vector<4x16xf32>
    %407 = vector.extract_strided_slice %405 {offsets = [0, 16], sizes = [4, 16], strides = [1, 1]} : vector<4x64xf32> to vector<4x16xf32>
    %408 = vector.extract_strided_slice %405 {offsets = [0, 48], sizes = [4, 16], strides = [1, 1]} : vector<4x64xf32> to vector<4x16xf32>
    %409 = vector.extract_strided_slice %400 {offsets = [0, 32], sizes = [4, 16], strides = [1, 1]} : vector<4x64xf32> to vector<4x16xf32>
    %410 = math.tanh %409 : vector<4x16xf32>
    %411 = arith.mulf %407, %394 : vector<4x16xf32>
    %412 = arith.mulf %406, %410 : vector<4x16xf32>
    %413 = arith.addf %411, %412 : vector<4x16xf32>
    %414 = math.tanh %413 : vector<4x16xf32>
    %415 = arith.mulf %408, %414 : vector<4x16xf32>
    %c4_176 = arith.constant 4 : index
    %c0_177 = arith.constant 0 : index
    %c0_178 = arith.constant 0 : index
    %416 = vector.load %arg15[%c4_176, %c0_177, %c0_178] : memref<12x4x64xf32, #tpu.memory_space<vmem>>, vector<1x4x64xf32>
    %417 = vector.shape_cast %416 : vector<1x4x64xf32> to vector<4x64xf32>
    %cst_179 = arith.constant dense<0.000000e+00> : vector<4x64xf32>
    %418 = tpu.matmul %415, %337, %cst_179 {dimension_numbers = #tpu.dot_dimension_numbers<[1], [0], [0], [1], [0, 0, 1, 1], [], []>} : vector<4x16xf32>, vector<16x64xf32>, vector<4x64xf32> -> vector<4x64xf32>
    %419 = arith.addf %417, %418 : vector<4x64xf32>
    %420 = arith.negf %419 : vector<4x64xf32>
    %421 = math.exp %420 : vector<4x64xf32>
    %cst_180 = arith.constant 1.000000e+00 : f32
    %422 = vector.broadcast %cst_180 : f32 to vector<4x64xf32>
    %423 = arith.addf %422, %421 : vector<4x64xf32>
    %424 = arith.divf %422, %423 : vector<4x64xf32>
    %425 = vector.extract_strided_slice %424 {offsets = [0, 0], sizes = [4, 16], strides = [1, 1]} : vector<4x64xf32> to vector<4x16xf32>
    %426 = vector.extract_strided_slice %424 {offsets = [0, 16], sizes = [4, 16], strides = [1, 1]} : vector<4x64xf32> to vector<4x16xf32>
    %427 = vector.extract_strided_slice %424 {offsets = [0, 48], sizes = [4, 16], strides = [1, 1]} : vector<4x64xf32> to vector<4x16xf32>
    %428 = vector.extract_strided_slice %419 {offsets = [0, 32], sizes = [4, 16], strides = [1, 1]} : vector<4x64xf32> to vector<4x16xf32>
    %429 = math.tanh %428 : vector<4x16xf32>
    %430 = arith.mulf %426, %413 : vector<4x16xf32>
    %431 = arith.mulf %425, %429 : vector<4x16xf32>
    %432 = arith.addf %430, %431 : vector<4x16xf32>
    %433 = math.tanh %432 : vector<4x16xf32>
    %434 = arith.mulf %427, %433 : vector<4x16xf32>
    %c5_181 = arith.constant 5 : index
    %c0_182 = arith.constant 0 : index
    %c0_183 = arith.constant 0 : index
    %435 = vector.load %arg15[%c5_181, %c0_182, %c0_183] : memref<12x4x64xf32, #tpu.memory_space<vmem>>, vector<1x4x64xf32>
    %436 = vector.shape_cast %435 : vector<1x4x64xf32> to vector<4x64xf32>
    %cst_184 = arith.constant dense<0.000000e+00> : vector<4x64xf32>
    %437 = tpu.matmul %434, %337, %cst_184 {dimension_numbers = #tpu.dot_dimension_numbers<[1], [0], [0], [1], [0, 0, 1, 1], [], []>} : vector<4x16xf32>, vector<16x64xf32>, vector<4x64xf32> -> vector<4x64xf32>
    %438 = arith.addf %436, %437 : vector<4x64xf32>
    %439 = arith.negf %438 : vector<4x64xf32>
    %440 = math.exp %439 : vector<4x64xf32>
    %cst_185 = arith.constant 1.000000e+00 : f32
    %441 = vector.broadcast %cst_185 : f32 to vector<4x64xf32>
    %442 = arith.addf %441, %440 : vector<4x64xf32>
    %443 = arith.divf %441, %442 : vector<4x64xf32>
    %444 = vector.extract_strided_slice %443 {offsets = [0, 0], sizes = [4, 16], strides = [1, 1]} : vector<4x64xf32> to vector<4x16xf32>
    %445 = vector.extract_strided_slice %443 {offsets = [0, 16], sizes = [4, 16], strides = [1, 1]} : vector<4x64xf32> to vector<4x16xf32>
    %446 = vector.extract_strided_slice %443 {offsets = [0, 48], sizes = [4, 16], strides = [1, 1]} : vector<4x64xf32> to vector<4x16xf32>
    %447 = vector.extract_strided_slice %438 {offsets = [0, 32], sizes = [4, 16], strides = [1, 1]} : vector<4x64xf32> to vector<4x16xf32>
    %448 = math.tanh %447 : vector<4x16xf32>
    %449 = arith.mulf %445, %432 : vector<4x16xf32>
    %450 = arith.mulf %444, %448 : vector<4x16xf32>
    %451 = arith.addf %449, %450 : vector<4x16xf32>
    %452 = math.tanh %451 : vector<4x16xf32>
    %453 = arith.mulf %446, %452 : vector<4x16xf32>
    %c6_186 = arith.constant 6 : index
    %c0_187 = arith.constant 0 : index
    %c0_188 = arith.constant 0 : index
    %454 = vector.load %arg15[%c6_186, %c0_187, %c0_188] : memref<12x4x64xf32, #tpu.memory_space<vmem>>, vector<1x4x64xf32>
    %455 = vector.shape_cast %454 : vector<1x4x64xf32> to vector<4x64xf32>
    %cst_189 = arith.constant dense<0.000000e+00> : vector<4x64xf32>
    %456 = tpu.matmul %453, %337, %cst_189 {dimension_numbers = #tpu.dot_dimension_numbers<[1], [0], [0], [1], [0, 0, 1, 1], [], []>} : vector<4x16xf32>, vector<16x64xf32>, vector<4x64xf32> -> vector<4x64xf32>
    %457 = arith.addf %455, %456 : vector<4x64xf32>
    %458 = arith.negf %457 : vector<4x64xf32>
    %459 = math.exp %458 : vector<4x64xf32>
    %cst_190 = arith.constant 1.000000e+00 : f32
    %460 = vector.broadcast %cst_190 : f32 to vector<4x64xf32>
    %461 = arith.addf %460, %459 : vector<4x64xf32>
    %462 = arith.divf %460, %461 : vector<4x64xf32>
    %463 = vector.extract_strided_slice %462 {offsets = [0, 0], sizes = [4, 16], strides = [1, 1]} : vector<4x64xf32> to vector<4x16xf32>
    %464 = vector.extract_strided_slice %462 {offsets = [0, 16], sizes = [4, 16], strides = [1, 1]} : vector<4x64xf32> to vector<4x16xf32>
    %465 = vector.extract_strided_slice %462 {offsets = [0, 48], sizes = [4, 16], strides = [1, 1]} : vector<4x64xf32> to vector<4x16xf32>
    %466 = vector.extract_strided_slice %457 {offsets = [0, 32], sizes = [4, 16], strides = [1, 1]} : vector<4x64xf32> to vector<4x16xf32>
    %467 = math.tanh %466 : vector<4x16xf32>
    %468 = arith.mulf %464, %451 : vector<4x16xf32>
    %469 = arith.mulf %463, %467 : vector<4x16xf32>
    %470 = arith.addf %468, %469 : vector<4x16xf32>
    %471 = math.tanh %470 : vector<4x16xf32>
    %472 = arith.mulf %465, %471 : vector<4x16xf32>
    %c7_191 = arith.constant 7 : index
    %c0_192 = arith.constant 0 : index
    %c0_193 = arith.constant 0 : index
    %473 = vector.load %arg15[%c7_191, %c0_192, %c0_193] : memref<12x4x64xf32, #tpu.memory_space<vmem>>, vector<1x4x64xf32>
    %474 = vector.shape_cast %473 : vector<1x4x64xf32> to vector<4x64xf32>
    %cst_194 = arith.constant dense<0.000000e+00> : vector<4x64xf32>
    %475 = tpu.matmul %472, %337, %cst_194 {dimension_numbers = #tpu.dot_dimension_numbers<[1], [0], [0], [1], [0, 0, 1, 1], [], []>} : vector<4x16xf32>, vector<16x64xf32>, vector<4x64xf32> -> vector<4x64xf32>
    %476 = arith.addf %474, %475 : vector<4x64xf32>
    %477 = arith.negf %476 : vector<4x64xf32>
    %478 = math.exp %477 : vector<4x64xf32>
    %cst_195 = arith.constant 1.000000e+00 : f32
    %479 = vector.broadcast %cst_195 : f32 to vector<4x64xf32>
    %480 = arith.addf %479, %478 : vector<4x64xf32>
    %481 = arith.divf %479, %480 : vector<4x64xf32>
    %482 = vector.extract_strided_slice %481 {offsets = [0, 0], sizes = [4, 16], strides = [1, 1]} : vector<4x64xf32> to vector<4x16xf32>
    %483 = vector.extract_strided_slice %481 {offsets = [0, 16], sizes = [4, 16], strides = [1, 1]} : vector<4x64xf32> to vector<4x16xf32>
    %484 = vector.extract_strided_slice %481 {offsets = [0, 48], sizes = [4, 16], strides = [1, 1]} : vector<4x64xf32> to vector<4x16xf32>
    %485 = vector.extract_strided_slice %476 {offsets = [0, 32], sizes = [4, 16], strides = [1, 1]} : vector<4x64xf32> to vector<4x16xf32>
    %486 = math.tanh %485 : vector<4x16xf32>
    %487 = arith.mulf %483, %470 : vector<4x16xf32>
    %488 = arith.mulf %482, %486 : vector<4x16xf32>
    %489 = arith.addf %487, %488 : vector<4x16xf32>
    %490 = math.tanh %489 : vector<4x16xf32>
    %491 = arith.mulf %484, %490 : vector<4x16xf32>
    %c8_196 = arith.constant 8 : index
    %c0_197 = arith.constant 0 : index
    %c0_198 = arith.constant 0 : index
    %492 = vector.load %arg15[%c8_196, %c0_197, %c0_198] : memref<12x4x64xf32, #tpu.memory_space<vmem>>, vector<1x4x64xf32>
    %493 = vector.shape_cast %492 : vector<1x4x64xf32> to vector<4x64xf32>
    %cst_199 = arith.constant dense<0.000000e+00> : vector<4x64xf32>
    %494 = tpu.matmul %491, %337, %cst_199 {dimension_numbers = #tpu.dot_dimension_numbers<[1], [0], [0], [1], [0, 0, 1, 1], [], []>} : vector<4x16xf32>, vector<16x64xf32>, vector<4x64xf32> -> vector<4x64xf32>
    %495 = arith.addf %493, %494 : vector<4x64xf32>
    %496 = arith.negf %495 : vector<4x64xf32>
    %497 = math.exp %496 : vector<4x64xf32>
    %cst_200 = arith.constant 1.000000e+00 : f32
    %498 = vector.broadcast %cst_200 : f32 to vector<4x64xf32>
    %499 = arith.addf %498, %497 : vector<4x64xf32>
    %500 = arith.divf %498, %499 : vector<4x64xf32>
    %501 = vector.extract_strided_slice %500 {offsets = [0, 0], sizes = [4, 16], strides = [1, 1]} : vector<4x64xf32> to vector<4x16xf32>
    %502 = vector.extract_strided_slice %500 {offsets = [0, 16], sizes = [4, 16], strides = [1, 1]} : vector<4x64xf32> to vector<4x16xf32>
    %503 = vector.extract_strided_slice %500 {offsets = [0, 48], sizes = [4, 16], strides = [1, 1]} : vector<4x64xf32> to vector<4x16xf32>
    %504 = vector.extract_strided_slice %495 {offsets = [0, 32], sizes = [4, 16], strides = [1, 1]} : vector<4x64xf32> to vector<4x16xf32>
    %505 = math.tanh %504 : vector<4x16xf32>
    %506 = arith.mulf %502, %489 : vector<4x16xf32>
    %507 = arith.mulf %501, %505 : vector<4x16xf32>
    %508 = arith.addf %506, %507 : vector<4x16xf32>
    %509 = math.tanh %508 : vector<4x16xf32>
    %510 = arith.mulf %503, %509 : vector<4x16xf32>
    %c9_201 = arith.constant 9 : index
    %c0_202 = arith.constant 0 : index
    %c0_203 = arith.constant 0 : index
    %511 = vector.load %arg15[%c9_201, %c0_202, %c0_203] : memref<12x4x64xf32, #tpu.memory_space<vmem>>, vector<1x4x64xf32>
    %512 = vector.shape_cast %511 : vector<1x4x64xf32> to vector<4x64xf32>
    %cst_204 = arith.constant dense<0.000000e+00> : vector<4x64xf32>
    %513 = tpu.matmul %510, %337, %cst_204 {dimension_numbers = #tpu.dot_dimension_numbers<[1], [0], [0], [1], [0, 0, 1, 1], [], []>} : vector<4x16xf32>, vector<16x64xf32>, vector<4x64xf32> -> vector<4x64xf32>
    %514 = arith.addf %512, %513 : vector<4x64xf32>
    %515 = arith.negf %514 : vector<4x64xf32>
    %516 = math.exp %515 : vector<4x64xf32>
    %cst_205 = arith.constant 1.000000e+00 : f32
    %517 = vector.broadcast %cst_205 : f32 to vector<4x64xf32>
    %518 = arith.addf %517, %516 : vector<4x64xf32>
    %519 = arith.divf %517, %518 : vector<4x64xf32>
    %520 = vector.extract_strided_slice %519 {offsets = [0, 0], sizes = [4, 16], strides = [1, 1]} : vector<4x64xf32> to vector<4x16xf32>
    %521 = vector.extract_strided_slice %519 {offsets = [0, 16], sizes = [4, 16], strides = [1, 1]} : vector<4x64xf32> to vector<4x16xf32>
    %522 = vector.extract_strided_slice %519 {offsets = [0, 48], sizes = [4, 16], strides = [1, 1]} : vector<4x64xf32> to vector<4x16xf32>
    %523 = vector.extract_strided_slice %514 {offsets = [0, 32], sizes = [4, 16], strides = [1, 1]} : vector<4x64xf32> to vector<4x16xf32>
    %524 = math.tanh %523 : vector<4x16xf32>
    %525 = arith.mulf %521, %508 : vector<4x16xf32>
    %526 = arith.mulf %520, %524 : vector<4x16xf32>
    %527 = arith.addf %525, %526 : vector<4x16xf32>
    %528 = math.tanh %527 : vector<4x16xf32>
    %529 = arith.mulf %522, %528 : vector<4x16xf32>
    %c10_206 = arith.constant 10 : index
    %c0_207 = arith.constant 0 : index
    %c0_208 = arith.constant 0 : index
    %530 = vector.load %arg15[%c10_206, %c0_207, %c0_208] : memref<12x4x64xf32, #tpu.memory_space<vmem>>, vector<1x4x64xf32>
    %531 = vector.shape_cast %530 : vector<1x4x64xf32> to vector<4x64xf32>
    %cst_209 = arith.constant dense<0.000000e+00> : vector<4x64xf32>
    %532 = tpu.matmul %529, %337, %cst_209 {dimension_numbers = #tpu.dot_dimension_numbers<[1], [0], [0], [1], [0, 0, 1, 1], [], []>} : vector<4x16xf32>, vector<16x64xf32>, vector<4x64xf32> -> vector<4x64xf32>
    %533 = arith.addf %531, %532 : vector<4x64xf32>
    %534 = arith.negf %533 : vector<4x64xf32>
    %535 = math.exp %534 : vector<4x64xf32>
    %cst_210 = arith.constant 1.000000e+00 : f32
    %536 = vector.broadcast %cst_210 : f32 to vector<4x64xf32>
    %537 = arith.addf %536, %535 : vector<4x64xf32>
    %538 = arith.divf %536, %537 : vector<4x64xf32>
    %539 = vector.extract_strided_slice %538 {offsets = [0, 0], sizes = [4, 16], strides = [1, 1]} : vector<4x64xf32> to vector<4x16xf32>
    %540 = vector.extract_strided_slice %538 {offsets = [0, 16], sizes = [4, 16], strides = [1, 1]} : vector<4x64xf32> to vector<4x16xf32>
    %541 = vector.extract_strided_slice %538 {offsets = [0, 48], sizes = [4, 16], strides = [1, 1]} : vector<4x64xf32> to vector<4x16xf32>
    %542 = vector.extract_strided_slice %533 {offsets = [0, 32], sizes = [4, 16], strides = [1, 1]} : vector<4x64xf32> to vector<4x16xf32>
    %543 = math.tanh %542 : vector<4x16xf32>
    %544 = arith.mulf %540, %527 : vector<4x16xf32>
    %545 = arith.mulf %539, %543 : vector<4x16xf32>
    %546 = arith.addf %544, %545 : vector<4x16xf32>
    %547 = math.tanh %546 : vector<4x16xf32>
    %548 = arith.mulf %541, %547 : vector<4x16xf32>
    %c11_211 = arith.constant 11 : index
    %c0_212 = arith.constant 0 : index
    %c0_213 = arith.constant 0 : index
    %549 = vector.load %arg15[%c11_211, %c0_212, %c0_213] : memref<12x4x64xf32, #tpu.memory_space<vmem>>, vector<1x4x64xf32>
    %550 = vector.shape_cast %549 : vector<1x4x64xf32> to vector<4x64xf32>
    %cst_214 = arith.constant dense<0.000000e+00> : vector<4x64xf32>
    %551 = tpu.matmul %548, %337, %cst_214 {dimension_numbers = #tpu.dot_dimension_numbers<[1], [0], [0], [1], [0, 0, 1, 1], [], []>} : vector<4x16xf32>, vector<16x64xf32>, vector<4x64xf32> -> vector<4x64xf32>
    %552 = arith.addf %550, %551 : vector<4x64xf32>
    %553 = arith.negf %552 : vector<4x64xf32>
    %554 = math.exp %553 : vector<4x64xf32>
    %cst_215 = arith.constant 1.000000e+00 : f32
    %555 = vector.broadcast %cst_215 : f32 to vector<4x64xf32>
    %556 = arith.addf %555, %554 : vector<4x64xf32>
    %557 = arith.divf %555, %556 : vector<4x64xf32>
    %558 = vector.extract_strided_slice %557 {offsets = [0, 0], sizes = [4, 16], strides = [1, 1]} : vector<4x64xf32> to vector<4x16xf32>
    %559 = vector.extract_strided_slice %557 {offsets = [0, 16], sizes = [4, 16], strides = [1, 1]} : vector<4x64xf32> to vector<4x16xf32>
    %560 = vector.extract_strided_slice %557 {offsets = [0, 48], sizes = [4, 16], strides = [1, 1]} : vector<4x64xf32> to vector<4x16xf32>
    %561 = vector.extract_strided_slice %552 {offsets = [0, 32], sizes = [4, 16], strides = [1, 1]} : vector<4x64xf32> to vector<4x16xf32>
    %562 = math.tanh %561 : vector<4x16xf32>
    %563 = arith.mulf %559, %546 : vector<4x16xf32>
    %564 = arith.mulf %558, %562 : vector<4x16xf32>
    %565 = arith.addf %563, %564 : vector<4x16xf32>
    %566 = math.tanh %565 : vector<4x16xf32>
    %567 = arith.mulf %560, %566 : vector<4x16xf32>
    %568 = tpu.concatenate %286, %567 in 1 : vector<4x16xf32>, vector<4x16xf32> -> vector<4x32xf32>
    %cst_216 = arith.constant 0.00999999977 : f32
    %569 = vector.broadcast %cst_216 : f32 to vector<4x32xf32>
    %570 = arith.mulf %569, %568 : vector<4x32xf32>
    %571 = arith.maximumf %568, %570 : vector<4x32xf32>
    %c0_217 = arith.constant 0 : index
    %c0_218 = arith.constant 0 : index
    %572 = vector.load %arg9[%c0_217, %c0_218] : memref<32x8xf32, #tpu.memory_space<vmem>>, vector<32x8xf32>
    %cst_219 = arith.constant dense<0.000000e+00> : vector<4x8xf32>
    %573 = tpu.matmul %571, %572, %cst_219 {dimension_numbers = #tpu.dot_dimension_numbers<[1], [0], [0], [1], [0, 0, 1, 1], [], []>} : vector<4x32xf32>, vector<32x8xf32>, vector<4x8xf32> -> vector<4x8xf32>
    %c0_220 = arith.constant 0 : index
    %c0_221 = arith.constant 0 : index
    %574 = vector.load %arg10[%c0_220, %c0_221] : memref<1x8xf32, #tpu.memory_space<vmem>>, vector<1x8xf32>
    %575 = vector.broadcast %574 : vector<1x8xf32> to vector<4x8xf32>
    %576 = arith.addf %573, %575 : vector<4x8xf32>
    %c0_222 = arith.constant 0 : index
    %c0_223 = arith.constant 0 : index
    %577 = vector.load %arg11[%c0_222, %c0_223] : memref<4x8xf32, #tpu.memory_space<vmem>>, vector<1x8xf32>
    %c1_224 = arith.constant 1 : index
    %c0_225 = arith.constant 0 : index
    %578 = vector.load %arg11[%c1_224, %c0_225] : memref<4x8xf32, #tpu.memory_space<vmem>>, vector<1x8xf32>
    %c2_226 = arith.constant 2 : index
    %c0_227 = arith.constant 0 : index
    %579 = vector.load %arg11[%c2_226, %c0_227] : memref<4x8xf32, #tpu.memory_space<vmem>>, vector<1x8xf32>
    %c3_228 = arith.constant 3 : index
    %c0_229 = arith.constant 0 : index
    %580 = vector.load %arg11[%c3_228, %c0_229] : memref<4x8xf32, #tpu.memory_space<vmem>>, vector<1x8xf32>
    %581 = vector.broadcast %579 : vector<1x8xf32> to vector<4x8xf32>
    %582 = arith.subf %576, %581 : vector<4x8xf32>
    %cst_230 = arith.constant 9.99999974E-6 : f32
    %583 = vector.broadcast %cst_230 : f32 to vector<1x8xf32>
    %584 = arith.addf %580, %583 : vector<1x8xf32>
    %585 = math.rsqrt %584 : vector<1x8xf32>
    %586 = vector.broadcast %585 : vector<1x8xf32> to vector<4x8xf32>
    %587 = arith.mulf %582, %586 : vector<4x8xf32>
    %588 = vector.broadcast %577 : vector<1x8xf32> to vector<4x8xf32>
    %589 = arith.mulf %587, %588 : vector<4x8xf32>
    %590 = vector.broadcast %578 : vector<1x8xf32> to vector<4x8xf32>
    %591 = arith.addf %589, %590 : vector<4x8xf32>
    %cst_231 = arith.constant 0.00999999977 : f32
    %592 = vector.broadcast %cst_231 : f32 to vector<4x8xf32>
    %593 = arith.mulf %592, %591 : vector<4x8xf32>
    %594 = arith.maximumf %591, %593 : vector<4x8xf32>
    %c0_232 = arith.constant 0 : index
    %c0_233 = arith.constant 0 : index
    %595 = vector.load %arg12[%c0_232, %c0_233] : memref<8x5xf32, #tpu.memory_space<vmem>>, vector<8x5xf32>
    %cst_234 = arith.constant dense<0.000000e+00> : vector<4x5xf32>
    %596 = tpu.matmul %594, %595, %cst_234 {dimension_numbers = #tpu.dot_dimension_numbers<[1], [0], [0], [1], [0, 0, 1, 1], [], []>} : vector<4x8xf32>, vector<8x5xf32>, vector<4x5xf32> -> vector<4x5xf32>
    %c0_235 = arith.constant 0 : index
    %c0_236 = arith.constant 0 : index
    %597 = vector.load %arg13[%c0_235, %c0_236] : memref<1x5xf32, #tpu.memory_space<vmem>>, vector<1x5xf32>
    %598 = vector.broadcast %597 : vector<1x5xf32> to vector<4x5xf32>
    %599 = arith.addf %596, %598 : vector<4x5xf32>
    %cst_237 = arith.constant dense<0xFF800000> : vector<4xf32>
    %600 = vector.multi_reduction <maximumf>, %599, %cst_237 [1] : vector<4x5xf32> to vector<4xf32>
    %601 = vector.shape_cast %600 : vector<4xf32> to vector<4x1xf32>
    %602 = vector.broadcast %601 : vector<4x1xf32> to vector<4x5xf32>
    %603 = arith.subf %599, %602 : vector<4x5xf32>
    %604 = math.exp %603 : vector<4x5xf32>
    %cst_238 = arith.constant dense<0.000000e+00> : vector<4xf32>
    %605 = vector.multi_reduction <add>, %604, %cst_238 [1] : vector<4x5xf32> to vector<4xf32>
    %606 = vector.shape_cast %605 : vector<4xf32> to vector<4x1xf32>
    %607 = vector.broadcast %606 : vector<4x1xf32> to vector<4x5xf32>
    %608 = arith.divf %604, %607 : vector<4x5xf32>
    %c0_239 = arith.constant 0 : index
    %c0_240 = arith.constant 0 : index
    %609 = vector.load %arg14[%c0_239, %c0_240] : memref<4x5xf32, #tpu.memory_space<vmem>>, vector<4x5xf32>
    tpu.vector_store %arg14[%c0_239, %c0_240], %608 {strides = array<i32>} : memref<4x5xf32, #tpu.memory_space<vmem>>, vector<4x5xf32>,
    return
  }
}

</mosaic_0001>

<llo_original>
// kernel: _lambda_.1
$region0: #{_lambda_.1}
  #allocation0 [shape = 'u32[]', space=smem, size = 0x4, offset = 0x4, fixed_abs, tag = 'smem constant byte address 0x4 - core index']
  #allocation1 [shape = 'u32[144,128]{1,0:T(1,128)}', space=vmem, size = 0x12000, scoped, tag = 'internal scratch']
  #allocation2 [shape = 'f32[12,4,64]{2,1,0:T(4,128)}', space=vmem, size = 0x6000, scoped, tag = 'scratch operand']
  #allocation3 [shape = 'f32[12,4,16]{2,1,0:T(4,128)}', space=vmem, size = 0x6000, scoped, tag = 'scratch operand']
  %s0 = inlined_call_operand.vmem [shape: s32[48,1], index: 0, kind: input, shape index: {}]
  %s1 = inlined_call_operand.vmem [shape: s32[48,1], index: 1, kind: input, shape index: {}]
  %s2 = inlined_call_operand.vmem [shape: f32[50,8], index: 2, kind: input, shape index: {}]
  %s3 = inlined_call_operand.vmem [shape: f32[16,64], index: 3, kind: input, shape index: {}]
  %s4 = inlined_call_operand.vmem [shape: f32[16,64], index: 4, kind: input, shape index: {}]
  %s5 = inlined_call_operand.vmem [shape: f32[1,64], index: 5, kind: input, shape index: {}]
  %s6 = inlined_call_operand.vmem [shape: f32[32,64], index: 6, kind: input, shape index: {}]
  %s7 = inlined_call_operand.vmem [shape: f32[16,64], index: 7, kind: input, shape index: {}]
  %s8 = inlined_call_operand.vmem [shape: f32[1,64], index: 8, kind: input, shape index: {}]
  %s9 = inlined_call_operand.vmem [shape: f32[32,8], index: 9, kind: input, shape index: {}]
  %s10 = inlined_call_operand.vmem [shape: f32[1,8], index: 10, kind: input, shape index: {}]
  %s11 = inlined_call_operand.vmem [shape: f32[4,8], index: 11, kind: input, shape index: {}]
  %s12 = inlined_call_operand.vmem [shape: f32[8,5], index: 12, kind: input, shape index: {}]
  %s13 = inlined_call_operand.vmem [shape: f32[1,5], index: 13, kind: input, shape index: {}]
  %s14 = inlined_call_operand.hbm [shape: f32[4,5], index: 14, kind: output, shape index: {}]
  %s15 = sld [smem:[#allocation0]]
  $region66: #{_lambda_.1} parent=0
    _
  %s17 = ssub.s32 1, %s15
  %s18 = scalar_select 0, %s17, %s15
  $region1: #{_lambda_.1} parent=0
    #allocation4 [shape = 'u8[2048]{0}', space=vmem, size = 0x800, scoped, tag = 'output window, operand 0, single buffered']
    #allocation5 [shape = 's32[1]{0}', space=sflag, size = 0x4, scoped, tag = 'scoped memory for _lambda_.1']
    %19 = vsyncpa [#allocation5], 0
    // Predicated region
    $region2: #{_lambda_.1} parent=1 // pred_check
      _
    $region3: #{_lambda_.1} parent=1 // pred_check_branch
      %21 = sbr.rel (0) target = $region5
    $region4: #{_lambda_.1} parent=1 // pred_region
      _
    $region5: #{_lambda_.1} parent=1 // pred_fallthru
      _
    // Predicated region
    $region6: #{_lambda_.1} parent=1 // pred_check
      _
    $region7: #{_lambda_.1} parent=1 // pred_check_branch
      %23 = sbr.rel (0) target = $region9
    $region8: #{_lambda_.1} parent=1 // pred_region
      _
    $region9: #{_lambda_.1} parent=1 // pred_fallthru
      _
    // Predicated region
    $region10: #{_lambda_.1} parent=1 // pred_check
      _
    $region11: #{_lambda_.1} parent=1 // pred_check_branch
      %25 = sbr.rel (0) target = $region13
    $region12: #{_lambda_.1} parent=1 // pred_region
      _
    $region13: #{_lambda_.1} parent=1 // pred_fallthru
      _
    // Predicated region
    $region14: #{_lambda_.1} parent=1 // pred_check
      _
    $region15: #{_lambda_.1} parent=1 // pred_check_branch
      %27 = sbr.rel (0) target = $region17
    $region16: #{_lambda_.1} parent=1 // pred_region
      _
    $region17: #{_lambda_.1} parent=1 // pred_fallthru
      _
    // Predicated region
    $region18: #{_lambda_.1} parent=1 // pred_check
      _
    $region19: #{_lambda_.1} parent=1 // pred_check_branch
      %29 = sbr.rel (0) target = $region21
    $region20: #{_lambda_.1} parent=1 // pred_region
      _
    $region21: #{_lambda_.1} parent=1 // pred_fallthru
      _
    // Predicated region
    $region22: #{_lambda_.1} parent=1 // pred_check
      _
    $region23: #{_lambda_.1} parent=1 // pred_check_branch
      %31 = sbr.rel (0) target = $region25
    $region24: #{_lambda_.1} parent=1 // pred_region
      _
    $region25: #{_lambda_.1} parent=1 // pred_fallthru
      _
    // Predicated region
    $region26: #{_lambda_.1} parent=1 // pred_check
      _
    $region27: #{_lambda_.1} parent=1 // pred_check_branch
      %33 = sbr.rel (0) target = $region29
    $region28: #{_lambda_.1} parent=1 // pred_region
      _
    $region29: #{_lambda_.1} parent=1 // pred_fallthru
      _
    // Predicated region
    $region30: #{_lambda_.1} parent=1 // pred_check
      _
    $region31: #{_lambda_.1} parent=1 // pred_check_branch
      %35 = sbr.rel (0) target = $region33
    $region32: #{_lambda_.1} parent=1 // pred_region
      _
    $region33: #{_lambda_.1} parent=1 // pred_fallthru
      _
    // Predicated region
    $region34: #{_lambda_.1} parent=1 // pred_check
      _
    $region35: #{_lambda_.1} parent=1 // pred_check_branch
      %37 = sbr.rel (0) target = $region37
    $region36: #{_lambda_.1} parent=1 // pred_region
      _
    $region37: #{_lambda_.1} parent=1 // pred_fallthru
      _
    // Predicated region
    $region38: #{_lambda_.1} parent=1 // pred_check
      _
    $region39: #{_lambda_.1} parent=1 // pred_check_branch
      %39 = sbr.rel (0) target = $region41
    $region40: #{_lambda_.1} parent=1 // pred_region
      _
    $region41: #{_lambda_.1} parent=1 // pred_fallthru
      _
    // Predicated region
    $region42: #{_lambda_.1} parent=1 // pred_check
      _
    $region43: #{_lambda_.1} parent=1 // pred_check_branch
      %41 = sbr.rel (0) target = $region45
    $region44: #{_lambda_.1} parent=1 // pred_region
      _
    $region45: #{_lambda_.1} parent=1 // pred_fallthru
      _
    // Predicated region
    $region46: #{_lambda_.1} parent=1 // pred_check
      _
    $region47: #{_lambda_.1} parent=1 // pred_check_branch
      %43 = sbr.rel (0) target = $region49
    $region48: #{_lambda_.1} parent=1 // pred_region
      _
    $region49: #{_lambda_.1} parent=1 // pred_fallthru
      _
    // Predicated region
    $region50: #{_lambda_.1} parent=1 // pred_check
      _
    $region51: #{_lambda_.1} parent=1 // pred_check_branch
      %45 = sbr.rel (0) target = $region53
    $region52: #{_lambda_.1} parent=1 // pred_region
      _
    $region53: #{_lambda_.1} parent=1 // pred_fallthru
      _
    // Predicated region
    $region54: #{_lambda_.1} parent=1 // pred_check
      _
    $region55: #{_lambda_.1} parent=1 // pred_check_branch
      %47 = sbr.rel (0) target = $region57
    $region56: #{_lambda_.1} parent=1 // pred_region
      _
    $region57: #{_lambda_.1} parent=1 // pred_fallthru
      _
    %v48 = vlaneseq
    %v49 = vand.u32 %v48, 127
    %v50 = vld [vmem:[%s0] sm:$0xff]
    %v51 = vld [vmem:[%s0 + $0x8] sm:$0xff]
    %v52 = vld [vmem:[%s0 + $0x10] sm:$0xff]
    %v53 = vld [vmem:[%s0 + $0x18] sm:$0xff]
    %v54 = vld [vmem:[%s0 + $0x20] sm:$0xff]
    %v55 = vld [vmem:[%s0 + $0x28] sm:$0xff]
    %56 = vset.pattern.permute.xlu0 0
    %57 = vperm.xlu0 %56, %v50
    %v58 = vpop.permute.xlu0 %57
    %59 = vset.pattern.permute.xlu0 0
    %60 = vperm.xlu0 %59, %v51
    %v61 = vpop.permute.xlu0 %60
    %62 = vset.pattern.permute.xlu0 0
    %63 = vperm.xlu0 %62, %v52
    %v64 = vpop.permute.xlu0 %63
    %65 = vset.pattern.permute.xlu0 0
    %66 = vperm.xlu0 %65, %v53
    %v67 = vpop.permute.xlu0 %66
    %68 = vset.pattern.permute.xlu0 0
    %69 = vperm.xlu0 %68, %v54
    %v70 = vpop.permute.xlu0 %69
    %71 = vset.pattern.permute.xlu0 0
    %72 = vperm.xlu0 %71, %v55
    %v73 = vpop.permute.xlu0 %72
    %vm74 = vcmp.eq.s32.totalorder %v49, %v58
    %vm75 = vcmp.eq.s32.totalorder %v49, %v61
    %vm76 = vcmp.eq.s32.totalorder %v49, %v64
    %vm77 = vcmp.eq.s32.totalorder %v49, %v67
    %vm78 = vcmp.eq.s32.totalorder %v49, %v70
    %vm79 = vcmp.eq.s32.totalorder %v49, %v73
    %v80 = vsel %vm74, 1, 0
    %v81 = vsel %vm75, 1, 0
    %v82 = vsel %vm76, 1, 0
    %v83 = vsel %vm77, 1, 0
    %v84 = vsel %vm78, 1, 0
    %v85 = vsel %vm79, 1, 0
    %v86 = vcvt.s32.f32 %v80
    %v87 = vcvt.s32.f32 %v81
    %v88 = vcvt.s32.f32 %v82
    %v89 = vcvt.s32.f32 %v83
    %v90 = vcvt.s32.f32 %v84
    %v91 = vcvt.s32.f32 %v85
    %v92 = vld [vmem:[%s1] sm:$0xff]
    %v93 = vld [vmem:[%s1 + $0x8] sm:$0xff]
    %v94 = vld [vmem:[%s1 + $0x10] sm:$0xff]
    %v95 = vld [vmem:[%s1 + $0x18] sm:$0xff]
    %v96 = vld [vmem:[%s1 + $0x20] sm:$0xff]
    %v97 = vld [vmem:[%s1 + $0x28] sm:$0xff]
    %98 = vset.pattern.permute.xlu0 0
    %99 = vperm.xlu0 %98, %v92
    %v100 = vpop.permute.xlu0 %99
    %101 = vset.pattern.permute.xlu0 0
    %102 = vperm.xlu0 %101, %v93
    %v103 = vpop.permute.xlu0 %102
    %104 = vset.pattern.permute.xlu0 0
    %105 = vperm.xlu0 %104, %v94
    %v106 = vpop.permute.xlu0 %105
    %107 = vset.pattern.permute.xlu0 0
    %108 = vperm.xlu0 %107, %v95
    %v109 = vpop.permute.xlu0 %108
    %110 = vset.pattern.permute.xlu0 0
    %111 = vperm.xlu0 %110, %v96
    %v112 = vpop.permute.xlu0 %111
    %113 = vset.pattern.permute.xlu0 0
    %114 = vperm.xlu0 %113, %v97
    %v115 = vpop.permute.xlu0 %114
    %vm116 = vcmp.eq.s32.totalorder %v49, %v100
    %vm117 = vcmp.eq.s32.totalorder %v49, %v103
    %vm118 = vcmp.eq.s32.totalorder %v49, %v106
    %vm119 = vcmp.eq.s32.totalorder %v49, %v109
    %vm120 = vcmp.eq.s32.totalorder %v49, %v112
    %vm121 = vcmp.eq.s32.totalorder %v49, %v115
    %v122 = vsel %vm116, 1, 0
    %v123 = vsel %vm117, 1, 0
    %v124 = vsel %vm118, 1, 0
    %v125 = vsel %vm119, 1, 0
    %v126 = vsel %vm120, 1, 0
    %v127 = vsel %vm121, 1, 0
    %v128 = vcvt.s32.f32 %v122
    %v129 = vcvt.s32.f32 %v123
    %v130 = vcvt.s32.f32 %v124
    %v131 = vcvt.s32.f32 %v125
    %v132 = vcvt.s32.f32 %v126
    %v133 = vcvt.s32.f32 %v127
    %v134 = vld [vmem:[%s2] sm:$0xff]
    %v135 = vld [vmem:[%s2 + $0x8] sm:$0xff]
    %v136 = vld [vmem:[%s2 + $0x10] sm:$0xff]
    %v137 = vld [vmem:[%s2 + $0x18] sm:$0xff]
    %v138 = vld [vmem:[%s2 + $0x20] sm:$0xff]
    %v139 = vld [vmem:[%s2 + $0x28] sm:$0xff]
    %v140 = vld [vmem:[%s2 + $0x30] sm:$0x3]
    %vm141 = vcmask 408576
    %v143 = vsel %vm141, %v86, 0
    %v146 = vsel %vm141, %v87, 0
    %v149 = vsel %vm141, %v88, 0
    %v152 = vsel %vm141, %v89, 0
    %v155 = vsel %vm141, %v90, 0
    %v158 = vsel %vm141, %v91, 0
    %vm160 = vcmask 1041408
    %v162 = vsel %vm160, %v140, 0
    %164 = vmatprep.subr.mxu0 0.0
    %165 = vmatpush1.msra.mxu0 %v134
    %166 = vmatprep.subr.mxu0 0.0
    %167 = vmatpush1.msra.mxu0 %v135
    %168 = vmatprep.subr.mxu0 0.0
    %169 = vmatpush1.msra.mxu0 %v136
    %170 = vmatprep.subr.mxu0 0.0
    %171 = vmatpush1.msra.mxu0 %v137
    %172 = vmatprep.subr.mxu0 0.0
    %173 = vmatpush1.msra.mxu0 %v138
    %174 = vmatprep.subr.mxu0 0.0
    %175 = vmatpush1.msra.mxu0 %v139
    %176 = vmatprep.subr.mxu0 0.0
    %177 = vmatpush1.msra.mxu0 %v162
    %178 = vmatprep.subr.mxu0 0.0
    %179 = vmatpush1.msra.mxu0 0.0
    %180 = vmatprep.subr.mxu0 0.0
    %181 = vmatpush1.msra.mxu0 0.0
    %182 = vmatprep.subr.mxu0 0.0
    %183 = vmatpush1.msra.mxu0 0.0
    %184 = vmatprep.subr.mxu0 0.0
    %185 = vmatpush1.msra.mxu0 0.0
    %186 = vmatprep.subr.mxu0 0.0
    %187 = vmatpush1.msra.mxu0 0.0
    %188 = vmatprep.subr.mxu0 0.0
    %189 = vmatpush1.msra.mxu0 0.0
    %190 = vmatprep.subr.mxu0 0.0
    %191 = vmatpush1.msra.mxu0 0.0
    %192 = vmatprep.subr.mxu0 0.0
    %193 = vmatpush1.msra.mxu0 0.0
    %194 = vmatprep.subr.mxu0 0.0
    %195 = vmatpush1.msra.mxu0 0.0
    %196 = vmatprep.subr.mxu0 0.0
    %197 = vmatpush1.msra.mxu0 0.0
    %198 = vmatprep.subr.mxu0 0.0
    %199 = vmatpush1.msra.mxu0 0.0
    %200 = vmatprep.subr.mxu0 0.0
    %201 = vmatpush1.msra.mxu0 0.0
    %202 = vmatprep.subr.mxu0 0.0
    %203 = vmatpush1.msra.mxu0 0.0
    %204 = vmatprep.subr.mxu0 0.0
    %205 = vmatpush1.msra.mxu0 0.0
    %206 = vmatprep.subr.mxu0 0.0
    %207 = vmatpush1.msra.mxu0 0.0
    %208 = vmatprep.subr.mxu0 0.0
    %209 = vmatpush1.msra.mxu0 0.0
    %210 = vmatprep.subr.mxu0 0.0
    %211 = vmatpush1.msra.mxu0 0.0
    %212 = vmatprep.subr.mxu0 0.0
    %213 = vmatpush1.msra.mxu0 0.0
    %214 = vmatprep.subr.mxu0 0.0
    %215 = vmatpush1.msra.mxu0 0.0
    %216 = vmatprep.subr.mxu0 0.0
    %217 = vmatpush1.msra.mxu0 0.0
    %218 = vmatprep.subr.mxu0 0.0
    %219 = vmatpush1.msra.mxu0 0.0
    %220 = vmatprep.subr.mxu0 0.0
    %221 = vmatpush1.msra.mxu0 0.0
    %222 = vmatprep.subr.mxu0 0.0
    %223 = vmatpush1.msra.mxu0 0.0
    %224 = vmatprep.subr.mxu0 0.0
    %225 = vmatpush1.msra.mxu0 0.0
    %226 = vmatprep.subr.mxu0 0.0
    %227 = vmatpush1.msra.mxu0 0.0
    %228 = vmatprep.mubr.f32.mxu0 0.0
    %229 = vmatmul.mubr.f32.gmra.mrb[0].mxu0 %v143
    %v230 = vpop.f32.mrb[0].mxu0
    %v231 = vadd.f32 0.0, %v230
    %v232 = vpop.f32.mrb[0].mxu0
    %233 = vmatprep.mubr.f32.mxu0 0.0
    %234 = vmatmul.mubr.f32.gmra.mrb[0].mxu0 %v146
    %v235 = vpop.f32.mrb[0].mxu0
    %v236 = vadd.f32 0.0, %v235
    %v237 = vpop.f32.mrb[0].mxu0
    %238 = vmatprep.mubr.f32.mxu0 0.0
    %239 = vmatmul.mubr.f32.gmra.mrb[0].mxu0 %v149
    %v240 = vpop.f32.mrb[0].mxu0
    %v241 = vadd.f32 0.0, %v240
    %v242 = vpop.f32.mrb[0].mxu0
    %243 = vmatprep.mubr.f32.mxu0 0.0
    %244 = vmatmul.mubr.f32.gmra.mrb[0].mxu0 %v152
    %v245 = vpop.f32.mrb[0].mxu0
    %v246 = vadd.f32 0.0, %v245
    %v247 = vpop.f32.mrb[0].mxu0
    %248 = vmatprep.mubr.f32.mxu0 0.0
    %249 = vmatmul.mubr.f32.gmra.mrb[0].mxu0 %v155
    %v250 = vpop.f32.mrb[0].mxu0
    %v251 = vadd.f32 0.0, %v250
    %v252 = vpop.f32.mrb[0].mxu0
    %253 = vmatprep.mubr.f32.mxu0 0.0
    %254 = vmatmul.mubr.f32.gmra.mrb[0].mxu0 %v158
    %v255 = vpop.f32.mrb[0].mxu0
    %v256 = vadd.f32 0.0, %v255
    %v257 = vpop.f32.mrb[0].mxu0
    %258 = vdwg.mxu0
    %v260 = vsel %vm141, %v128, 0
    %v263 = vsel %vm141, %v129, 0
    %v266 = vsel %vm141, %v130, 0
    %v269 = vsel %vm141, %v131, 0
    %v272 = vsel %vm141, %v132, 0
    %v275 = vsel %vm141, %v133, 0
    %277 = vmatprep.subr.mxu0 0.0
    %278 = vmatpush1.msra.mxu0 %v134
    %279 = vmatprep.subr.mxu0 0.0
    %280 = vmatpush1.msra.mxu0 %v135
    %281 = vmatprep.subr.mxu0 0.0
    %282 = vmatpush1.msra.mxu0 %v136
    %283 = vmatprep.subr.mxu0 0.0
    %284 = vmatpush1.msra.mxu0 %v137
    %285 = vmatprep.subr.mxu0 0.0
    %286 = vmatpush1.msra.mxu0 %v138
    %287 = vmatprep.subr.mxu0 0.0
    %288 = vmatpush1.msra.mxu0 %v139
    %289 = vmatprep.subr.mxu0 0.0
    %290 = vmatpush1.msra.mxu0 %v162
    %291 = vmatprep.subr.mxu0 0.0
    %292 = vmatpush1.msra.mxu0 0.0
    %293 = vmatprep.subr.mxu0 0.0
    %294 = vmatpush1.msra.mxu0 0.0
    %295 = vmatprep.subr.mxu0 0.0
    %296 = vmatpush1.msra.mxu0 0.0
    %297 = vmatprep.subr.mxu0 0.0
    %298 = vmatpush1.msra.mxu0 0.0
    %299 = vmatprep.subr.mxu0 0.0
    %300 = vmatpush1.msra.mxu0 0.0
    %301 = vmatprep.subr.mxu0 0.0
    %302 = vmatpush1.msra.mxu0 0.0
    %303 = vmatprep.subr.mxu0 0.0
    %304 = vmatpush1.msra.mxu0 0.0
    %305 = vmatprep.subr.mxu0 0.0
    %306 = vmatpush1.msra.mxu0 0.0
    %307 = vmatprep.subr.mxu0 0.0
    %308 = vmatpush1.msra.mxu0 0.0
    %309 = vmatprep.subr.mxu0 0.0
    %310 = vmatpush1.msra.mxu0 0.0
    %311 = vmatprep.subr.mxu0 0.0
    %312 = vmatpush1.msra.mxu0 0.0
    %313 = vmatprep.subr.mxu0 0.0
    %314 = vmatpush1.msra.mxu0 0.0
    %315 = vmatprep.subr.mxu0 0.0
    %316 = vmatpush1.msra.mxu0 0.0
    %317 = vmatprep.subr.mxu0 0.0
    %318 = vmatpush1.msra.mxu0 0.0
    %319 = vmatprep.subr.mxu0 0.0
    %320 = vmatpush1.msra.mxu0 0.0
    %321 = vmatprep.subr.mxu0 0.0
    %322 = vmatpush1.msra.mxu0 0.0
    %323 = vmatprep.subr.mxu0 0.0
    %324 = vmatpush1.msra.mxu0 0.0
    %325 = vmatprep.subr.mxu0 0.0
    %326 = vmatpush1.msra.mxu0 0.0
    %327 = vmatprep.subr.mxu0 0.0
    %328 = vmatpush1.msra.mxu0 0.0
    %329 = vmatprep.subr.mxu0 0.0
    %330 = vmatpush1.msra.mxu0 0.0
    %331 = vmatprep.subr.mxu0 0.0
    %332 = vmatpush1.msra.mxu0 0.0
    %333 = vmatprep.subr.mxu0 0.0
    %334 = vmatpush1.msra.mxu0 0.0
    %335 = vmatprep.subr.mxu0 0.0
    %336 = vmatpush1.msra.mxu0 0.0
    %337 = vmatprep.subr.mxu0 0.0
    %338 = vmatpush1.msra.mxu0 0.0
    %339 = vmatprep.subr.mxu0 0.0
    %340 = vmatpush1.msra.mxu0 0.0
    %341 = vmatprep.mubr.f32.mxu0 0.0
    %342 = vmatmul.mubr.f32.gmra.mrb[0].mxu0 %v260
    %v343 = vpop.f32.mrb[0].mxu0
    %v344 = vadd.f32 0.0, %v343
    %v345 = vpop.f32.mrb[0].mxu0
    %346 = vmatprep.mubr.f32.mxu0 0.0
    %347 = vmatmul.mubr.f32.gmra.mrb[0].mxu0 %v263
    %v348 = vpop.f32.mrb[0].mxu0
    %v349 = vadd.f32 0.0, %v348
    %v350 = vpop.f32.mrb[0].mxu0
    %351 = vmatprep.mubr.f32.mxu0 0.0
    %352 = vmatmul.mubr.f32.gmra.mrb[0].mxu0 %v266
    %v353 = vpop.f32.mrb[0].mxu0
    %v354 = vadd.f32 0.0, %v353
    %v355 = vpop.f32.mrb[0].mxu0
    %356 = vmatprep.mubr.f32.mxu0 0.0
    %357 = vmatmul.mubr.f32.gmra.mrb[0].mxu0 %v269
    %v358 = vpop.f32.mrb[0].mxu0
    %v359 = vadd.f32 0.0, %v358
    %v360 = vpop.f32.mrb[0].mxu0
    %361 = vmatprep.mubr.f32.mxu0 0.0
    %362 = vmatmul.mubr.f32.gmra.mrb[0].mxu0 %v272
    %v363 = vpop.f32.mrb[0].mxu0
    %v364 = vadd.f32 0.0, %v363
    %v365 = vpop.f32.mrb[0].mxu0
    %366 = vmatprep.mubr.f32.mxu0 0.0
    %367 = vmatmul.mubr.f32.gmra.mrb[0].mxu0 %v275
    %v368 = vpop.f32.mrb[0].mxu0
    %v369 = vadd.f32 0.0, %v368
    %v370 = vpop.f32.mrb[0].mxu0
    %371 = vdwg.mxu0
    %378 = vrot.lane.b32.xlu0 %v344, 8
    %v379 = vpop.permute.xlu0 %378
    %380 = vrot.lane.b32.xlu0 %v349, 8
    %v381 = vpop.permute.xlu0 %380
    %382 = vrot.lane.b32.xlu0 %v354, 8
    %v383 = vpop.permute.xlu0 %382
    %384 = vrot.lane.b32.xlu0 %v359, 8
    %v385 = vpop.permute.xlu0 %384
    %386 = vrot.lane.b32.xlu0 %v364, 8
    %v387 = vpop.permute.xlu0 %386
    %388 = vrot.lane.b32.xlu0 %v369, 8
    %v389 = vpop.permute.xlu0 %388
    %vm396 = vcmask 64512
    %v397 = vsel %vm396, %v231, %v379
    %v398 = vsel %vm396, %v236, %v381
    %v399 = vsel %vm396, %v241, %v383
    %v400 = vsel %vm396, %v246, %v385
    %v401 = vsel %vm396, %v251, %v387
    %v402 = vsel %vm396, %v256, %v389
    %v403 = vld [vmem:[%s3] sm:$0xff]
    %v404 = vld [vmem:[%s3 + $0x8] sm:$0xff]
    %v405 = vld [vmem:[%s5] sm:$0x1]
    %v407 = vlaneseq
    %v408 = vshrl.u32 %v407, 7
    %v409 = vsub.s32 0, %v408
    %v410 = vrot.slane %v405, %v409
    %vm412 = vcmask 130048
    %v414 = vsel %vm412, %v397, 0
    %v417 = vsel %vm412, %v398, 0
    %v420 = vsel %vm412, %v399, 0
    %v423 = vsel %vm412, %v400, 0
    %v426 = vsel %vm412, %v401, 0
    %v429 = vsel %vm412, %v402, 0
    %431 = vmatprep.subr.mxu0 0.0
    %432 = vmatpush1.msra.mxu0 %v403
    %433 = vmatprep.subr.mxu0 0.0
    %434 = vmatpush1.msra.mxu0 %v404
    %435 = vmatprep.subr.mxu0 0.0
    %436 = vmatpush1.msra.mxu0 0.0
    %437 = vmatprep.subr.mxu0 0.0
    %438 = vmatpush1.msra.mxu0 0.0
    %439 = vmatprep.subr.mxu0 0.0
    %440 = vmatpush1.msra.mxu0 0.0
    %441 = vmatprep.subr.mxu0 0.0
    %442 = vmatpush1.msra.mxu0 0.0
    %443 = vmatprep.subr.mxu0 0.0
    %444 = vmatpush1.msra.mxu0 0.0
    %445 = vmatprep.subr.mxu0 0.0
    %446 = vmatpush1.msra.mxu0 0.0
    %447 = vmatprep.subr.mxu0 0.0
    %448 = vmatpush1.msra.mxu0 0.0
    %449 = vmatprep.subr.mxu0 0.0
    %450 = vmatpush1.msra.mxu0 0.0
    %451 = vmatprep.subr.mxu0 0.0
    %452 = vmatpush1.msra.mxu0 0.0
    %453 = vmatprep.subr.mxu0 0.0
    %454 = vmatpush1.msra.mxu0 0.0
    %455 = vmatprep.subr.mxu0 0.0
    %456 = vmatpush1.msra.mxu0 0.0
    %457 = vmatprep.subr.mxu0 0.0
    %458 = vmatpush1.msra.mxu0 0.0
    %459 = vmatprep.subr.mxu0 0.0
    %460 = vmatpush1.msra.mxu0 0.0
    %461 = vmatprep.subr.mxu0 0.0
    %462 = vmatpush1.msra.mxu0 0.0
    %463 = vmatprep.subr.mxu0 0.0
    %464 = vmatpush1.msra.mxu0 0.0
    %465 = vmatprep.subr.mxu0 0.0
    %466 = vmatpush1.msra.mxu0 0.0
    %467 = vmatprep.subr.mxu0 0.0
    %468 = vmatpush1.msra.mxu0 0.0
    %469 = vmatprep.subr.mxu0 0.0
    %470 = vmatpush1.msra.mxu0 0.0
    %471 = vmatprep.subr.mxu0 0.0
    %472 = vmatpush1.msra.mxu0 0.0
    %473 = vmatprep.subr.mxu0 0.0
    %474 = vmatpush1.msra.mxu0 0.0
    %475 = vmatprep.subr.mxu0 0.0
    %476 = vmatpush1.msra.mxu0 0.0
    %477 = vmatprep.subr.mxu0 0.0
    %478 = vmatpush1.msra.mxu0 0.0
    %479 = vmatprep.subr.mxu0 0.0
    %480 = vmatpush1.msra.mxu0 0.0
    %481 = vmatprep.subr.mxu0 0.0
    %482 = vmatpush1.msra.mxu0 0.0
    %483 = vmatprep.subr.mxu0 0.0
    %484 = vmatpush1.msra.mxu0 0.0
    %485 = vmatprep.subr.mxu0 0.0
    %486 = vmatpush1.msra.mxu0 0.0
    %487 = vmatprep.subr.mxu0 0.0
    %488 = vmatpush1.msra.mxu0 0.0
    %489 = vmatprep.subr.mxu0 0.0
    %490 = vmatpush1.msra.mxu0 0.0
    %491 = vmatprep.subr.mxu0 0.0
    %492 = vmatpush1.msra.mxu0 0.0
    %493 = vmatprep.subr.mxu0 0.0
    %494 = vmatpush1.msra.mxu0 0.0
    %495 = vmatprep.mubr.f32.mxu0 0.0
    %496 = vmatmul.mubr.f32.gmra.mrb[0].mxu0 %v414
    %v497 = vpop.f32.mrb[0].mxu0
    %v498 = vadd.f32 %v410, %v497
    %v499 = vpop.f32.mrb[0].mxu0
    %500 = vmatprep.mubr.f32.mxu0 0.0
    %501 = vmatmul.mubr.f32.gmra.mrb[0].mxu0 %v417
    %v502 = vpop.f32.mrb[0].mxu0
    %v503 = vadd.f32 %v410, %v502
    %v504 = vpop.f32.mrb[0].mxu0
    %505 = vmatprep.mubr.f32.mxu0 0.0
    %506 = vmatmul.mubr.f32.gmra.mrb[0].mxu0 %v420
    %v507 = vpop.f32.mrb[0].mxu0
    %v508 = vadd.f32 %v410, %v507
    %v509 = vpop.f32.mrb[0].mxu0
    %510 = vmatprep.mubr.f32.mxu0 0.0
    %511 = vmatmul.mubr.f32.gmra.mrb[0].mxu0 %v423
    %v512 = vpop.f32.mrb[0].mxu0
    %v513 = vadd.f32 %v410, %v512
    %v514 = vpop.f32.mrb[0].mxu0
    %515 = vmatprep.mubr.f32.mxu0 0.0
    %516 = vmatmul.mubr.f32.gmra.mrb[0].mxu0 %v426
    %v517 = vpop.f32.mrb[0].mxu0
    %v518 = vadd.f32 %v410, %v517
    %v519 = vpop.f32.mrb[0].mxu0
    %520 = vmatprep.mubr.f32.mxu0 0.0
    %521 = vmatmul.mubr.f32.gmra.mrb[0].mxu0 %v429
    %v522 = vpop.f32.mrb[0].mxu0
    %v523 = vadd.f32 %v410, %v522
    %v524 = vpop.f32.mrb[0].mxu0
    %525 = vdwg.mxu0
    %v532 = vcombine.high %v498, %v498
    %v533 = vcombine.high %v503, %v503
    %v534 = vcombine.high %v508, %v508
    %v535 = vcombine.high %v513, %v513
    %v536 = vcombine.high %v518, %v518
    %v537 = vcombine.high %v523, %v523
    %vm544 = vcmask 519168
    %545 = vst.msk [vmem:[#allocation2] sm:$0xf] %vm544, %v498
    %546 = vst.msk [vmem:[#allocation2 + $0x4] sm:$0xf] %vm544, %v532
    %547 = vst.msk [vmem:[#allocation2 + $0x8] sm:$0xf] %vm544, %v503
    %548 = vst.msk [vmem:[#allocation2 + $0xc] sm:$0xf] %vm544, %v533
    %549 = vst.msk [vmem:[#allocation2 + $0x10] sm:$0xf] %vm544, %v508
    %550 = vst.msk [vmem:[#allocation2 + $0x14] sm:$0xf] %vm544, %v534
    %551 = vst.msk [vmem:[#allocation2 + $0x18] sm:$0xf] %vm544, %v513
    %552 = vst.msk [vmem:[#allocation2 + $0x1c] sm:$0xf] %vm544, %v535
    %553 = vst.msk [vmem:[#allocation2 + $0x20] sm:$0xf] %vm544, %v518
    %554 = vst.msk [vmem:[#allocation2 + $0x24] sm:$0xf] %vm544, %v536
    %555 = vst.msk [vmem:[#allocation2 + $0x28] sm:$0xf] %vm544, %v523
    %556 = vst.msk [vmem:[#allocation2 + $0x2c] sm:$0xf] %vm544, %v537
    %v557 = vld [vmem:[%s4] sm:$0xff]
    %v558 = vld [vmem:[%s4 + $0x8] sm:$0xff]
    %v559 = vld [vmem:[#allocation2] sm:$0xf]
    %v561 = vsel %vm412, 0.0, 0
    %563 = vmatprep.subr.mxu0 0.0
    %564 = vmatpush1.msra.mxu0 %v557
    %565 = vmatprep.subr.mxu0 0.0
    %566 = vmatpush1.msra.mxu0 %v558
    %567 = vmatprep.subr.mxu0 0.0
    %568 = vmatpush1.msra.mxu0 0.0
    %569 = vmatprep.subr.mxu0 0.0
    %570 = vmatpush1.msra.mxu0 0.0
    %571 = vmatprep.subr.mxu0 0.0
    %572 = vmatpush1.msra.mxu0 0.0
    %573 = vmatprep.subr.mxu0 0.0
    %574 = vmatpush1.msra.mxu0 0.0
    %575 = vmatprep.subr.mxu0 0.0
    %576 = vmatpush1.msra.mxu0 0.0
    %577 = vmatprep.subr.mxu0 0.0
    %578 = vmatpush1.msra.mxu0 0.0
    %579 = vmatprep.subr.mxu0 0.0
    %580 = vmatpush1.msra.mxu0 0.0
    %581 = vmatprep.subr.mxu0 0.0
    %582 = vmatpush1.msra.mxu0 0.0
    %583 = vmatprep.subr.mxu0 0.0
    %584 = vmatpush1.msra.mxu0 0.0
    %585 = vmatprep.subr.mxu0 0.0
    %586 = vmatpush1.msra.mxu0 0.0
    %587 = vmatprep.subr.mxu0 0.0
    %588 = vmatpush1.msra.mxu0 0.0
    %589 = vmatprep.subr.mxu0 0.0
    %590 = vmatpush1.msra.mxu0 0.0
    %591 = vmatprep.subr.mxu0 0.0
    %592 = vmatpush1.msra.mxu0 0.0
    %593 = vmatprep.subr.mxu0 0.0
    %594 = vmatpush1.msra.mxu0 0.0
    %595 = vmatprep.subr.mxu0 0.0
    %596 = vmatpush1.msra.mxu0 0.0
    %597 = vmatprep.subr.mxu0 0.0
    %598 = vmatpush1.msra.mxu0 0.0
    %599 = vmatprep.subr.mxu0 0.0
    %600 = vmatpush1.msra.mxu0 0.0
    %601 = vmatprep.subr.mxu0 0.0
    %602 = vmatpush1.msra.mxu0 0.0
    %603 = vmatprep.subr.mxu0 0.0
    %604 = vmatpush1.msra.mxu0 0.0
    %605 = vmatprep.subr.mxu0 0.0
    %606 = vmatpush1.msra.mxu0 0.0
    %607 = vmatprep.subr.mxu0 0.0
    %608 = vmatpush1.msra.mxu0 0.0
    %609 = vmatprep.subr.mxu0 0.0
    %610 = vmatpush1.msra.mxu0 0.0
    %611 = vmatprep.subr.mxu0 0.0
    %612 = vmatpush1.msra.mxu0 0.0
    %613 = vmatprep.subr.mxu0 0.0
    %614 = vmatpush1.msra.mxu0 0.0
    %615 = vmatprep.subr.mxu0 0.0
    %616 = vmatpush1.msra.mxu0 0.0
    %617 = vmatprep.subr.mxu0 0.0
    %618 = vmatpush1.msra.mxu0 0.0
    %619 = vmatprep.subr.mxu0 0.0
    %620 = vmatpush1.msra.mxu0 0.0
    %621 = vmatprep.subr.mxu0 0.0
    %622 = vmatpush1.msra.mxu0 0.0
    %623 = vmatprep.subr.mxu0 0.0
    %624 = vmatpush1.msra.mxu0 0.0
    %625 = vmatprep.subr.mxu0 0.0
    %626 = vmatpush1.msra.mxu0 0.0
    %627 = vmatprep.mubr.f32.mxu0 0.0
    %628 = vmatmul.mubr.f32.gmra.mrb[0].mxu0 %v561
    %v629 = vpop.f32.mrb[0].mxu0
    %v630 = vadd.f32 0.0, %v629
    %v631 = vpop.f32.mrb[0].mxu0
    %632 = vdwg.mxu0
    %v633 = vadd.f32 %v559, %v630
    %v634 = vxor.u32 %v633, 2147483648
    %v635 = vmul.f32 %v634, 1.442695
    %v636 = vpow.pop %v635
    %v637 = vadd.f32 %v636, 1.0
    %v638 = vrcp.pop %v637
    %v639 = vmul.f32 1.0, %v638
    %v640 = vtanh.pop %v633
    %v641 = vmul.f32 %v639, 0.0
    %643 = vrot.lane.b32.xlu0 %v640, 96
    %v644 = vpop.permute.xlu0 %643
    %v646 = vmul.f32 %v639, %v644
    %648 = vrot.lane.b32.xlu0 %v646, 16
    %v649 = vpop.permute.xlu0 %648
    %v651 = vadd.f32 %v641, %v649
    %v652 = vtanh.pop %v651
    %654 = vrot.lane.b32.xlu0 %v652, 32
    %v655 = vpop.permute.xlu0 %654
    %v657 = vmul.f32 %v639, %v655
    %659 = vrot.lane.b32.xlu0 %v657, 80
    %v660 = vpop.permute.xlu0 %659
    %vm662 = vcmask 125952
    %663 = vst.msk [vmem:[#allocation3] sm:$0xf] %vm662, %v660
    %s664 = scalar_lea.vmem [#allocation2], 4
    %v665 = vld [vmem:[%s664] sm:$0xf]
    %v666 = vsel %vm412, %v660, 0
    %668 = vmatprep.subr.mxu0 0.0
    %669 = vmatpush1.msra.mxu0 %v557
    %670 = vmatprep.subr.mxu0 0.0
    %671 = vmatpush1.msra.mxu0 %v558
    %672 = vmatprep.subr.mxu0 0.0
    %673 = vmatpush1.msra.mxu0 0.0
    %674 = vmatprep.subr.mxu0 0.0
    %675 = vmatpush1.msra.mxu0 0.0
    %676 = vmatprep.subr.mxu0 0.0
    %677 = vmatpush1.msra.mxu0 0.0
    %678 = vmatprep.subr.mxu0 0.0
    %679 = vmatpush1.msra.mxu0 0.0
    %680 = vmatprep.subr.mxu0 0.0
    %681 = vmatpush1.msra.mxu0 0.0
    %682 = vmatprep.subr.mxu0 0.0
    %683 = vmatpush1.msra.mxu0 0.0
    %684 = vmatprep.subr.mxu0 0.0
    %685 = vmatpush1.msra.mxu0 0.0
    %686 = vmatprep.subr.mxu0 0.0
    %687 = vmatpush1.msra.mxu0 0.0
    %688 = vmatprep.subr.mxu0 0.0
    %689 = vmatpush1.msra.mxu0 0.0
    %690 = vmatprep.subr.mxu0 0.0
    %691 = vmatpush1.msra.mxu0 0.0
    %692 = vmatprep.subr.mxu0 0.0
    %693 = vmatpush1.msra.mxu0 0.0
    %694 = vmatprep.subr.mxu0 0.0
    %695 = vmatpush1.msra.mxu0 0.0
    %696 = vmatprep.subr.mxu0 0.0
    %697 = vmatpush1.msra.mxu0 0.0
    %698 = vmatprep.subr.mxu0 0.0
    %699 = vmatpush1.msra.mxu0 0.0
    %700 = vmatprep.subr.mxu0 0.0
    %701 = vmatpush1.msra.mxu0 0.0
    %702 = vmatprep.subr.mxu0 0.0
    %703 = vmatpush1.msra.mxu0 0.0
    %704 = vmatprep.subr.mxu0 0.0
    %705 = vmatpush1.msra.mxu0 0.0
    %706 = vmatprep.subr.mxu0 0.0
    %707 = vmatpush1.msra.mxu0 0.0
    %708 = vmatprep.subr.mxu0 0.0
    %709 = vmatpush1.msra.mxu0 0.0
    %710 = vmatprep.subr.mxu0 0.0
    %711 = vmatpush1.msra.mxu0 0.0
    %712 = vmatprep.subr.mxu0 0.0
    %713 = vmatpush1.msra.mxu0 0.0
    %714 = vmatprep.subr.mxu0 0.0
    %715 = vmatpush1.msra.mxu0 0.0
    %716 = vmatprep.subr.mxu0 0.0
    %717 = vmatpush1.msra.mxu0 0.0
    %718 = vmatprep.subr.mxu0 0.0
    %719 = vmatpush1.msra.mxu0 0.0
    %720 = vmatprep.subr.mxu0 0.0
    %721 = vmatpush1.msra.mxu0 0.0
    %722 = vmatprep.subr.mxu0 0.0
    %723 = vmatpush1.msra.mxu0 0.0
    %724 = vmatprep.subr.mxu0 0.0
    %725 = vmatpush1.msra.mxu0 0.0
    %726 = vmatprep.subr.mxu0 0.0
    %727 = vmatpush1.msra.mxu0 0.0
    %728 = vmatprep.subr.mxu0 0.0
    %729 = vmatpush1.msra.mxu0 0.0
    %730 = vmatprep.subr.mxu0 0.0
    %731 = vmatpush1.msra.mxu0 0.0
    %732 = vmatprep.mubr.f32.mxu0 0.0
    %733 = vmatmul.mubr.f32.gmra.mrb[0].mxu0 %v666
    %v734 = vpop.f32.mrb[0].mxu0
    %v735 = vadd.f32 0.0, %v734
    %v736 = vpop.f32.mrb[0].mxu0
    %737 = vdwg.mxu0
    %v738 = vadd.f32 %v665, %v735
    %v739 = vxor.u32 %v738, 2147483648
    %v740 = vmul.f32 %v739, 1.442695
    %v741 = vpow.pop %v740
    %v742 = vadd.f32 %v741, 1.0
    %v743 = vrcp.pop %v742
    %v744 = vmul.f32 1.0, %v743
    %v745 = vtanh.pop %v738
    %v746 = vmul.f32 %v744, %v651
    %748 = vrot.lane.b32.xlu0 %v745, 96
    %v749 = vpop.permute.xlu0 %748
    %v751 = vmul.f32 %v744, %v749
    %753 = vrot.lane.b32.xlu0 %v751, 16
    %v754 = vpop.permute.xlu0 %753
    %v756 = vadd.f32 %v746, %v754
    %v757 = vtanh.pop %v756
    %759 = vrot.lane.b32.xlu0 %v757, 32
    %v760 = vpop.permute.xlu0 %759
    %v762 = vmul.f32 %v744, %v760
    %764 = vrot.lane.b32.xlu0 %v762, 80
    %v765 = vpop.permute.xlu0 %764
    %s767 = scalar_lea.vmem [#allocation3], 4
    %768 = vst.msk [vmem:[%s767] sm:$0xf] %vm662, %v765
    %s769 = scalar_lea.vmem [#allocation2], 8
    %v770 = vld [vmem:[%s769] sm:$0xf]
    %v771 = vsel %vm412, %v765, 0
    %773 = vmatprep.subr.mxu0 0.0
    %774 = vmatpush1.msra.mxu0 %v557
    %775 = vmatprep.subr.mxu0 0.0
    %776 = vmatpush1.msra.mxu0 %v558
    %777 = vmatprep.subr.mxu0 0.0
    %778 = vmatpush1.msra.mxu0 0.0
    %779 = vmatprep.subr.mxu0 0.0
    %780 = vmatpush1.msra.mxu0 0.0
    %781 = vmatprep.subr.mxu0 0.0
    %782 = vmatpush1.msra.mxu0 0.0
    %783 = vmatprep.subr.mxu0 0.0
    %784 = vmatpush1.msra.mxu0 0.0
    %785 = vmatprep.subr.mxu0 0.0
    %786 = vmatpush1.msra.mxu0 0.0
    %787 = vmatprep.subr.mxu0 0.0
    %788 = vmatpush1.msra.mxu0 0.0
    %789 = vmatprep.subr.mxu0 0.0
    %790 = vmatpush1.msra.mxu0 0.0
    %791 = vmatprep.subr.mxu0 0.0
    %792 = vmatpush1.msra.mxu0 0.0
    %793 = vmatprep.subr.mxu0 0.0
    %794 = vmatpush1.msra.mxu0 0.0
    %795 = vmatprep.subr.mxu0 0.0
    %796 = vmatpush1.msra.mxu0 0.0
    %797 = vmatprep.subr.mxu0 0.0
    %798 = vmatpush1.msra.mxu0 0.0
    %799 = vmatprep.subr.mxu0 0.0
    %800 = vmatpush1.msra.mxu0 0.0
    %801 = vmatprep.subr.mxu0 0.0
    %802 = vmatpush1.msra.mxu0 0.0
    %803 = vmatprep.subr.mxu0 0.0
    %804 = vmatpush1.msra.mxu0 0.0
    %805 = vmatprep.subr.mxu0 0.0
    %806 = vmatpush1.msra.mxu0 0.0
    %807 = vmatprep.subr.mxu0 0.0
    %808 = vmatpush1.msra.mxu0 0.0
    %809 = vmatprep.subr.mxu0 0.0
    %810 = vmatpush1.msra.mxu0 0.0
    %811 = vmatprep.subr.mxu0 0.0
    %812 = vmatpush1.msra.mxu0 0.0
    %813 = vmatprep.subr.mxu0 0.0
    %814 = vmatpush1.msra.mxu0 0.0
    %815 = vmatprep.subr.mxu0 0.0
    %816 = vmatpush1.msra.mxu0 0.0
    %817 = vmatprep.subr.mxu0 0.0
    %818 = vmatpush1.msra.mxu0 0.0
    %819 = vmatprep.subr.mxu0 0.0
    %820 = vmatpush1.msra.mxu0 0.0
    %821 = vmatprep.subr.mxu0 0.0
    %822 = vmatpush1.msra.mxu0 0.0
    %823 = vmatprep.subr.mxu0 0.0
    %824 = vmatpush1.msra.mxu0 0.0
    %825 = vmatprep.subr.mxu0 0.0
    %826 = vmatpush1.msra.mxu0 0.0
    %827 = vmatprep.subr.mxu0 0.0
    %828 = vmatpush1.msra.mxu0 0.0
    %829 = vmatprep.subr.mxu0 0.0
    %830 = vmatpush1.msra.mxu0 0.0
    %831 = vmatprep.subr.mxu0 0.0
    %832 = vmatpush1.msra.mxu0 0.0
    %833 = vmatprep.subr.mxu0 0.0
    %834 = vmatpush1.msra.mxu0 0.0
    %835 = vmatprep.subr.mxu0 0.0
    %836 = vmatpush1.msra.mxu0 0.0
    %837 = vmatprep.mubr.f32.mxu0 0.0
    %838 = vmatmul.mubr.f32.gmra.mrb[0].mxu0 %v771
    %v839 = vpop.f32.mrb[0].mxu0
    %v840 = vadd.f32 0.0, %v839
    %v841 = vpop.f32.mrb[0].mxu0
    %842 = vdwg.mxu0
    %v843 = vadd.f32 %v770, %v840
    %v844 = vxor.u32 %v843, 2147483648
    %v845 = vmul.f32 %v844, 1.442695
    %v846 = vpow.pop %v845
    %v847 = vadd.f32 %v846, 1.0
    %v848 = vrcp.pop %v847
    %v849 = vmul.f32 1.0, %v848
    %v850 = vtanh.pop %v843
    %v851 = vmul.f32 %v849, %v756
    %853 = vrot.lane.b32.xlu0 %v850, 96
    %v854 = vpop.permute.xlu0 %853
    %v856 = vmul.f32 %v849, %v854
    %858 = vrot.lane.b32.xlu0 %v856, 16
    %v859 = vpop.permute.xlu0 %858
    %v861 = vadd.f32 %v851, %v859
    %v862 = vtanh.pop %v861
    %864 = vrot.lane.b32.xlu0 %v862, 32
    %v865 = vpop.permute.xlu0 %864
    %v867 = vmul.f32 %v849, %v865
    %869 = vrot.lane.b32.xlu0 %v867, 80
    %v870 = vpop.permute.xlu0 %869
    %s872 = scalar_lea.vmem [#allocation3], 8
    %873 = vst.msk [vmem:[%s872] sm:$0xf] %vm662, %v870
    %s874 = scalar_lea.vmem [#allocation2], 12
    %v875 = vld [vmem:[%s874] sm:$0xf]
    %v876 = vsel %vm412, %v870, 0
    %878 = vmatprep.subr.mxu0 0.0
    %879 = vmatpush1.msra.mxu0 %v557
    %880 = vmatprep.subr.mxu0 0.0
    %881 = vmatpush1.msra.mxu0 %v558
    %882 = vmatprep.subr.mxu0 0.0
    %883 = vmatpush1.msra.mxu0 0.0
    %884 = vmatprep.subr.mxu0 0.0
    %885 = vmatpush1.msra.mxu0 0.0
    %886 = vmatprep.subr.mxu0 0.0
    %887 = vmatpush1.msra.mxu0 0.0
    %888 = vmatprep.subr.mxu0 0.0
    %889 = vmatpush1.msra.mxu0 0.0
    %890 = vmatprep.subr.mxu0 0.0
    %891 = vmatpush1.msra.mxu0 0.0
    %892 = vmatprep.subr.mxu0 0.0
    %893 = vmatpush1.msra.mxu0 0.0
    %894 = vmatprep.subr.mxu0 0.0
    %895 = vmatpush1.msra.mxu0 0.0
    %896 = vmatprep.subr.mxu0 0.0
    %897 = vmatpush1.msra.mxu0 0.0
    %898 = vmatprep.subr.mxu0 0.0
    %899 = vmatpush1.msra.mxu0 0.0
    %900 = vmatprep.subr.mxu0 0.0
    %901 = vmatpush1.msra.mxu0 0.0
    %902 = vmatprep.subr.mxu0 0.0
    %903 = vmatpush1.msra.mxu0 0.0
    %904 = vmatprep.subr.mxu0 0.0
    %905 = vmatpush1.msra.mxu0 0.0
    %906 = vmatprep.subr.mxu0 0.0
    %907 = vmatpush1.msra.mxu0 0.0
    %908 = vmatprep.subr.mxu0 0.0
    %909 = vmatpush1.msra.mxu0 0.0
    %910 = vmatprep.subr.mxu0 0.0
    %911 = vmatpush1.msra.mxu0 0.0
    %912 = vmatprep.subr.mxu0 0.0
    %913 = vmatpush1.msra.mxu0 0.0
    %914 = vmatprep.subr.mxu0 0.0
    %915 = vmatpush1.msra.mxu0 0.0
    %916 = vmatprep.subr.mxu0 0.0
    %917 = vmatpush1.msra.mxu0 0.0
    %918 = vmatprep.subr.mxu0 0.0
    %919 = vmatpush1.msra.mxu0 0.0
    %920 = vmatprep.subr.mxu0 0.0
    %921 = vmatpush1.msra.mxu0 0.0
    %922 = vmatprep.subr.mxu0 0.0
    %923 = vmatpush1.msra.mxu0 0.0
    %924 = vmatprep.subr.mxu0 0.0
    %925 = vmatpush1.msra.mxu0 0.0
    %926 = vmatprep.subr.mxu0 0.0
    %927 = vmatpush1.msra.mxu0 0.0
    %928 = vmatprep.subr.mxu0 0.0
    %929 = vmatpush1.msra.mxu0 0.0
    %930 = vmatprep.subr.mxu0 0.0
    %931 = vmatpush1.msra.mxu0 0.0
    %932 = vmatprep.subr.mxu0 0.0
    %933 = vmatpush1.msra.mxu0 0.0
    %934 = vmatprep.subr.mxu0 0.0
    %935 = vmatpush1.msra.mxu0 0.0
    %936 = vmatprep.subr.mxu0 0.0
    %937 = vmatpush1.msra.mxu0 0.0
    %938 = vmatprep.subr.mxu0 0.0
    %939 = vmatpush1.msra.mxu0 0.0
    %940 = vmatprep.subr.mxu0 0.0
    %941 = vmatpush1.msra.mxu0 0.0
    %942 = vmatprep.mubr.f32.mxu0 0.0
    %943 = vmatmul.mubr.f32.gmra.mrb[0].mxu0 %v876
    %v944 = vpop.f32.mrb[0].mxu0
    %v945 = vadd.f32 0.0, %v944
    %v946 = vpop.f32.mrb[0].mxu0
    %947 = vdwg.mxu0
    %v948 = vadd.f32 %v875, %v945
    %v949 = vxor.u32 %v948, 2147483648
    %v950 = vmul.f32 %v949, 1.442695
    %v951 = vpow.pop %v950
    %v952 = vadd.f32 %v951, 1.0
    %v953 = vrcp.pop %v952
    %v954 = vmul.f32 1.0, %v953
    %v955 = vtanh.pop %v948
    %v956 = vmul.f32 %v954, %v861
    %958 = vrot.lane.b32.xlu0 %v955, 96
    %v959 = vpop.permute.xlu0 %958
    %v961 = vmul.f32 %v954, %v959
    %963 = vrot.lane.b32.xlu0 %v961, 16
    %v964 = vpop.permute.xlu0 %963
    %v966 = vadd.f32 %v956, %v964
    %v967 = vtanh.pop %v966
    %969 = vrot.lane.b32.xlu0 %v967, 32
    %v970 = vpop.permute.xlu0 %969
    %v972 = vmul.f32 %v954, %v970
    %974 = vrot.lane.b32.xlu0 %v972, 80
    %v975 = vpop.permute.xlu0 %974
    %s977 = scalar_lea.vmem [#allocation3], 12
    %978 = vst.msk [vmem:[%s977] sm:$0xf] %vm662, %v975
    %s979 = scalar_lea.vmem [#allocation2], 16
    %v980 = vld [vmem:[%s979] sm:$0xf]
    %v981 = vsel %vm412, %v975, 0
    %983 = vmatprep.subr.mxu0 0.0
    %984 = vmatpush1.msra.mxu0 %v557
    %985 = vmatprep.subr.mxu0 0.0
    %986 = vmatpush1.msra.mxu0 %v558
    %987 = vmatprep.subr.mxu0 0.0
    %988 = vmatpush1.msra.mxu0 0.0
    %989 = vmatprep.subr.mxu0 0.0
    %990 = vmatpush1.msra.mxu0 0.0
    %991 = vmatprep.subr.mxu0 0.0
    %992 = vmatpush1.msra.mxu0 0.0
    %993 = vmatprep.subr.mxu0 0.0
    %994 = vmatpush1.msra.mxu0 0.0
    %995 = vmatprep.subr.mxu0 0.0
    %996 = vmatpush1.msra.mxu0 0.0
    %997 = vmatprep.subr.mxu0 0.0
    %998 = vmatpush1.msra.mxu0 0.0
    %999 = vmatprep.subr.mxu0 0.0
    %1000 = vmatpush1.msra.mxu0 0.0
    %1001 = vmatprep.subr.mxu0 0.0
    %1002 = vmatpush1.msra.mxu0 0.0
    %1003 = vmatprep.subr.mxu0 0.0
    %1004 = vmatpush1.msra.mxu0 0.0
    %1005 = vmatprep.subr.mxu0 0.0
    %1006 = vmatpush1.msra.mxu0 0.0
    %1007 = vmatprep.subr.mxu0 0.0
    %1008 = vmatpush1.msra.mxu0 0.0
    %1009 = vmatprep.subr.mxu0 0.0
    %1010 = vmatpush1.msra.mxu0 0.0
    %1011 = vmatprep.subr.mxu0 0.0
    %1012 = vmatpush1.msra.mxu0 0.0
    %1013 = vmatprep.subr.mxu0 0.0
    %1014 = vmatpush1.msra.mxu0 0.0
    %1015 = vmatprep.subr.mxu0 0.0
    %1016 = vmatpush1.msra.mxu0 0.0
    %1017 = vmatprep.subr.mxu0 0.0
    %1018 = vmatpush1.msra.mxu0 0.0
    %1019 = vmatprep.subr.mxu0 0.0
    %1020 = vmatpush1.msra.mxu0 0.0
    %1021 = vmatprep.subr.mxu0 0.0
    %1022 = vmatpush1.msra.mxu0 0.0
    %1023 = vmatprep.subr.mxu0 0.0
    %1024 = vmatpush1.msra.mxu0 0.0
    %1025 = vmatprep.subr.mxu0 0.0
    %1026 = vmatpush1.msra.mxu0 0.0
    %1027 = vmatprep.subr.mxu0 0.0
    %1028 = vmatpush1.msra.mxu0 0.0
    %1029 = vmatprep.subr.mxu0 0.0
    %1030 = vmatpush1.msra.mxu0 0.0
    %1031 = vmatprep.subr.mxu0 0.0
    %1032 = vmatpush1.msra.mxu0 0.0
    %1033 = vmatprep.subr.mxu0 0.0
    %1034 = vmatpush1.msra.mxu0 0.0
    %1035 = vmatprep.subr.mxu0 0.0
    %1036 = vmatpush1.msra.mxu0 0.0
    %1037 = vmatprep.subr.mxu0 0.0
    %1038 = vmatpush1.msra.mxu0 0.0
    %1039 = vmatprep.subr.mxu0 0.0
    %1040 = vmatpush1.msra.mxu0 0.0
    %1041 = vmatprep.subr.mxu0 0.0
    %1042 = vmatpush1.msra.mxu0 0.0
    %1043 = vmatprep.subr.mxu0 0.0
    %1044 = vmatpush1.msra.mxu0 0.0
    %1045 = vmatprep.subr.mxu0 0.0
    %1046 = vmatpush1.msra.mxu0 0.0
    %1047 = vmatprep.mubr.f32.mxu0 0.0
    %1048 = vmatmul.mubr.f32.gmra.mrb[0].mxu0 %v981
    %v1049 = vpop.f32.mrb[0].mxu0
    %v1050 = vadd.f32 0.0, %v1049
    %v1051 = vpop.f32.mrb[0].mxu0
    %1052 = vdwg.mxu0
    %v1053 = vadd.f32 %v980, %v1050
    %v1054 = vxor.u32 %v1053, 2147483648
    %v1055 = vmul.f32 %v1054, 1.442695
    %v1056 = vpow.pop %v1055
    %v1057 = vadd.f32 %v1056, 1.0
    %v1058 = vrcp.pop %v1057
    %v1059 = vmul.f32 1.0, %v1058
    %v1060 = vtanh.pop %v1053
    %v1061 = vmul.f32 %v1059, %v966
    %1063 = vrot.lane.b32.xlu0 %v1060, 96
    %v1064 = vpop.permute.xlu0 %1063
    %v1066 = vmul.f32 %v1059, %v1064
    %1068 = vrot.lane.b32.xlu0 %v1066, 16
    %v1069 = vpop.permute.xlu0 %1068
    %v1071 = vadd.f32 %v1061, %v1069
    %v1072 = vtanh.pop %v1071
    %1074 = vrot.lane.b32.xlu0 %v1072, 32
    %v1075 = vpop.permute.xlu0 %1074
    %v1077 = vmul.f32 %v1059, %v1075
    %1079 = vrot.lane.b32.xlu0 %v1077, 80
    %v1080 = vpop.permute.xlu0 %1079
    %s1082 = scalar_lea.vmem [#allocation3], 16
    %1083 = vst.msk [vmem:[%s1082] sm:$0xf] %vm662, %v1080
    %s1084 = scalar_lea.vmem [#allocation2], 20
    %v1085 = vld [vmem:[%s1084] sm:$0xf]
    %v1086 = vsel %vm412, %v1080, 0
    %1088 = vmatprep.subr.mxu0 0.0
    %1089 = vmatpush1.msra.mxu0 %v557
    %1090 = vmatprep.subr.mxu0 0.0
    %1091 = vmatpush1.msra.mxu0 %v558
    %1092 = vmatprep.subr.mxu0 0.0
    %1093 = vmatpush1.msra.mxu0 0.0
    %1094 = vmatprep.subr.mxu0 0.0
    %1095 = vmatpush1.msra.mxu0 0.0
    %1096 = vmatprep.subr.mxu0 0.0
    %1097 = vmatpush1.msra.mxu0 0.0
    %1098 = vmatprep.subr.mxu0 0.0
    %1099 = vmatpush1.msra.mxu0 0.0
    %1100 = vmatprep.subr.mxu0 0.0
    %1101 = vmatpush1.msra.mxu0 0.0
    %1102 = vmatprep.subr.mxu0 0.0
    %1103 = vmatpush1.msra.mxu0 0.0
    %1104 = vmatprep.subr.mxu0 0.0
    %1105 = vmatpush1.msra.mxu0 0.0
    %1106 = vmatprep.subr.mxu0 0.0
    %1107 = vmatpush1.msra.mxu0 0.0
    %1108 = vmatprep.subr.mxu0 0.0
    %1109 = vmatpush1.msra.mxu0 0.0
    %1110 = vmatprep.subr.mxu0 0.0
    %1111 = vmatpush1.msra.mxu0 0.0
    %1112 = vmatprep.subr.mxu0 0.0
    %1113 = vmatpush1.msra.mxu0 0.0
    %1114 = vmatprep.subr.mxu0 0.0
    %1115 = vmatpush1.msra.mxu0 0.0
    %1116 = vmatprep.subr.mxu0 0.0
    %1117 = vmatpush1.msra.mxu0 0.0
    %1118 = vmatprep.subr.mxu0 0.0
    %1119 = vmatpush1.msra.mxu0 0.0
    %1120 = vmatprep.subr.mxu0 0.0
    %1121 = vmatpush1.msra.mxu0 0.0
    %1122 = vmatprep.subr.mxu0 0.0
    %1123 = vmatpush1.msra.mxu0 0.0
    %1124 = vmatprep.subr.mxu0 0.0
    %1125 = vmatpush1.msra.mxu0 0.0
    %1126 = vmatprep.subr.mxu0 0.0
    %1127 = vmatpush1.msra.mxu0 0.0
    %1128 = vmatprep.subr.mxu0 0.0
    %1129 = vmatpush1.msra.mxu0 0.0
    %1130 = vmatprep.subr.mxu0 0.0
    %1131 = vmatpush1.msra.mxu0 0.0
    %1132 = vmatprep.subr.mxu0 0.0
    %1133 = vmatpush1.msra.mxu0 0.0
    %1134 = vmatprep.subr.mxu0 0.0
    %1135 = vmatpush1.msra.mxu0 0.0
    %1136 = vmatprep.subr.mxu0 0.0
    %1137 = vmatpush1.msra.mxu0 0.0
    %1138 = vmatprep.subr.mxu0 0.0
    %1139 = vmatpush1.msra.mxu0 0.0
    %1140 = vmatprep.subr.mxu0 0.0
    %1141 = vmatpush1.msra.mxu0 0.0
    %1142 = vmatprep.subr.mxu0 0.0
    %1143 = vmatpush1.msra.mxu0 0.0
    %1144 = vmatprep.subr.mxu0 0.0
    %1145 = vmatpush1.msra.mxu0 0.0
    %1146 = vmatprep.subr.mxu0 0.0
    %1147 = vmatpush1.msra.mxu0 0.0
    %1148 = vmatprep.subr.mxu0 0.0
    %1149 = vmatpush1.msra.mxu0 0.0
    %1150 = vmatprep.subr.mxu0 0.0
    %1151 = vmatpush1.msra.mxu0 0.0
    %1152 = vmatprep.mubr.f32.mxu0 0.0
    %1153 = vmatmul.mubr.f32.gmra.mrb[0].mxu0 %v1086
    %v1154 = vpop.f32.mrb[0].mxu0
    %v1155 = vadd.f32 0.0, %v1154
    %v1156 = vpop.f32.mrb[0].mxu0
    %1157 = vdwg.mxu0
    %v1158 = vadd.f32 %v1085, %v1155
    %v1159 = vxor.u32 %v1158, 2147483648
    %v1160 = vmul.f32 %v1159, 1.442695
    %v1161 = vpow.pop %v1160
    %v1162 = vadd.f32 %v1161, 1.0
    %v1163 = vrcp.pop %v1162
    %v1164 = vmul.f32 1.0, %v1163
    %v1165 = vtanh.pop %v1158
    %v1166 = vmul.f32 %v1164, %v1071
    %1168 = vrot.lane.b32.xlu0 %v1165, 96
    %v1169 = vpop.permute.xlu0 %1168
    %v1171 = vmul.f32 %v1164, %v1169
    %1173 = vrot.lane.b32.xlu0 %v1171, 16
    %v1174 = vpop.permute.xlu0 %1173
    %v1176 = vadd.f32 %v1166, %v1174
    %v1177 = vtanh.pop %v1176
    %1179 = vrot.lane.b32.xlu0 %v1177, 32
    %v1180 = vpop.permute.xlu0 %1179
    %v1182 = vmul.f32 %v1164, %v1180
    %1184 = vrot.lane.b32.xlu0 %v1182, 80
    %v1185 = vpop.permute.xlu0 %1184
    %s1187 = scalar_lea.vmem [#allocation3], 20
    %1188 = vst.msk [vmem:[%s1187] sm:$0xf] %vm662, %v1185
    %s1189 = scalar_lea.vmem [#allocation2], 24
    %v1190 = vld [vmem:[%s1189] sm:$0xf]
    %v1191 = vsel %vm412, %v1185, 0
    %1193 = vmatprep.subr.mxu0 0.0
    %1194 = vmatpush1.msra.mxu0 %v557
    %1195 = vmatprep.subr.mxu0 0.0
    %1196 = vmatpush1.msra.mxu0 %v558
    %1197 = vmatprep.subr.mxu0 0.0
    %1198 = vmatpush1.msra.mxu0 0.0
    %1199 = vmatprep.subr.mxu0 0.0
    %1200 = vmatpush1.msra.mxu0 0.0
    %1201 = vmatprep.subr.mxu0 0.0
    %1202 = vmatpush1.msra.mxu0 0.0
    %1203 = vmatprep.subr.mxu0 0.0
    %1204 = vmatpush1.msra.mxu0 0.0
    %1205 = vmatprep.subr.mxu0 0.0
    %1206 = vmatpush1.msra.mxu0 0.0
    %1207 = vmatprep.subr.mxu0 0.0
    %1208 = vmatpush1.msra.mxu0 0.0
    %1209 = vmatprep.subr.mxu0 0.0
    %1210 = vmatpush1.msra.mxu0 0.0
    %1211 = vmatprep.subr.mxu0 0.0
    %1212 = vmatpush1.msra.mxu0 0.0
    %1213 = vmatprep.subr.mxu0 0.0
    %1214 = vmatpush1.msra.mxu0 0.0
    %1215 = vmatprep.subr.mxu0 0.0
    %1216 = vmatpush1.msra.mxu0 0.0
    %1217 = vmatprep.subr.mxu0 0.0
    %1218 = vmatpush1.msra.mxu0 0.0
    %1219 = vmatprep.subr.mxu0 0.0
    %1220 = vmatpush1.msra.mxu0 0.0
    %1221 = vmatprep.subr.mxu0 0.0
    %1222 = vmatpush1.msra.mxu0 0.0
    %1223 = vmatprep.subr.mxu0 0.0
    %1224 = vmatpush1.msra.mxu0 0.0
    %1225 = vmatprep.subr.mxu0 0.0
    %1226 = vmatpush1.msra.mxu0 0.0
    %1227 = vmatprep.subr.mxu0 0.0
    %1228 = vmatpush1.msra.mxu0 0.0
    %1229 = vmatprep.subr.mxu0 0.0
    %1230 = vmatpush1.msra.mxu0 0.0
    %1231 = vmatprep.subr.mxu0 0.0
    %1232 = vmatpush1.msra.mxu0 0.0
    %1233 = vmatprep.subr.mxu0 0.0
    %1234 = vmatpush1.msra.mxu0 0.0
    %1235 = vmatprep.subr.mxu0 0.0
    %1236 = vmatpush1.msra.mxu0 0.0
    %1237 = vmatprep.subr.mxu0 0.0
    %1238 = vmatpush1.msra.mxu0 0.0
    %1239 = vmatprep.subr.mxu0 0.0
    %1240 = vmatpush1.msra.mxu0 0.0
    %1241 = vmatprep.subr.mxu0 0.0
    %1242 = vmatpush1.msra.mxu0 0.0
    %1243 = vmatprep.subr.mxu0 0.0
    %1244 = vmatpush1.msra.mxu0 0.0
    %1245 = vmatprep.subr.mxu0 0.0
    %1246 = vmatpush1.msra.mxu0 0.0
    %1247 = vmatprep.subr.mxu0 0.0
    %1248 = vmatpush1.msra.mxu0 0.0
    %1249 = vmatprep.subr.mxu0 0.0
    %1250 = vmatpush1.msra.mxu0 0.0
    %1251 = vmatprep.subr.mxu0 0.0
    %1252 = vmatpush1.msra.mxu0 0.0
    %1253 = vmatprep.subr.mxu0 0.0
    %1254 = vmatpush1.msra.mxu0 0.0
    %1255 = vmatprep.subr.mxu0 0.0
    %1256 = vmatpush1.msra.mxu0 0.0
    %1257 = vmatprep.mubr.f32.mxu0 0.0
    %1258 = vmatmul.mubr.f32.gmra.mrb[0].mxu0 %v1191
    %v1259 = vpop.f32.mrb[0].mxu0
    %v1260 = vadd.f32 0.0, %v1259
    %v1261 = vpop.f32.mrb[0].mxu0
    %1262 = vdwg.mxu0
    %v1263 = vadd.f32 %v1190, %v1260
    %v1264 = vxor.u32 %v1263, 2147483648
    %v1265 = vmul.f32 %v1264, 1.442695
    %v1266 = vpow.pop %v1265
    %v1267 = vadd.f32 %v1266, 1.0
    %v1268 = vrcp.pop %v1267
    %v1269 = vmul.f32 1.0, %v1268
    %v1270 = vtanh.pop %v1263
    %v1271 = vmul.f32 %v1269, %v1176
    %1273 = vrot.lane.b32.xlu0 %v1270, 96
    %v1274 = vpop.permute.xlu0 %1273
    %v1276 = vmul.f32 %v1269, %v1274
    %1278 = vrot.lane.b32.xlu0 %v1276, 16
    %v1279 = vpop.permute.xlu0 %1278
    %v1281 = vadd.f32 %v1271, %v1279
    %v1282 = vtanh.pop %v1281
    %1284 = vrot.lane.b32.xlu0 %v1282, 32
    %v1285 = vpop.permute.xlu0 %1284
    %v1287 = vmul.f32 %v1269, %v1285
    %1289 = vrot.lane.b32.xlu0 %v1287, 80
    %v1290 = vpop.permute.xlu0 %1289
    %s1292 = scalar_lea.vmem [#allocation3], 24
    %1293 = vst.msk [vmem:[%s1292] sm:$0xf] %vm662, %v1290
    %s1294 = scalar_lea.vmem [#allocation2], 28
    %v1295 = vld [vmem:[%s1294] sm:$0xf]
    %v1296 = vsel %vm412, %v1290, 0
    %1298 = vmatprep.subr.mxu0 0.0
    %1299 = vmatpush1.msra.mxu0 %v557
    %1300 = vmatprep.subr.mxu0 0.0
    %1301 = vmatpush1.msra.mxu0 %v558
    %1302 = vmatprep.subr.mxu0 0.0
    %1303 = vmatpush1.msra.mxu0 0.0
    %1304 = vmatprep.subr.mxu0 0.0
    %1305 = vmatpush1.msra.mxu0 0.0
    %1306 = vmatprep.subr.mxu0 0.0
    %1307 = vmatpush1.msra.mxu0 0.0
    %1308 = vmatprep.subr.mxu0 0.0
    %1309 = vmatpush1.msra.mxu0 0.0
    %1310 = vmatprep.subr.mxu0 0.0
    %1311 = vmatpush1.msra.mxu0 0.0
    %1312 = vmatprep.subr.mxu0 0.0
    %1313 = vmatpush1.msra.mxu0 0.0
    %1314 = vmatprep.subr.mxu0 0.0
    %1315 = vmatpush1.msra.mxu0 0.0
    %1316 = vmatprep.subr.mxu0 0.0
    %1317 = vmatpush1.msra.mxu0 0.0
    %1318 = vmatprep.subr.mxu0 0.0
    %1319 = vmatpush1.msra.mxu0 0.0
    %1320 = vmatprep.subr.mxu0 0.0
    %1321 = vmatpush1.msra.mxu0 0.0
    %1322 = vmatprep.subr.mxu0 0.0
    %1323 = vmatpush1.msra.mxu0 0.0
    %1324 = vmatprep.subr.mxu0 0.0
    %1325 = vmatpush1.msra.mxu0 0.0
    %1326 = vmatprep.subr.mxu0 0.0
    %1327 = vmatpush1.msra.mxu0 0.0
    %1328 = vmatprep.subr.mxu0 0.0
    %1329 = vmatpush1.msra.mxu0 0.0
    %1330 = vmatprep.subr.mxu0 0.0
    %1331 = vmatpush1.msra.mxu0 0.0
    %1332 = vmatprep.subr.mxu0 0.0
    %1333 = vmatpush1.msra.mxu0 0.0
    %1334 = vmatprep.subr.mxu0 0.0
    %1335 = vmatpush1.msra.mxu0 0.0
    %1336 = vmatprep.subr.mxu0 0.0
    %1337 = vmatpush1.msra.mxu0 0.0
    %1338 = vmatprep.subr.mxu0 0.0
    %1339 = vmatpush1.msra.mxu0 0.0
    %1340 = vmatprep.subr.mxu0 0.0
    %1341 = vmatpush1.msra.mxu0 0.0
    %1342 = vmatprep.subr.mxu0 0.0
    %1343 = vmatpush1.msra.mxu0 0.0
    %1344 = vmatprep.subr.mxu0 0.0
    %1345 = vmatpush1.msra.mxu0 0.0
    %1346 = vmatprep.subr.mxu0 0.0
    %1347 = vmatpush1.msra.mxu0 0.0
    %1348 = vmatprep.subr.mxu0 0.0
    %1349 = vmatpush1.msra.mxu0 0.0
    %1350 = vmatprep.subr.mxu0 0.0
    %1351 = vmatpush1.msra.mxu0 0.0
    %1352 = vmatprep.subr.mxu0 0.0
    %1353 = vmatpush1.msra.mxu0 0.0
    %1354 = vmatprep.subr.mxu0 0.0
    %1355 = vmatpush1.msra.mxu0 0.0
    %1356 = vmatprep.subr.mxu0 0.0
    %1357 = vmatpush1.msra.mxu0 0.0
    %1358 = vmatprep.subr.mxu0 0.0
    %1359 = vmatpush1.msra.mxu0 0.0
    %1360 = vmatprep.subr.mxu0 0.0
    %1361 = vmatpush1.msra.mxu0 0.0
    %1362 = vmatprep.mubr.f32.mxu0 0.0
    %1363 = vmatmul.mubr.f32.gmra.mrb[0].mxu0 %v1296
    %v1364 = vpop.f32.mrb[0].mxu0
    %v1365 = vadd.f32 0.0, %v1364
    %v1366 = vpop.f32.mrb[0].mxu0
    %1367 = vdwg.mxu0
    %v1368 = vadd.f32 %v1295, %v1365
    %v1369 = vxor.u32 %v1368, 2147483648
    %v1370 = vmul.f32 %v1369, 1.442695
    %v1371 = vpow.pop %v1370
    %v1372 = vadd.f32 %v1371, 1.0
    %v1373 = vrcp.pop %v1372
    %v1374 = vmul.f32 1.0, %v1373
    %v1375 = vtanh.pop %v1368
    %v1376 = vmul.f32 %v1374, %v1281
    %1378 = vrot.lane.b32.xlu0 %v1375, 96
    %v1379 = vpop.permute.xlu0 %1378
    %v1381 = vmul.f32 %v1374, %v1379
    %1383 = vrot.lane.b32.xlu0 %v1381, 16
    %v1384 = vpop.permute.xlu0 %1383
    %v1386 = vadd.f32 %v1376, %v1384
    %v1387 = vtanh.pop %v1386
    %1389 = vrot.lane.b32.xlu0 %v1387, 32
    %v1390 = vpop.permute.xlu0 %1389
    %v1392 = vmul.f32 %v1374, %v1390
    %1394 = vrot.lane.b32.xlu0 %v1392, 80
    %v1395 = vpop.permute.xlu0 %1394
    %s1397 = scalar_lea.vmem [#allocation3], 28
    %1398 = vst.msk [vmem:[%s1397] sm:$0xf] %vm662, %v1395
    %s1399 = scalar_lea.vmem [#allocation2], 32
    %v1400 = vld [vmem:[%s1399] sm:$0xf]
    %v1401 = vsel %vm412, %v1395, 0
    %1403 = vmatprep.subr.mxu0 0.0
    %1404 = vmatpush1.msra.mxu0 %v557
    %1405 = vmatprep.subr.mxu0 0.0
    %1406 = vmatpush1.msra.mxu0 %v558
    %1407 = vmatprep.subr.mxu0 0.0
    %1408 = vmatpush1.msra.mxu0 0.0
    %1409 = vmatprep.subr.mxu0 0.0
    %1410 = vmatpush1.msra.mxu0 0.0
    %1411 = vmatprep.subr.mxu0 0.0
    %1412 = vmatpush1.msra.mxu0 0.0
    %1413 = vmatprep.subr.mxu0 0.0
    %1414 = vmatpush1.msra.mxu0 0.0
    %1415 = vmatprep.subr.mxu0 0.0
    %1416 = vmatpush1.msra.mxu0 0.0
    %1417 = vmatprep.subr.mxu0 0.0
    %1418 = vmatpush1.msra.mxu0 0.0
    %1419 = vmatprep.subr.mxu0 0.0
    %1420 = vmatpush1.msra.mxu0 0.0
    %1421 = vmatprep.subr.mxu0 0.0
    %1422 = vmatpush1.msra.mxu0 0.0
    %1423 = vmatprep.subr.mxu0 0.0
    %1424 = vmatpush1.msra.mxu0 0.0
    %1425 = vmatprep.subr.mxu0 0.0
    %1426 = vmatpush1.msra.mxu0 0.0
    %1427 = vmatprep.subr.mxu0 0.0
    %1428 = vmatpush1.msra.mxu0 0.0
    %1429 = vmatprep.subr.mxu0 0.0
    %1430 = vmatpush1.msra.mxu0 0.0
    %1431 = vmatprep.subr.mxu0 0.0
    %1432 = vmatpush1.msra.mxu0 0.0
    %1433 = vmatprep.subr.mxu0 0.0
    %1434 = vmatpush1.msra.mxu0 0.0
    %1435 = vmatprep.subr.mxu0 0.0
    %1436 = vmatpush1.msra.mxu0 0.0
    %1437 = vmatprep.subr.mxu0 0.0
    %1438 = vmatpush1.msra.mxu0 0.0
    %1439 = vmatprep.subr.mxu0 0.0
    %1440 = vmatpush1.msra.mxu0 0.0
    %1441 = vmatprep.subr.mxu0 0.0
    %1442 = vmatpush1.msra.mxu0 0.0
    %1443 = vmatprep.subr.mxu0 0.0
    %1444 = vmatpush1.msra.mxu0 0.0
    %1445 = vmatprep.subr.mxu0 0.0
    %1446 = vmatpush1.msra.mxu0 0.0
    %1447 = vmatprep.subr.mxu0 0.0
    %1448 = vmatpush1.msra.mxu0 0.0
    %1449 = vmatprep.subr.mxu0 0.0
    %1450 = vmatpush1.msra.mxu0 0.0
    %1451 = vmatprep.subr.mxu0 0.0
    %1452 = vmatpush1.msra.mxu0 0.0
    %1453 = vmatprep.subr.mxu0 0.0
    %1454 = vmatpush1.msra.mxu0 0.0
    %1455 = vmatprep.subr.mxu0 0.0
    %1456 = vmatpush1.msra.mxu0 0.0
    %1457 = vmatprep.subr.mxu0 0.0
    %1458 = vmatpush1.msra.mxu0 0.0
    %1459 = vmatprep.subr.mxu0 0.0
    %1460 = vmatpush1.msra.mxu0 0.0
    %1461 = vmatprep.subr.mxu0 0.0
    %1462 = vmatpush1.msra.mxu0 0.0
    %1463 = vmatprep.subr.mxu0 0.0
    %1464 = vmatpush1.msra.mxu0 0.0
    %1465 = vmatprep.subr.mxu0 0.0
    %1466 = vmatpush1.msra.mxu0 0.0
    %1467 = vmatprep.mubr.f32.mxu0 0.0
    %1468 = vmatmul.mubr.f32.gmra.mrb[0].mxu0 %v1401
    %v1469 = vpop.f32.mrb[0].mxu0
    %v1470 = vadd.f32 0.0, %v1469
    %v1471 = vpop.f32.mrb[0].mxu0
    %1472 = vdwg.mxu0
    %v1473 = vadd.f32 %v1400, %v1470
    %v1474 = vxor.u32 %v1473, 2147483648
    %v1475 = vmul.f32 %v1474, 1.442695
    %v1476 = vpow.pop %v1475
    %v1477 = vadd.f32 %v1476, 1.0
    %v1478 = vrcp.pop %v1477
    %v1479 = vmul.f32 1.0, %v1478
    %v1480 = vtanh.pop %v1473
    %v1481 = vmul.f32 %v1479, %v1386
    %1483 = vrot.lane.b32.xlu0 %v1480, 96
    %v1484 = vpop.permute.xlu0 %1483
    %v1486 = vmul.f32 %v1479, %v1484
    %1488 = vrot.lane.b32.xlu0 %v1486, 16
    %v1489 = vpop.permute.xlu0 %1488
    %v1491 = vadd.f32 %v1481, %v1489
    %v1492 = vtanh.pop %v1491
    %1494 = vrot.lane.b32.xlu0 %v1492, 32
    %v1495 = vpop.permute.xlu0 %1494
    %v1497 = vmul.f32 %v1479, %v1495
    %1499 = vrot.lane.b32.xlu0 %v1497, 80
    %v1500 = vpop.permute.xlu0 %1499
    %s1502 = scalar_lea.vmem [#allocation3], 32
    %1503 = vst.msk [vmem:[%s1502] sm:$0xf] %vm662, %v1500
    %s1504 = scalar_lea.vmem [#allocation2], 36
    %v1505 = vld [vmem:[%s1504] sm:$0xf]
    %v1506 = vsel %vm412, %v1500, 0
    %1508 = vmatprep.subr.mxu0 0.0
    %1509 = vmatpush1.msra.mxu0 %v557
    %1510 = vmatprep.subr.mxu0 0.0
    %1511 = vmatpush1.msra.mxu0 %v558
    %1512 = vmatprep.subr.mxu0 0.0
    %1513 = vmatpush1.msra.mxu0 0.0
    %1514 = vmatprep.subr.mxu0 0.0
    %1515 = vmatpush1.msra.mxu0 0.0
    %1516 = vmatprep.subr.mxu0 0.0
    %1517 = vmatpush1.msra.mxu0 0.0
    %1518 = vmatprep.subr.mxu0 0.0
    %1519 = vmatpush1.msra.mxu0 0.0
    %1520 = vmatprep.subr.mxu0 0.0
    %1521 = vmatpush1.msra.mxu0 0.0
    %1522 = vmatprep.subr.mxu0 0.0
    %1523 = vmatpush1.msra.mxu0 0.0
    %1524 = vmatprep.subr.mxu0 0.0
    %1525 = vmatpush1.msra.mxu0 0.0
    %1526 = vmatprep.subr.mxu0 0.0
    %1527 = vmatpush1.msra.mxu0 0.0
    %1528 = vmatprep.subr.mxu0 0.0
    %1529 = vmatpush1.msra.mxu0 0.0
    %1530 = vmatprep.subr.mxu0 0.0
    %1531 = vmatpush1.msra.mxu0 0.0
    %1532 = vmatprep.subr.mxu0 0.0
    %1533 = vmatpush1.msra.mxu0 0.0
    %1534 = vmatprep.subr.mxu0 0.0
    %1535 = vmatpush1.msra.mxu0 0.0
    %1536 = vmatprep.subr.mxu0 0.0
    %1537 = vmatpush1.msra.mxu0 0.0
    %1538 = vmatprep.subr.mxu0 0.0
    %1539 = vmatpush1.msra.mxu0 0.0
    %1540 = vmatprep.subr.mxu0 0.0
    %1541 = vmatpush1.msra.mxu0 0.0
    %1542 = vmatprep.subr.mxu0 0.0
    %1543 = vmatpush1.msra.mxu0 0.0
    %1544 = vmatprep.subr.mxu0 0.0
    %1545 = vmatpush1.msra.mxu0 0.0
    %1546 = vmatprep.subr.mxu0 0.0
    %1547 = vmatpush1.msra.mxu0 0.0
    %1548 = vmatprep.subr.mxu0 0.0
    %1549 = vmatpush1.msra.mxu0 0.0
    %1550 = vmatprep.subr.mxu0 0.0
    %1551 = vmatpush1.msra.mxu0 0.0
    %1552 = vmatprep.subr.mxu0 0.0
    %1553 = vmatpush1.msra.mxu0 0.0
    %1554 = vmatprep.subr.mxu0 0.0
    %1555 = vmatpush1.msra.mxu0 0.0
    %1556 = vmatprep.subr.mxu0 0.0
    %1557 = vmatpush1.msra.mxu0 0.0
    %1558 = vmatprep.subr.mxu0 0.0
    %1559 = vmatpush1.msra.mxu0 0.0
    %1560 = vmatprep.subr.mxu0 0.0
    %1561 = vmatpush1.msra.mxu0 0.0
    %1562 = vmatprep.subr.mxu0 0.0
    %1563 = vmatpush1.msra.mxu0 0.0
    %1564 = vmatprep.subr.mxu0 0.0
    %1565 = vmatpush1.msra.mxu0 0.0
    %1566 = vmatprep.subr.mxu0 0.0
    %1567 = vmatpush1.msra.mxu0 0.0
    %1568 = vmatprep.subr.mxu0 0.0
    %1569 = vmatpush1.msra.mxu0 0.0
    %1570 = vmatprep.subr.mxu0 0.0
    %1571 = vmatpush1.msra.mxu0 0.0
    %1572 = vmatprep.mubr.f32.mxu0 0.0
    %1573 = vmatmul.mubr.f32.gmra.mrb[0].mxu0 %v1506
    %v1574 = vpop.f32.mrb[0].mxu0
    %v1575 = vadd.f32 0.0, %v1574
    %v1576 = vpop.f32.mrb[0].mxu0
    %1577 = vdwg.mxu0
    %v1578 = vadd.f32 %v1505, %v1575
    %v1579 = vxor.u32 %v1578, 2147483648
    %v1580 = vmul.f32 %v1579, 1.442695
    %v1581 = vpow.pop %v1580
    %v1582 = vadd.f32 %v1581, 1.0
    %v1583 = vrcp.pop %v1582
    %v1584 = vmul.f32 1.0, %v1583
    %v1585 = vtanh.pop %v1578
    %v1586 = vmul.f32 %v1584, %v1491
    %1588 = vrot.lane.b32.xlu0 %v1585, 96
    %v1589 = vpop.permute.xlu0 %1588
    %v1591 = vmul.f32 %v1584, %v1589
    %1593 = vrot.lane.b32.xlu0 %v1591, 16
    %v1594 = vpop.permute.xlu0 %1593
    %v1596 = vadd.f32 %v1586, %v1594
    %v1597 = vtanh.pop %v1596
    %1599 = vrot.lane.b32.xlu0 %v1597, 32
    %v1600 = vpop.permute.xlu0 %1599
    %v1602 = vmul.f32 %v1584, %v1600
    %1604 = vrot.lane.b32.xlu0 %v1602, 80
    %v1605 = vpop.permute.xlu0 %1604
    %s1607 = scalar_lea.vmem [#allocation3], 36
    %1608 = vst.msk [vmem:[%s1607] sm:$0xf] %vm662, %v1605
    %s1609 = scalar_lea.vmem [#allocation2], 40
    %v1610 = vld [vmem:[%s1609] sm:$0xf]
    %v1611 = vsel %vm412, %v1605, 0
    %1613 = vmatprep.subr.mxu0 0.0
    %1614 = vmatpush1.msra.mxu0 %v557
    %1615 = vmatprep.subr.mxu0 0.0
    %1616 = vmatpush1.msra.mxu0 %v558
    %1617 = vmatprep.subr.mxu0 0.0
    %1618 = vmatpush1.msra.mxu0 0.0
    %1619 = vmatprep.subr.mxu0 0.0
    %1620 = vmatpush1.msra.mxu0 0.0
    %1621 = vmatprep.subr.mxu0 0.0
    %1622 = vmatpush1.msra.mxu0 0.0
    %1623 = vmatprep.subr.mxu0 0.0
    %1624 = vmatpush1.msra.mxu0 0.0
    %1625 = vmatprep.subr.mxu0 0.0
    %1626 = vmatpush1.msra.mxu0 0.0
    %1627 = vmatprep.subr.mxu0 0.0
    %1628 = vmatpush1.msra.mxu0 0.0
    %1629 = vmatprep.subr.mxu0 0.0
    %1630 = vmatpush1.msra.mxu0 0.0
    %1631 = vmatprep.subr.mxu0 0.0
    %1632 = vmatpush1.msra.mxu0 0.0
    %1633 = vmatprep.subr.mxu0 0.0
    %1634 = vmatpush1.msra.mxu0 0.0
    %1635 = vmatprep.subr.mxu0 0.0
    %1636 = vmatpush1.msra.mxu0 0.0
    %1637 = vmatprep.subr.mxu0 0.0
    %1638 = vmatpush1.msra.mxu0 0.0
    %1639 = vmatprep.subr.mxu0 0.0
    %1640 = vmatpush1.msra.mxu0 0.0
    %1641 = vmatprep.subr.mxu0 0.0
    %1642 = vmatpush1.msra.mxu0 0.0
    %1643 = vmatprep.subr.mxu0 0.0
    %1644 = vmatpush1.msra.mxu0 0.0
    %1645 = vmatprep.subr.mxu0 0.0
    %1646 = vmatpush1.msra.mxu0 0.0
    %1647 = vmatprep.subr.mxu0 0.0
    %1648 = vmatpush1.msra.mxu0 0.0
    %1649 = vmatprep.subr.mxu0 0.0
    %1650 = vmatpush1.msra.mxu0 0.0
    %1651 = vmatprep.subr.mxu0 0.0
    %1652 = vmatpush1.msra.mxu0 0.0
    %1653 = vmatprep.subr.mxu0 0.0
    %1654 = vmatpush1.msra.mxu0 0.0
    %1655 = vmatprep.subr.mxu0 0.0
    %1656 = vmatpush1.msra.mxu0 0.0
    %1657 = vmatprep.subr.mxu0 0.0
    %1658 = vmatpush1.msra.mxu0 0.0
    %1659 = vmatprep.subr.mxu0 0.0
    %1660 = vmatpush1.msra.mxu0 0.0
    %1661 = vmatprep.subr.mxu0 0.0
    %1662 = vmatpush1.msra.mxu0 0.0
    %1663 = vmatprep.subr.mxu0 0.0
    %1664 = vmatpush1.msra.mxu0 0.0
    %1665 = vmatprep.subr.mxu0 0.0
    %1666 = vmatpush1.msra.mxu0 0.0
    %1667 = vmatprep.subr.mxu0 0.0
    %1668 = vmatpush1.msra.mxu0 0.0
    %1669 = vmatprep.subr.mxu0 0.0
    %1670 = vmatpush1.msra.mxu0 0.0
    %1671 = vmatprep.subr.mxu0 0.0
    %1672 = vmatpush1.msra.mxu0 0.0
    %1673 = vmatprep.subr.mxu0 0.0
    %1674 = vmatpush1.msra.mxu0 0.0
    %1675 = vmatprep.subr.mxu0 0.0
    %1676 = vmatpush1.msra.mxu0 0.0
    %1677 = vmatprep.mubr.f32.mxu0 0.0
    %1678 = vmatmul.mubr.f32.gmra.mrb[0].mxu0 %v1611
    %v1679 = vpop.f32.mrb[0].mxu0
    %v1680 = vadd.f32 0.0, %v1679
    %v1681 = vpop.f32.mrb[0].mxu0
    %1682 = vdwg.mxu0
    %v1683 = vadd.f32 %v1610, %v1680
    %v1684 = vxor.u32 %v1683, 2147483648
    %v1685 = vmul.f32 %v1684, 1.442695
    %v1686 = vpow.pop %v1685
    %v1687 = vadd.f32 %v1686, 1.0
    %v1688 = vrcp.pop %v1687
    %v1689 = vmul.f32 1.0, %v1688
    %v1690 = vtanh.pop %v1683
    %v1691 = vmul.f32 %v1689, %v1596
    %1693 = vrot.lane.b32.xlu0 %v1690, 96
    %v1694 = vpop.permute.xlu0 %1693
    %v1696 = vmul.f32 %v1689, %v1694
    %1698 = vrot.lane.b32.xlu0 %v1696, 16
    %v1699 = vpop.permute.xlu0 %1698
    %v1701 = vadd.f32 %v1691, %v1699
    %v1702 = vtanh.pop %v1701
    %1704 = vrot.lane.b32.xlu0 %v1702, 32
    %v1705 = vpop.permute.xlu0 %1704
    %v1707 = vmul.f32 %v1689, %v1705
    %1709 = vrot.lane.b32.xlu0 %v1707, 80
    %v1710 = vpop.permute.xlu0 %1709
    %s1712 = scalar_lea.vmem [#allocation3], 40
    %1713 = vst.msk [vmem:[%s1712] sm:$0xf] %vm662, %v1710
    %s1714 = scalar_lea.vmem [#allocation2], 44
    %v1715 = vld [vmem:[%s1714] sm:$0xf]
    %v1716 = vsel %vm412, %v1710, 0
    %1718 = vmatprep.subr.mxu0 0.0
    %1719 = vmatpush1.msra.mxu0 %v557
    %1720 = vmatprep.subr.mxu0 0.0
    %1721 = vmatpush1.msra.mxu0 %v558
    %1722 = vmatprep.subr.mxu0 0.0
    %1723 = vmatpush1.msra.mxu0 0.0
    %1724 = vmatprep.subr.mxu0 0.0
    %1725 = vmatpush1.msra.mxu0 0.0
    %1726 = vmatprep.subr.mxu0 0.0
    %1727 = vmatpush1.msra.mxu0 0.0
    %1728 = vmatprep.subr.mxu0 0.0
    %1729 = vmatpush1.msra.mxu0 0.0
    %1730 = vmatprep.subr.mxu0 0.0
    %1731 = vmatpush1.msra.mxu0 0.0
    %1732 = vmatprep.subr.mxu0 0.0
    %1733 = vmatpush1.msra.mxu0 0.0
    %1734 = vmatprep.subr.mxu0 0.0
    %1735 = vmatpush1.msra.mxu0 0.0
    %1736 = vmatprep.subr.mxu0 0.0
    %1737 = vmatpush1.msra.mxu0 0.0
    %1738 = vmatprep.subr.mxu0 0.0
    %1739 = vmatpush1.msra.mxu0 0.0
    %1740 = vmatprep.subr.mxu0 0.0
    %1741 = vmatpush1.msra.mxu0 0.0
    %1742 = vmatprep.subr.mxu0 0.0
    %1743 = vmatpush1.msra.mxu0 0.0
    %1744 = vmatprep.subr.mxu0 0.0
    %1745 = vmatpush1.msra.mxu0 0.0
    %1746 = vmatprep.subr.mxu0 0.0
    %1747 = vmatpush1.msra.mxu0 0.0
    %1748 = vmatprep.subr.mxu0 0.0
    %1749 = vmatpush1.msra.mxu0 0.0
    %1750 = vmatprep.subr.mxu0 0.0
    %1751 = vmatpush1.msra.mxu0 0.0
    %1752 = vmatprep.subr.mxu0 0.0
    %1753 = vmatpush1.msra.mxu0 0.0
    %1754 = vmatprep.subr.mxu0 0.0
    %1755 = vmatpush1.msra.mxu0 0.0
    %1756 = vmatprep.subr.mxu0 0.0
    %1757 = vmatpush1.msra.mxu0 0.0
    %1758 = vmatprep.subr.mxu0 0.0
    %1759 = vmatpush1.msra.mxu0 0.0
    %1760 = vmatprep.subr.mxu0 0.0
    %1761 = vmatpush1.msra.mxu0 0.0
    %1762 = vmatprep.subr.mxu0 0.0
    %1763 = vmatpush1.msra.mxu0 0.0
    %1764 = vmatprep.subr.mxu0 0.0
    %1765 = vmatpush1.msra.mxu0 0.0
    %1766 = vmatprep.subr.mxu0 0.0
    %1767 = vmatpush1.msra.mxu0 0.0
    %1768 = vmatprep.subr.mxu0 0.0
    %1769 = vmatpush1.msra.mxu0 0.0
    %1770 = vmatprep.subr.mxu0 0.0
    %1771 = vmatpush1.msra.mxu0 0.0
    %1772 = vmatprep.subr.mxu0 0.0
    %1773 = vmatpush1.msra.mxu0 0.0
    %1774 = vmatprep.subr.mxu0 0.0
    %1775 = vmatpush1.msra.mxu0 0.0
    %1776 = vmatprep.subr.mxu0 0.0
    %1777 = vmatpush1.msra.mxu0 0.0
    %1778 = vmatprep.subr.mxu0 0.0
    %1779 = vmatpush1.msra.mxu0 0.0
    %1780 = vmatprep.subr.mxu0 0.0
    %1781 = vmatpush1.msra.mxu0 0.0
    %1782 = vmatprep.mubr.f32.mxu0 0.0
    %1783 = vmatmul.mubr.f32.gmra.mrb[0].mxu0 %v1716
    %v1784 = vpop.f32.mrb[0].mxu0
    %v1785 = vadd.f32 0.0, %v1784
    %v1786 = vpop.f32.mrb[0].mxu0
    %1787 = vdwg.mxu0
    %v1788 = vadd.f32 %v1715, %v1785
    %v1789 = vxor.u32 %v1788, 2147483648
    %v1790 = vmul.f32 %v1789, 1.442695
    %v1791 = vpow.pop %v1790
    %v1792 = vadd.f32 %v1791, 1.0
    %v1793 = vrcp.pop %v1792
    %v1794 = vmul.f32 1.0, %v1793
    %v1795 = vtanh.pop %v1788
    %v1796 = vmul.f32 %v1794, %v1701
    %1798 = vrot.lane.b32.xlu0 %v1795, 96
    %v1799 = vpop.permute.xlu0 %1798
    %v1801 = vmul.f32 %v1794, %v1799
    %1803 = vrot.lane.b32.xlu0 %v1801, 16
    %v1804 = vpop.permute.xlu0 %1803
    %v1806 = vadd.f32 %v1796, %v1804
    %v1807 = vtanh.pop %v1806
    %1809 = vrot.lane.b32.xlu0 %v1807, 32
    %v1810 = vpop.permute.xlu0 %1809
    %v1812 = vmul.f32 %v1794, %v1810
    %1814 = vrot.lane.b32.xlu0 %v1812, 80
    %v1815 = vpop.permute.xlu0 %1814
    %s1817 = scalar_lea.vmem [#allocation3], 44
    %1818 = vst.msk [vmem:[%s1817] sm:$0xf] %vm662, %v1815
    %v1819 = vld [vmem:[#allocation3] sm:$0xf]
    %v1820 = vld [vmem:[#allocation3 + $0x4] sm:$0xf]
    %v1821 = vld [vmem:[#allocation3 + $0x8] sm:$0xf]
    %v1822 = vld [vmem:[#allocation3 + $0xc] sm:$0xf]
    %v1823 = vld [vmem:[#allocation3 + $0x10] sm:$0xf]
    %v1824 = vld [vmem:[#allocation3 + $0x14] sm:$0xf]
    %v1825 = vld [vmem:[#allocation3 + $0x18] sm:$0xf]
    %v1826 = vld [vmem:[#allocation3 + $0x1c] sm:$0xf]
    %v1827 = vld [vmem:[#allocation3 + $0x20] sm:$0xf]
    %v1828 = vld [vmem:[#allocation3 + $0x24] sm:$0xf]
    %v1829 = vld [vmem:[#allocation3 + $0x28] sm:$0xf]
    %v1830 = vld [vmem:[#allocation3 + $0x2c] sm:$0xf]
    %v1831 = vld [vmem:[%s1817] sm:$0xf]
    %v1832 = vld [vmem:[%s1712] sm:$0xf]
    %v1833 = vld [vmem:[%s1607] sm:$0xf]
    %v1834 = vld [vmem:[%s1502] sm:$0xf]
    %v1835 = vld [vmem:[%s1397] sm:$0xf]
    %v1836 = vld [vmem:[%s1292] sm:$0xf]
    %v1837 = vld [vmem:[%s1187] sm:$0xf]
    %v1838 = vld [vmem:[%s1082] sm:$0xf]
    %v1839 = vld [vmem:[%s977] sm:$0xf]
    %v1840 = vld [vmem:[%s872] sm:$0xf]
    %v1841 = vld [vmem:[%s767] sm:$0xf]
    %1854 = vrot.lane.b32.xlu0 %v1831, 16
    %v1855 = vpop.permute.xlu0 %1854
    %1856 = vrot.lane.b32.xlu0 %v1832, 16
    %v1857 = vpop.permute.xlu0 %1856
    %1858 = vrot.lane.b32.xlu0 %v1833, 16
    %v1859 = vpop.permute.xlu0 %1858
    %1860 = vrot.lane.b32.xlu0 %v1834, 16
    %v1861 = vpop.permute.xlu0 %1860
    %1862 = vrot.lane.b32.xlu0 %v1835, 16
    %v1863 = vpop.permute.xlu0 %1862
    %1864 = vrot.lane.b32.xlu0 %v1836, 16
    %v1865 = vpop.permute.xlu0 %1864
    %1866 = vrot.lane.b32.xlu0 %v1837, 16
    %v1867 = vpop.permute.xlu0 %1866
    %1868 = vrot.lane.b32.xlu0 %v1838, 16
    %v1869 = vpop.permute.xlu0 %1868
    %1870 = vrot.lane.b32.xlu0 %v1839, 16
    %v1871 = vpop.permute.xlu0 %1870
    %1872 = vrot.lane.b32.xlu0 %v1840, 16
    %v1873 = vpop.permute.xlu0 %1872
    %1874 = vrot.lane.b32.xlu0 %v1841, 16
    %v1875 = vpop.permute.xlu0 %1874
    %1876 = vrot.lane.b32.xlu0 %v1819, 16
    %v1877 = vpop.permute.xlu0 %1876
    %v1890 = vsel %vm412, %v1819, %v1855
    %v1891 = vsel %vm412, %v1820, %v1857
    %v1892 = vsel %vm412, %v1821, %v1859
    %v1893 = vsel %vm412, %v1822, %v1861
    %v1894 = vsel %vm412, %v1823, %v1863
    %v1895 = vsel %vm412, %v1824, %v1865
    %v1896 = vsel %vm412, %v1825, %v1867
    %v1897 = vsel %vm412, %v1826, %v1869
    %v1898 = vsel %vm412, %v1827, %v1871
    %v1899 = vsel %vm412, %v1828, %v1873
    %v1900 = vsel %vm412, %v1829, %v1875
    %v1901 = vsel %vm412, %v1830, %v1877
    %v1902 = vld [vmem:[%s6] sm:$0xff]
    %v1903 = vld [vmem:[%s6 + $0x8] sm:$0xff]
    %v1904 = vld [vmem:[%s6 + $0x10] sm:$0xff]
    %v1905 = vld [vmem:[%s6 + $0x18] sm:$0xff]
    %v1906 = vld [vmem:[%s8] sm:$0x1]
    %v1908 = vlaneseq
    %v1909 = vshrl.u32 %v1908, 7
    %v1910 = vsub.s32 0, %v1909
    %v1911 = vrot.slane %v1906, %v1910
    %v1925 = vcombine.low %v1890, %v1891
    %v1926 = vcombine.low %v1892, %v1893
    %v1927 = vcombine.low %v1894, %v1895
    %v1928 = vcombine.low %v1896, %v1897
    %v1929 = vcombine.low %v1898, %v1899
    %v1930 = vcombine.low %v1900, %v1901
    %vm1931 = vcmask 261120
    %v1932 = vsel %vm1931, %v1925, 0
    %v1934 = vsel %vm1931, %v1926, 0
    %v1936 = vsel %vm1931, %v1927, 0
    %v1938 = vsel %vm1931, %v1928, 0
    %v1940 = vsel %vm1931, %v1929, 0
    %v1942 = vsel %vm1931, %v1930, 0
    %1944 = vmatprep.subr.mxu0 0.0
    %1945 = vmatpush1.msra.mxu0 %v1902
    %1946 = vmatprep.subr.mxu0 0.0
    %1947 = vmatpush1.msra.mxu0 %v1903
    %1948 = vmatprep.subr.mxu0 0.0
    %1949 = vmatpush1.msra.mxu0 %v1904
    %1950 = vmatprep.subr.mxu0 0.0
    %1951 = vmatpush1.msra.mxu0 %v1905
    %1952 = vmatprep.subr.mxu0 0.0
    %1953 = vmatpush1.msra.mxu0 0.0
    %1954 = vmatprep.subr.mxu0 0.0
    %1955 = vmatpush1.msra.mxu0 0.0
    %1956 = vmatprep.subr.mxu0 0.0
    %1957 = vmatpush1.msra.mxu0 0.0
    %1958 = vmatprep.subr.mxu0 0.0
    %1959 = vmatpush1.msra.mxu0 0.0
    %1960 = vmatprep.subr.mxu0 0.0
    %1961 = vmatpush1.msra.mxu0 0.0
    %1962 = vmatprep.subr.mxu0 0.0
    %1963 = vmatpush1.msra.mxu0 0.0
    %1964 = vmatprep.subr.mxu0 0.0
    %1965 = vmatpush1.msra.mxu0 0.0
    %1966 = vmatprep.subr.mxu0 0.0
    %1967 = vmatpush1.msra.mxu0 0.0
    %1968 = vmatprep.subr.mxu0 0.0
    %1969 = vmatpush1.msra.mxu0 0.0
    %1970 = vmatprep.subr.mxu0 0.0
    %1971 = vmatpush1.msra.mxu0 0.0
    %1972 = vmatprep.subr.mxu0 0.0
    %1973 = vmatpush1.msra.mxu0 0.0
    %1974 = vmatprep.subr.mxu0 0.0
    %1975 = vmatpush1.msra.mxu0 0.0
    %1976 = vmatprep.subr.mxu0 0.0
    %1977 = vmatpush1.msra.mxu0 0.0
    %1978 = vmatprep.subr.mxu0 0.0
    %1979 = vmatpush1.msra.mxu0 0.0
    %1980 = vmatprep.subr.mxu0 0.0
    %1981 = vmatpush1.msra.mxu0 0.0
    %1982 = vmatprep.subr.mxu0 0.0
    %1983 = vmatpush1.msra.mxu0 0.0
    %1984 = vmatprep.subr.mxu0 0.0
    %1985 = vmatpush1.msra.mxu0 0.0
    %1986 = vmatprep.subr.mxu0 0.0
    %1987 = vmatpush1.msra.mxu0 0.0
    %1988 = vmatprep.subr.mxu0 0.0
    %1989 = vmatpush1.msra.mxu0 0.0
    %1990 = vmatprep.subr.mxu0 0.0
    %1991 = vmatpush1.msra.mxu0 0.0
    %1992 = vmatprep.subr.mxu0 0.0
    %1993 = vmatpush1.msra.mxu0 0.0
    %1994 = vmatprep.subr.mxu0 0.0
    %1995 = vmatpush1.msra.mxu0 0.0
    %1996 = vmatprep.subr.mxu0 0.0
    %1997 = vmatpush1.msra.mxu0 0.0
    %1998 = vmatprep.subr.mxu0 0.0
    %1999 = vmatpush1.msra.mxu0 0.0
    %2000 = vmatprep.subr.mxu0 0.0
    %2001 = vmatpush1.msra.mxu0 0.0
    %2002 = vmatprep.subr.mxu0 0.0
    %2003 = vmatpush1.msra.mxu0 0.0
    %2004 = vmatprep.subr.mxu0 0.0
    %2005 = vmatpush1.msra.mxu0 0.0
    %2006 = vmatprep.subr.mxu0 0.0
    %2007 = vmatpush1.msra.mxu0 0.0
    %2008 = vmatprep.mubr.f32.mxu0 0.0
    %2009 = vmatmul.mubr.f32.gmra.mrb[0].mxu0 %v1932
    %v2010 = vpop.f32.mrb[0].mxu0
    %v2011 = vadd.f32 %v1911, %v2010
    %v2012 = vpop.f32.mrb[0].mxu0
    %2013 = vmatprep.mubr.f32.mxu0 0.0
    %2014 = vmatmul.mubr.f32.gmra.mrb[0].mxu0 %v1934
    %v2015 = vpop.f32.mrb[0].mxu0
    %v2016 = vadd.f32 %v1911, %v2015
    %v2017 = vpop.f32.mrb[0].mxu0
    %2018 = vmatprep.mubr.f32.mxu0 0.0
    %2019 = vmatmul.mubr.f32.gmra.mrb[0].mxu0 %v1936
    %v2020 = vpop.f32.mrb[0].mxu0
    %v2021 = vadd.f32 %v1911, %v2020
    %v2022 = vpop.f32.mrb[0].mxu0
    %2023 = vmatprep.mubr.f32.mxu0 0.0
    %2024 = vmatmul.mubr.f32.gmra.mrb[0].mxu0 %v1938
    %v2025 = vpop.f32.mrb[0].mxu0
    %v2026 = vadd.f32 %v1911, %v2025
    %v2027 = vpop.f32.mrb[0].mxu0
    %2028 = vmatprep.mubr.f32.mxu0 0.0
    %2029 = vmatmul.mubr.f32.gmra.mrb[0].mxu0 %v1940
    %v2030 = vpop.f32.mrb[0].mxu0
    %v2031 = vadd.f32 %v1911, %v2030
    %v2032 = vpop.f32.mrb[0].mxu0
    %2033 = vmatprep.mubr.f32.mxu0 0.0
    %2034 = vmatmul.mubr.f32.gmra.mrb[0].mxu0 %v1942
    %v2035 = vpop.f32.mrb[0].mxu0
    %v2036 = vadd.f32 %v1911, %v2035
    %v2037 = vpop.f32.mrb[0].mxu0
    %2038 = vdwg.mxu0
    %v2045 = vcombine.high %v2011, %v2011
    %v2046 = vcombine.high %v2016, %v2016
    %v2047 = vcombine.high %v2021, %v2021
    %v2048 = vcombine.high %v2026, %v2026
    %v2049 = vcombine.high %v2031, %v2031
    %v2050 = vcombine.high %v2036, %v2036
    %2057 = vst.msk [vmem:[#allocation2] sm:$0xf] %vm544, %v2011
    %2058 = vst.msk [vmem:[#allocation2 + $0x4] sm:$0xf] %vm544, %v2045
    %2059 = vst.msk [vmem:[#allocation2 + $0x8] sm:$0xf] %vm544, %v2016
    %2060 = vst.msk [vmem:[#allocation2 + $0xc] sm:$0xf] %vm544, %v2046
    %2061 = vst.msk [vmem:[#allocation2 + $0x10] sm:$0xf] %vm544, %v2021
    %2062 = vst.msk [vmem:[#allocation2 + $0x14] sm:$0xf] %vm544, %v2047
    %2063 = vst.msk [vmem:[#allocation2 + $0x18] sm:$0xf] %vm544, %v2026
    %2064 = vst.msk [vmem:[#allocation2 + $0x1c] sm:$0xf] %vm544, %v2048
    %2065 = vst.msk [vmem:[#allocation2 + $0x20] sm:$0xf] %vm544, %v2031
    %2066 = vst.msk [vmem:[#allocation2 + $0x24] sm:$0xf] %vm544, %v2049
    %2067 = vst.msk [vmem:[#allocation2 + $0x28] sm:$0xf] %vm544, %v2036
    %2068 = vst.msk [vmem:[#allocation2 + $0x2c] sm:$0xf] %vm544, %v2050
    %v2069 = vld [vmem:[%s7] sm:$0xff]
    %v2070 = vld [vmem:[%s7 + $0x8] sm:$0xff]
    %v2071 = vld [vmem:[#allocation2] sm:$0xf]
    %2072 = vmatprep.subr.mxu0 0.0
    %2073 = vmatpush1.msra.mxu0 %v2069
    %2074 = vmatprep.subr.mxu0 0.0
    %2075 = vmatpush1.msra.mxu0 %v2070
    %2076 = vmatprep.subr.mxu0 0.0
    %2077 = vmatpush1.msra.mxu0 0.0
    %2078 = vmatprep.subr.mxu0 0.0
    %2079 = vmatpush1.msra.mxu0 0.0
    %2080 = vmatprep.subr.mxu0 0.0
    %2081 = vmatpush1.msra.mxu0 0.0
    %2082 = vmatprep.subr.mxu0 0.0
    %2083 = vmatpush1.msra.mxu0 0.0
    %2084 = vmatprep.subr.mxu0 0.0
    %2085 = vmatpush1.msra.mxu0 0.0
    %2086 = vmatprep.subr.mxu0 0.0
    %2087 = vmatpush1.msra.mxu0 0.0
    %2088 = vmatprep.subr.mxu0 0.0
    %2089 = vmatpush1.msra.mxu0 0.0
    %2090 = vmatprep.subr.mxu0 0.0
    %2091 = vmatpush1.msra.mxu0 0.0
    %2092 = vmatprep.subr.mxu0 0.0
    %2093 = vmatpush1.msra.mxu0 0.0
    %2094 = vmatprep.subr.mxu0 0.0
    %2095 = vmatpush1.msra.mxu0 0.0
    %2096 = vmatprep.subr.mxu0 0.0
    %2097 = vmatpush1.msra.mxu0 0.0
    %2098 = vmatprep.subr.mxu0 0.0
    %2099 = vmatpush1.msra.mxu0 0.0
    %2100 = vmatprep.subr.mxu0 0.0
    %2101 = vmatpush1.msra.mxu0 0.0
    %2102 = vmatprep.subr.mxu0 0.0
    %2103 = vmatpush1.msra.mxu0 0.0
    %2104 = vmatprep.subr.mxu0 0.0
    %2105 = vmatpush1.msra.mxu0 0.0
    %2106 = vmatprep.subr.mxu0 0.0
    %2107 = vmatpush1.msra.mxu0 0.0
    %2108 = vmatprep.subr.mxu0 0.0
    %2109 = vmatpush1.msra.mxu0 0.0
    %2110 = vmatprep.subr.mxu0 0.0
    %2111 = vmatpush1.msra.mxu0 0.0
    %2112 = vmatprep.subr.mxu0 0.0
    %2113 = vmatpush1.msra.mxu0 0.0
    %2114 = vmatprep.subr.mxu0 0.0
    %2115 = vmatpush1.msra.mxu0 0.0
    %2116 = vmatprep.subr.mxu0 0.0
    %2117 = vmatpush1.msra.mxu0 0.0
    %2118 = vmatprep.subr.mxu0 0.0
    %2119 = vmatpush1.msra.mxu0 0.0
    %2120 = vmatprep.subr.mxu0 0.0
    %2121 = vmatpush1.msra.mxu0 0.0
    %2122 = vmatprep.subr.mxu0 0.0
    %2123 = vmatpush1.msra.mxu0 0.0
    %2124 = vmatprep.subr.mxu0 0.0
    %2125 = vmatpush1.msra.mxu0 0.0
    %2126 = vmatprep.subr.mxu0 0.0
    %2127 = vmatpush1.msra.mxu0 0.0
    %2128 = vmatprep.subr.mxu0 0.0
    %2129 = vmatpush1.msra.mxu0 0.0
    %2130 = vmatprep.subr.mxu0 0.0
    %2131 = vmatpush1.msra.mxu0 0.0
    %2132 = vmatprep.subr.mxu0 0.0
    %2133 = vmatpush1.msra.mxu0 0.0
    %2134 = vmatprep.subr.mxu0 0.0
    %2135 = vmatpush1.msra.mxu0 0.0
    %2136 = vmatprep.mubr.f32.mxu0 0.0
    %2137 = vmatmul.mubr.f32.gmra.mrb[0].mxu0 %v561
    %v2138 = vpop.f32.mrb[0].mxu0
    %v2139 = vadd.f32 0.0, %v2138
    %v2140 = vpop.f32.mrb[0].mxu0
    %2141 = vdwg.mxu0
    %v2142 = vadd.f32 %v2071, %v2139
    %v2143 = vxor.u32 %v2142, 2147483648
    %v2144 = vmul.f32 %v2143, 1.442695
    %v2145 = vpow.pop %v2144
    %v2146 = vadd.f32 %v2145, 1.0
    %v2147 = vrcp.pop %v2146
    %v2148 = vmul.f32 1.0, %v2147
    %v2149 = vtanh.pop %v2142
    %v2150 = vmul.f32 %v2148, 0.0
    %2152 = vrot.lane.b32.xlu0 %v2149, 96
    %v2153 = vpop.permute.xlu0 %2152
    %v2155 = vmul.f32 %v2148, %v2153
    %2157 = vrot.lane.b32.xlu0 %v2155, 16
    %v2158 = vpop.permute.xlu0 %2157
    %v2160 = vadd.f32 %v2150, %v2158
    %v2161 = vtanh.pop %v2160
    %2163 = vrot.lane.b32.xlu0 %v2161, 32
    %v2164 = vpop.permute.xlu0 %2163
    %v2166 = vmul.f32 %v2148, %v2164
    %v2167 = vld [vmem:[%s664] sm:$0xf]
    %2169 = vrot.lane.b32.xlu0 %v2166, 80
    %v2170 = vpop.permute.xlu0 %2169
    %v2171 = vsel %vm412, %v2170, 0
    %2173 = vmatprep.subr.mxu0 0.0
    %2174 = vmatpush1.msra.mxu0 %v2069
    %2175 = vmatprep.subr.mxu0 0.0
    %2176 = vmatpush1.msra.mxu0 %v2070
    %2177 = vmatprep.subr.mxu0 0.0
    %2178 = vmatpush1.msra.mxu0 0.0
    %2179 = vmatprep.subr.mxu0 0.0
    %2180 = vmatpush1.msra.mxu0 0.0
    %2181 = vmatprep.subr.mxu0 0.0
    %2182 = vmatpush1.msra.mxu0 0.0
    %2183 = vmatprep.subr.mxu0 0.0
    %2184 = vmatpush1.msra.mxu0 0.0
    %2185 = vmatprep.subr.mxu0 0.0
    %2186 = vmatpush1.msra.mxu0 0.0
    %2187 = vmatprep.subr.mxu0 0.0
    %2188 = vmatpush1.msra.mxu0 0.0
    %2189 = vmatprep.subr.mxu0 0.0
    %2190 = vmatpush1.msra.mxu0 0.0
    %2191 = vmatprep.subr.mxu0 0.0
    %2192 = vmatpush1.msra.mxu0 0.0
    %2193 = vmatprep.subr.mxu0 0.0
    %2194 = vmatpush1.msra.mxu0 0.0
    %2195 = vmatprep.subr.mxu0 0.0
    %2196 = vmatpush1.msra.mxu0 0.0
    %2197 = vmatprep.subr.mxu0 0.0
    %2198 = vmatpush1.msra.mxu0 0.0
    %2199 = vmatprep.subr.mxu0 0.0
    %2200 = vmatpush1.msra.mxu0 0.0
    %2201 = vmatprep.subr.mxu0 0.0
    %2202 = vmatpush1.msra.mxu0 0.0
    %2203 = vmatprep.subr.mxu0 0.0
    %2204 = vmatpush1.msra.mxu0 0.0
    %2205 = vmatprep.subr.mxu0 0.0
    %2206 = vmatpush1.msra.mxu0 0.0
    %2207 = vmatprep.subr.mxu0 0.0
    %2208 = vmatpush1.msra.mxu0 0.0
    %2209 = vmatprep.subr.mxu0 0.0
    %2210 = vmatpush1.msra.mxu0 0.0
    %2211 = vmatprep.subr.mxu0 0.0
    %2212 = vmatpush1.msra.mxu0 0.0
    %2213 = vmatprep.subr.mxu0 0.0
    %2214 = vmatpush1.msra.mxu0 0.0
    %2215 = vmatprep.subr.mxu0 0.0
    %2216 = vmatpush1.msra.mxu0 0.0
    %2217 = vmatprep.subr.mxu0 0.0
    %2218 = vmatpush1.msra.mxu0 0.0
    %2219 = vmatprep.subr.mxu0 0.0
    %2220 = vmatpush1.msra.mxu0 0.0
    %2221 = vmatprep.subr.mxu0 0.0
    %2222 = vmatpush1.msra.mxu0 0.0
    %2223 = vmatprep.subr.mxu0 0.0
    %2224 = vmatpush1.msra.mxu0 0.0
    %2225 = vmatprep.subr.mxu0 0.0
    %2226 = vmatpush1.msra.mxu0 0.0
    %2227 = vmatprep.subr.mxu0 0.0
    %2228 = vmatpush1.msra.mxu0 0.0
    %2229 = vmatprep.subr.mxu0 0.0
    %2230 = vmatpush1.msra.mxu0 0.0
    %2231 = vmatprep.subr.mxu0 0.0
    %2232 = vmatpush1.msra.mxu0 0.0
    %2233 = vmatprep.subr.mxu0 0.0
    %2234 = vmatpush1.msra.mxu0 0.0
    %2235 = vmatprep.subr.mxu0 0.0
    %2236 = vmatpush1.msra.mxu0 0.0
    %2237 = vmatprep.mubr.f32.mxu0 0.0
    %2238 = vmatmul.mubr.f32.gmra.mrb[0].mxu0 %v2171
    %v2239 = vpop.f32.mrb[0].mxu0
    %v2240 = vadd.f32 0.0, %v2239
    %v2241 = vpop.f32.mrb[0].mxu0
    %2242 = vdwg.mxu0
    %v2243 = vadd.f32 %v2167, %v2240
    %v2244 = vxor.u32 %v2243, 2147483648
    %v2245 = vmul.f32 %v2244, 1.442695
    %v2246 = vpow.pop %v2245
    %v2247 = vadd.f32 %v2246, 1.0
    %v2248 = vrcp.pop %v2247
    %v2249 = vmul.f32 1.0, %v2248
    %v2250 = vtanh.pop %v2243
    %v2251 = vmul.f32 %v2249, %v2160
    %2253 = vrot.lane.b32.xlu0 %v2250, 96
    %v2254 = vpop.permute.xlu0 %2253
    %v2256 = vmul.f32 %v2249, %v2254
    %2258 = vrot.lane.b32.xlu0 %v2256, 16
    %v2259 = vpop.permute.xlu0 %2258
    %v2261 = vadd.f32 %v2251, %v2259
    %v2262 = vtanh.pop %v2261
    %2264 = vrot.lane.b32.xlu0 %v2262, 32
    %v2265 = vpop.permute.xlu0 %2264
    %v2267 = vmul.f32 %v2249, %v2265
    %v2268 = vld [vmem:[%s769] sm:$0xf]
    %2270 = vrot.lane.b32.xlu0 %v2267, 80
    %v2271 = vpop.permute.xlu0 %2270
    %v2272 = vsel %vm412, %v2271, 0
    %2274 = vmatprep.subr.mxu0 0.0
    %2275 = vmatpush1.msra.mxu0 %v2069
    %2276 = vmatprep.subr.mxu0 0.0
    %2277 = vmatpush1.msra.mxu0 %v2070
    %2278 = vmatprep.subr.mxu0 0.0
    %2279 = vmatpush1.msra.mxu0 0.0
    %2280 = vmatprep.subr.mxu0 0.0
    %2281 = vmatpush1.msra.mxu0 0.0
    %2282 = vmatprep.subr.mxu0 0.0
    %2283 = vmatpush1.msra.mxu0 0.0
    %2284 = vmatprep.subr.mxu0 0.0
    %2285 = vmatpush1.msra.mxu0 0.0
    %2286 = vmatprep.subr.mxu0 0.0
    %2287 = vmatpush1.msra.mxu0 0.0
    %2288 = vmatprep.subr.mxu0 0.0
    %2289 = vmatpush1.msra.mxu0 0.0
    %2290 = vmatprep.subr.mxu0 0.0
    %2291 = vmatpush1.msra.mxu0 0.0
    %2292 = vmatprep.subr.mxu0 0.0
    %2293 = vmatpush1.msra.mxu0 0.0
    %2294 = vmatprep.subr.mxu0 0.0
    %2295 = vmatpush1.msra.mxu0 0.0
    %2296 = vmatprep.subr.mxu0 0.0
    %2297 = vmatpush1.msra.mxu0 0.0
    %2298 = vmatprep.subr.mxu0 0.0
    %2299 = vmatpush1.msra.mxu0 0.0
    %2300 = vmatprep.subr.mxu0 0.0
    %2301 = vmatpush1.msra.mxu0 0.0
    %2302 = vmatprep.subr.mxu0 0.0
    %2303 = vmatpush1.msra.mxu0 0.0
    %2304 = vmatprep.subr.mxu0 0.0
    %2305 = vmatpush1.msra.mxu0 0.0
    %2306 = vmatprep.subr.mxu0 0.0
    %2307 = vmatpush1.msra.mxu0 0.0
    %2308 = vmatprep.subr.mxu0 0.0
    %2309 = vmatpush1.msra.mxu0 0.0
    %2310 = vmatprep.subr.mxu0 0.0
    %2311 = vmatpush1.msra.mxu0 0.0
    %2312 = vmatprep.subr.mxu0 0.0
    %2313 = vmatpush1.msra.mxu0 0.0
    %2314 = vmatprep.subr.mxu0 0.0
    %2315 = vmatpush1.msra.mxu0 0.0
    %2316 = vmatprep.subr.mxu0 0.0
    %2317 = vmatpush1.msra.mxu0 0.0
    %2318 = vmatprep.subr.mxu0 0.0
    %2319 = vmatpush1.msra.mxu0 0.0
    %2320 = vmatprep.subr.mxu0 0.0
    %2321 = vmatpush1.msra.mxu0 0.0
    %2322 = vmatprep.subr.mxu0 0.0
    %2323 = vmatpush1.msra.mxu0 0.0
    %2324 = vmatprep.subr.mxu0 0.0
    %2325 = vmatpush1.msra.mxu0 0.0
    %2326 = vmatprep.subr.mxu0 0.0
    %2327 = vmatpush1.msra.mxu0 0.0
    %2328 = vmatprep.subr.mxu0 0.0
    %2329 = vmatpush1.msra.mxu0 0.0
    %2330 = vmatprep.subr.mxu0 0.0
    %2331 = vmatpush1.msra.mxu0 0.0
    %2332 = vmatprep.subr.mxu0 0.0
    %2333 = vmatpush1.msra.mxu0 0.0
    %2334 = vmatprep.subr.mxu0 0.0
    %2335 = vmatpush1.msra.mxu0 0.0
    %2336 = vmatprep.subr.mxu0 0.0
    %2337 = vmatpush1.msra.mxu0 0.0
    %2338 = vmatprep.mubr.f32.mxu0 0.0
    %2339 = vmatmul.mubr.f32.gmra.mrb[0].mxu0 %v2272
    %v2340 = vpop.f32.mrb[0].mxu0
    %v2341 = vadd.f32 0.0, %v2340
    %v2342 = vpop.f32.mrb[0].mxu0
    %2343 = vdwg.mxu0
    %v2344 = vadd.f32 %v2268, %v2341
    %v2345 = vxor.u32 %v2344, 2147483648
    %v2346 = vmul.f32 %v2345, 1.442695
    %v2347 = vpow.pop %v2346
    %v2348 = vadd.f32 %v2347, 1.0
    %v2349 = vrcp.pop %v2348
    %v2350 = vmul.f32 1.0, %v2349
    %v2351 = vtanh.pop %v2344
    %v2352 = vmul.f32 %v2350, %v2261
    %2354 = vrot.lane.b32.xlu0 %v2351, 96
    %v2355 = vpop.permute.xlu0 %2354
    %v2357 = vmul.f32 %v2350, %v2355
    %2359 = vrot.lane.b32.xlu0 %v2357, 16
    %v2360 = vpop.permute.xlu0 %2359
    %v2362 = vadd.f32 %v2352, %v2360
    %v2363 = vtanh.pop %v2362
    %2365 = vrot.lane.b32.xlu0 %v2363, 32
    %v2366 = vpop.permute.xlu0 %2365
    %v2368 = vmul.f32 %v2350, %v2366
    %v2369 = vld [vmem:[%s874] sm:$0xf]
    %2371 = vrot.lane.b32.xlu0 %v2368, 80
    %v2372 = vpop.permute.xlu0 %2371
    %v2373 = vsel %vm412, %v2372, 0
    %2375 = vmatprep.subr.mxu0 0.0
    %2376 = vmatpush1.msra.mxu0 %v2069
    %2377 = vmatprep.subr.mxu0 0.0
    %2378 = vmatpush1.msra.mxu0 %v2070
    %2379 = vmatprep.subr.mxu0 0.0
    %2380 = vmatpush1.msra.mxu0 0.0
    %2381 = vmatprep.subr.mxu0 0.0
    %2382 = vmatpush1.msra.mxu0 0.0
    %2383 = vmatprep.subr.mxu0 0.0
    %2384 = vmatpush1.msra.mxu0 0.0
    %2385 = vmatprep.subr.mxu0 0.0
    %2386 = vmatpush1.msra.mxu0 0.0
    %2387 = vmatprep.subr.mxu0 0.0
    %2388 = vmatpush1.msra.mxu0 0.0
    %2389 = vmatprep.subr.mxu0 0.0
    %2390 = vmatpush1.msra.mxu0 0.0
    %2391 = vmatprep.subr.mxu0 0.0
    %2392 = vmatpush1.msra.mxu0 0.0
    %2393 = vmatprep.subr.mxu0 0.0
    %2394 = vmatpush1.msra.mxu0 0.0
    %2395 = vmatprep.subr.mxu0 0.0
    %2396 = vmatpush1.msra.mxu0 0.0
    %2397 = vmatprep.subr.mxu0 0.0
    %2398 = vmatpush1.msra.mxu0 0.0
    %2399 = vmatprep.subr.mxu0 0.0
    %2400 = vmatpush1.msra.mxu0 0.0
    %2401 = vmatprep.subr.mxu0 0.0
    %2402 = vmatpush1.msra.mxu0 0.0
    %2403 = vmatprep.subr.mxu0 0.0
    %2404 = vmatpush1.msra.mxu0 0.0
    %2405 = vmatprep.subr.mxu0 0.0
    %2406 = vmatpush1.msra.mxu0 0.0
    %2407 = vmatprep.subr.mxu0 0.0
    %2408 = vmatpush1.msra.mxu0 0.0
    %2409 = vmatprep.subr.mxu0 0.0
    %2410 = vmatpush1.msra.mxu0 0.0
    %2411 = vmatprep.subr.mxu0 0.0
    %2412 = vmatpush1.msra.mxu0 0.0
    %2413 = vmatprep.subr.mxu0 0.0
    %2414 = vmatpush1.msra.mxu0 0.0
    %2415 = vmatprep.subr.mxu0 0.0
    %2416 = vmatpush1.msra.mxu0 0.0
    %2417 = vmatprep.subr.mxu0 0.0
    %2418 = vmatpush1.msra.mxu0 0.0
    %2419 = vmatprep.subr.mxu0 0.0
    %2420 = vmatpush1.msra.mxu0 0.0
    %2421 = vmatprep.subr.mxu0 0.0
    %2422 = vmatpush1.msra.mxu0 0.0
    %2423 = vmatprep.subr.mxu0 0.0
    %2424 = vmatpush1.msra.mxu0 0.0
    %2425 = vmatprep.subr.mxu0 0.0
    %2426 = vmatpush1.msra.mxu0 0.0
    %2427 = vmatprep.subr.mxu0 0.0
    %2428 = vmatpush1.msra.mxu0 0.0
    %2429 = vmatprep.subr.mxu0 0.0
    %2430 = vmatpush1.msra.mxu0 0.0
    %2431 = vmatprep.subr.mxu0 0.0
    %2432 = vmatpush1.msra.mxu0 0.0
    %2433 = vmatprep.subr.mxu0 0.0
    %2434 = vmatpush1.msra.mxu0 0.0
    %2435 = vmatprep.subr.mxu0 0.0
    %2436 = vmatpush1.msra.mxu0 0.0
    %2437 = vmatprep.subr.mxu0 0.0
    %2438 = vmatpush1.msra.mxu0 0.0
    %2439 = vmatprep.mubr.f32.mxu0 0.0
    %2440 = vmatmul.mubr.f32.gmra.mrb[0].mxu0 %v2373
    %v2441 = vpop.f32.mrb[0].mxu0
    %v2442 = vadd.f32 0.0, %v2441
    %v2443 = vpop.f32.mrb[0].mxu0
    %2444 = vdwg.mxu0
    %v2445 = vadd.f32 %v2369, %v2442
    %v2446 = vxor.u32 %v2445, 2147483648
    %v2447 = vmul.f32 %v2446, 1.442695
    %v2448 = vpow.pop %v2447
    %v2449 = vadd.f32 %v2448, 1.0
    %v2450 = vrcp.pop %v2449
    %v2451 = vmul.f32 1.0, %v2450
    %v2452 = vtanh.pop %v2445
    %v2453 = vmul.f32 %v2451, %v2362
    %2455 = vrot.lane.b32.xlu0 %v2452, 96
    %v2456 = vpop.permute.xlu0 %2455
    %v2458 = vmul.f32 %v2451, %v2456
    %2460 = vrot.lane.b32.xlu0 %v2458, 16
    %v2461 = vpop.permute.xlu0 %2460
    %v2463 = vadd.f32 %v2453, %v2461
    %v2464 = vtanh.pop %v2463
    %2466 = vrot.lane.b32.xlu0 %v2464, 32
    %v2467 = vpop.permute.xlu0 %2466
    %v2469 = vmul.f32 %v2451, %v2467
    %v2470 = vld [vmem:[%s979] sm:$0xf]
    %2472 = vrot.lane.b32.xlu0 %v2469, 80
    %v2473 = vpop.permute.xlu0 %2472
    %v2474 = vsel %vm412, %v2473, 0
    %2476 = vmatprep.subr.mxu0 0.0
    %2477 = vmatpush1.msra.mxu0 %v2069
    %2478 = vmatprep.subr.mxu0 0.0
    %2479 = vmatpush1.msra.mxu0 %v2070
    %2480 = vmatprep.subr.mxu0 0.0
    %2481 = vmatpush1.msra.mxu0 0.0
    %2482 = vmatprep.subr.mxu0 0.0
    %2483 = vmatpush1.msra.mxu0 0.0
    %2484 = vmatprep.subr.mxu0 0.0
    %2485 = vmatpush1.msra.mxu0 0.0
    %2486 = vmatprep.subr.mxu0 0.0
    %2487 = vmatpush1.msra.mxu0 0.0
    %2488 = vmatprep.subr.mxu0 0.0
    %2489 = vmatpush1.msra.mxu0 0.0
    %2490 = vmatprep.subr.mxu0 0.0
    %2491 = vmatpush1.msra.mxu0 0.0
    %2492 = vmatprep.subr.mxu0 0.0
    %2493 = vmatpush1.msra.mxu0 0.0
    %2494 = vmatprep.subr.mxu0 0.0
    %2495 = vmatpush1.msra.mxu0 0.0
    %2496 = vmatprep.subr.mxu0 0.0
    %2497 = vmatpush1.msra.mxu0 0.0
    %2498 = vmatprep.subr.mxu0 0.0
    %2499 = vmatpush1.msra.mxu0 0.0
    %2500 = vmatprep.subr.mxu0 0.0
    %2501 = vmatpush1.msra.mxu0 0.0
    %2502 = vmatprep.subr.mxu0 0.0
    %2503 = vmatpush1.msra.mxu0 0.0
    %2504 = vmatprep.subr.mxu0 0.0
    %2505 = vmatpush1.msra.mxu0 0.0
    %2506 = vmatprep.subr.mxu0 0.0
    %2507 = vmatpush1.msra.mxu0 0.0
    %2508 = vmatprep.subr.mxu0 0.0
    %2509 = vmatpush1.msra.mxu0 0.0
    %2510 = vmatprep.subr.mxu0 0.0
    %2511 = vmatpush1.msra.mxu0 0.0
    %2512 = vmatprep.subr.mxu0 0.0
    %2513 = vmatpush1.msra.mxu0 0.0
    %2514 = vmatprep.subr.mxu0 0.0
    %2515 = vmatpush1.msra.mxu0 0.0
    %2516 = vmatprep.subr.mxu0 0.0
    %2517 = vmatpush1.msra.mxu0 0.0
    %2518 = vmatprep.subr.mxu0 0.0
    %2519 = vmatpush1.msra.mxu0 0.0
    %2520 = vmatprep.subr.mxu0 0.0
    %2521 = vmatpush1.msra.mxu0 0.0
    %2522 = vmatprep.subr.mxu0 0.0
    %2523 = vmatpush1.msra.mxu0 0.0
    %2524 = vmatprep.subr.mxu0 0.0
    %2525 = vmatpush1.msra.mxu0 0.0
    %2526 = vmatprep.subr.mxu0 0.0
    %2527 = vmatpush1.msra.mxu0 0.0
    %2528 = vmatprep.subr.mxu0 0.0
    %2529 = vmatpush1.msra.mxu0 0.0
    %2530 = vmatprep.subr.mxu0 0.0
    %2531 = vmatpush1.msra.mxu0 0.0
    %2532 = vmatprep.subr.mxu0 0.0
    %2533 = vmatpush1.msra.mxu0 0.0
    %2534 = vmatprep.subr.mxu0 0.0
    %2535 = vmatpush1.msra.mxu0 0.0
    %2536 = vmatprep.subr.mxu0 0.0
    %2537 = vmatpush1.msra.mxu0 0.0
    %2538 = vmatprep.subr.mxu0 0.0
    %2539 = vmatpush1.msra.mxu0 0.0
    %2540 = vmatprep.mubr.f32.mxu0 0.0
    %2541 = vmatmul.mubr.f32.gmra.mrb[0].mxu0 %v2474
    %v2542 = vpop.f32.mrb[0].mxu0
    %v2543 = vadd.f32 0.0, %v2542
    %v2544 = vpop.f32.mrb[0].mxu0
    %2545 = vdwg.mxu0
    %v2546 = vadd.f32 %v2470, %v2543
    %v2547 = vxor.u32 %v2546, 2147483648
    %v2548 = vmul.f32 %v2547, 1.442695
    %v2549 = vpow.pop %v2548
    %v2550 = vadd.f32 %v2549, 1.0
    %v2551 = vrcp.pop %v2550
    %v2552 = vmul.f32 1.0, %v2551
    %v2553 = vtanh.pop %v2546
    %v2554 = vmul.f32 %v2552, %v2463
    %2556 = vrot.lane.b32.xlu0 %v2553, 96
    %v2557 = vpop.permute.xlu0 %2556
    %v2559 = vmul.f32 %v2552, %v2557
    %2561 = vrot.lane.b32.xlu0 %v2559, 16
    %v2562 = vpop.permute.xlu0 %2561
    %v2564 = vadd.f32 %v2554, %v2562
    %v2565 = vtanh.pop %v2564
    %2567 = vrot.lane.b32.xlu0 %v2565, 32
    %v2568 = vpop.permute.xlu0 %2567
    %v2570 = vmul.f32 %v2552, %v2568
    %v2571 = vld [vmem:[%s1084] sm:$0xf]
    %2573 = vrot.lane.b32.xlu0 %v2570, 80
    %v2574 = vpop.permute.xlu0 %2573
    %v2575 = vsel %vm412, %v2574, 0
    %2577 = vmatprep.subr.mxu0 0.0
    %2578 = vmatpush1.msra.mxu0 %v2069
    %2579 = vmatprep.subr.mxu0 0.0
    %2580 = vmatpush1.msra.mxu0 %v2070
    %2581 = vmatprep.subr.mxu0 0.0
    %2582 = vmatpush1.msra.mxu0 0.0
    %2583 = vmatprep.subr.mxu0 0.0
    %2584 = vmatpush1.msra.mxu0 0.0
    %2585 = vmatprep.subr.mxu0 0.0
    %2586 = vmatpush1.msra.mxu0 0.0
    %2587 = vmatprep.subr.mxu0 0.0
    %2588 = vmatpush1.msra.mxu0 0.0
    %2589 = vmatprep.subr.mxu0 0.0
    %2590 = vmatpush1.msra.mxu0 0.0
    %2591 = vmatprep.subr.mxu0 0.0
    %2592 = vmatpush1.msra.mxu0 0.0
    %2593 = vmatprep.subr.mxu0 0.0
    %2594 = vmatpush1.msra.mxu0 0.0
    %2595 = vmatprep.subr.mxu0 0.0
    %2596 = vmatpush1.msra.mxu0 0.0
    %2597 = vmatprep.subr.mxu0 0.0
    %2598 = vmatpush1.msra.mxu0 0.0
    %2599 = vmatprep.subr.mxu0 0.0
    %2600 = vmatpush1.msra.mxu0 0.0
    %2601 = vmatprep.subr.mxu0 0.0
    %2602 = vmatpush1.msra.mxu0 0.0
    %2603 = vmatprep.subr.mxu0 0.0
    %2604 = vmatpush1.msra.mxu0 0.0
    %2605 = vmatprep.subr.mxu0 0.0
    %2606 = vmatpush1.msra.mxu0 0.0
    %2607 = vmatprep.subr.mxu0 0.0
    %2608 = vmatpush1.msra.mxu0 0.0
    %2609 = vmatprep.subr.mxu0 0.0
    %2610 = vmatpush1.msra.mxu0 0.0
    %2611 = vmatprep.subr.mxu0 0.0
    %2612 = vmatpush1.msra.mxu0 0.0
    %2613 = vmatprep.subr.mxu0 0.0
    %2614 = vmatpush1.msra.mxu0 0.0
    %2615 = vmatprep.subr.mxu0 0.0
    %2616 = vmatpush1.msra.mxu0 0.0
    %2617 = vmatprep.subr.mxu0 0.0
    %2618 = vmatpush1.msra.mxu0 0.0
    %2619 = vmatprep.subr.mxu0 0.0
    %2620 = vmatpush1.msra.mxu0 0.0
    %2621 = vmatprep.subr.mxu0 0.0
    %2622 = vmatpush1.msra.mxu0 0.0
    %2623 = vmatprep.subr.mxu0 0.0
    %2624 = vmatpush1.msra.mxu0 0.0
    %2625 = vmatprep.subr.mxu0 0.0
    %2626 = vmatpush1.msra.mxu0 0.0
    %2627 = vmatprep.subr.mxu0 0.0
    %2628 = vmatpush1.msra.mxu0 0.0
    %2629 = vmatprep.subr.mxu0 0.0
    %2630 = vmatpush1.msra.mxu0 0.0
    %2631 = vmatprep.subr.mxu0 0.0
    %2632 = vmatpush1.msra.mxu0 0.0
    %2633 = vmatprep.subr.mxu0 0.0
    %2634 = vmatpush1.msra.mxu0 0.0
    %2635 = vmatprep.subr.mxu0 0.0
    %2636 = vmatpush1.msra.mxu0 0.0
    %2637 = vmatprep.subr.mxu0 0.0
    %2638 = vmatpush1.msra.mxu0 0.0
    %2639 = vmatprep.subr.mxu0 0.0
    %2640 = vmatpush1.msra.mxu0 0.0
    %2641 = vmatprep.mubr.f32.mxu0 0.0
    %2642 = vmatmul.mubr.f32.gmra.mrb[0].mxu0 %v2575
    %v2643 = vpop.f32.mrb[0].mxu0
    %v2644 = vadd.f32 0.0, %v2643
    %v2645 = vpop.f32.mrb[0].mxu0
    %2646 = vdwg.mxu0
    %v2647 = vadd.f32 %v2571, %v2644
    %v2648 = vxor.u32 %v2647, 2147483648
    %v2649 = vmul.f32 %v2648, 1.442695
    %v2650 = vpow.pop %v2649
    %v2651 = vadd.f32 %v2650, 1.0
    %v2652 = vrcp.pop %v2651
    %v2653 = vmul.f32 1.0, %v2652
    %v2654 = vtanh.pop %v2647
    %v2655 = vmul.f32 %v2653, %v2564
    %2657 = vrot.lane.b32.xlu0 %v2654, 96
    %v2658 = vpop.permute.xlu0 %2657
    %v2660 = vmul.f32 %v2653, %v2658
    %2662 = vrot.lane.b32.xlu0 %v2660, 16
    %v2663 = vpop.permute.xlu0 %2662
    %v2665 = vadd.f32 %v2655, %v2663
    %v2666 = vtanh.pop %v2665
    %2668 = vrot.lane.b32.xlu0 %v2666, 32
    %v2669 = vpop.permute.xlu0 %2668
    %v2671 = vmul.f32 %v2653, %v2669
    %v2672 = vld [vmem:[%s1189] sm:$0xf]
    %2674 = vrot.lane.b32.xlu0 %v2671, 80
    %v2675 = vpop.permute.xlu0 %2674
    %v2676 = vsel %vm412, %v2675, 0
    %2678 = vmatprep.subr.mxu0 0.0
    %2679 = vmatpush1.msra.mxu0 %v2069
    %2680 = vmatprep.subr.mxu0 0.0
    %2681 = vmatpush1.msra.mxu0 %v2070
    %2682 = vmatprep.subr.mxu0 0.0
    %2683 = vmatpush1.msra.mxu0 0.0
    %2684 = vmatprep.subr.mxu0 0.0
    %2685 = vmatpush1.msra.mxu0 0.0
    %2686 = vmatprep.subr.mxu0 0.0
    %2687 = vmatpush1.msra.mxu0 0.0
    %2688 = vmatprep.subr.mxu0 0.0
    %2689 = vmatpush1.msra.mxu0 0.0
    %2690 = vmatprep.subr.mxu0 0.0
    %2691 = vmatpush1.msra.mxu0 0.0
    %2692 = vmatprep.subr.mxu0 0.0
    %2693 = vmatpush1.msra.mxu0 0.0
    %2694 = vmatprep.subr.mxu0 0.0
    %2695 = vmatpush1.msra.mxu0 0.0
    %2696 = vmatprep.subr.mxu0 0.0
    %2697 = vmatpush1.msra.mxu0 0.0
    %2698 = vmatprep.subr.mxu0 0.0
    %2699 = vmatpush1.msra.mxu0 0.0
    %2700 = vmatprep.subr.mxu0 0.0
    %2701 = vmatpush1.msra.mxu0 0.0
    %2702 = vmatprep.subr.mxu0 0.0
    %2703 = vmatpush1.msra.mxu0 0.0
    %2704 = vmatprep.subr.mxu0 0.0
    %2705 = vmatpush1.msra.mxu0 0.0
    %2706 = vmatprep.subr.mxu0 0.0
    %2707 = vmatpush1.msra.mxu0 0.0
    %2708 = vmatprep.subr.mxu0 0.0
    %2709 = vmatpush1.msra.mxu0 0.0
    %2710 = vmatprep.subr.mxu0 0.0
    %2711 = vmatpush1.msra.mxu0 0.0
    %2712 = vmatprep.subr.mxu0 0.0
    %2713 = vmatpush1.msra.mxu0 0.0
    %2714 = vmatprep.subr.mxu0 0.0
    %2715 = vmatpush1.msra.mxu0 0.0
    %2716 = vmatprep.subr.mxu0 0.0
    %2717 = vmatpush1.msra.mxu0 0.0
    %2718 = vmatprep.subr.mxu0 0.0
    %2719 = vmatpush1.msra.mxu0 0.0
    %2720 = vmatprep.subr.mxu0 0.0
    %2721 = vmatpush1.msra.mxu0 0.0
    %2722 = vmatprep.subr.mxu0 0.0
    %2723 = vmatpush1.msra.mxu0 0.0
    %2724 = vmatprep.subr.mxu0 0.0
    %2725 = vmatpush1.msra.mxu0 0.0
    %2726 = vmatprep.subr.mxu0 0.0
    %2727 = vmatpush1.msra.mxu0 0.0
    %2728 = vmatprep.subr.mxu0 0.0
    %2729 = vmatpush1.msra.mxu0 0.0
    %2730 = vmatprep.subr.mxu0 0.0
    %2731 = vmatpush1.msra.mxu0 0.0
    %2732 = vmatprep.subr.mxu0 0.0
    %2733 = vmatpush1.msra.mxu0 0.0
    %2734 = vmatprep.subr.mxu0 0.0
    %2735 = vmatpush1.msra.mxu0 0.0
    %2736 = vmatprep.subr.mxu0 0.0
    %2737 = vmatpush1.msra.mxu0 0.0
    %2738 = vmatprep.subr.mxu0 0.0
    %2739 = vmatpush1.msra.mxu0 0.0
    %2740 = vmatprep.subr.mxu0 0.0
    %2741 = vmatpush1.msra.mxu0 0.0
    %2742 = vmatprep.mubr.f32.mxu0 0.0
    %2743 = vmatmul.mubr.f32.gmra.mrb[0].mxu0 %v2676
    %v2744 = vpop.f32.mrb[0].mxu0
    %v2745 = vadd.f32 0.0, %v2744
    %v2746 = vpop.f32.mrb[0].mxu0
    %2747 = vdwg.mxu0
    %v2748 = vadd.f32 %v2672, %v2745
    %v2749 = vxor.u32 %v2748, 2147483648
    %v2750 = vmul.f32 %v2749, 1.442695
    %v2751 = vpow.pop %v2750
    %v2752 = vadd.f32 %v2751, 1.0
    %v2753 = vrcp.pop %v2752
    %v2754 = vmul.f32 1.0, %v2753
    %v2755 = vtanh.pop %v2748
    %v2756 = vmul.f32 %v2754, %v2665
    %2758 = vrot.lane.b32.xlu0 %v2755, 96
    %v2759 = vpop.permute.xlu0 %2758
    %v2761 = vmul.f32 %v2754, %v2759
    %2763 = vrot.lane.b32.xlu0 %v2761, 16
    %v2764 = vpop.permute.xlu0 %2763
    %v2766 = vadd.f32 %v2756, %v2764
    %v2767 = vtanh.pop %v2766
    %2769 = vrot.lane.b32.xlu0 %v2767, 32
    %v2770 = vpop.permute.xlu0 %2769
    %v2772 = vmul.f32 %v2754, %v2770
    %v2773 = vld [vmem:[%s1294] sm:$0xf]
    %2775 = vrot.lane.b32.xlu0 %v2772, 80
    %v2776 = vpop.permute.xlu0 %2775
    %v2777 = vsel %vm412, %v2776, 0
    %2779 = vmatprep.subr.mxu0 0.0
    %2780 = vmatpush1.msra.mxu0 %v2069
    %2781 = vmatprep.subr.mxu0 0.0
    %2782 = vmatpush1.msra.mxu0 %v2070
    %2783 = vmatprep.subr.mxu0 0.0
    %2784 = vmatpush1.msra.mxu0 0.0
    %2785 = vmatprep.subr.mxu0 0.0
    %2786 = vmatpush1.msra.mxu0 0.0
    %2787 = vmatprep.subr.mxu0 0.0
    %2788 = vmatpush1.msra.mxu0 0.0
    %2789 = vmatprep.subr.mxu0 0.0
    %2790 = vmatpush1.msra.mxu0 0.0
    %2791 = vmatprep.subr.mxu0 0.0
    %2792 = vmatpush1.msra.mxu0 0.0
    %2793 = vmatprep.subr.mxu0 0.0
    %2794 = vmatpush1.msra.mxu0 0.0
    %2795 = vmatprep.subr.mxu0 0.0
    %2796 = vmatpush1.msra.mxu0 0.0
    %2797 = vmatprep.subr.mxu0 0.0
    %2798 = vmatpush1.msra.mxu0 0.0
    %2799 = vmatprep.subr.mxu0 0.0
    %2800 = vmatpush1.msra.mxu0 0.0
    %2801 = vmatprep.subr.mxu0 0.0
    %2802 = vmatpush1.msra.mxu0 0.0
    %2803 = vmatprep.subr.mxu0 0.0
    %2804 = vmatpush1.msra.mxu0 0.0
    %2805 = vmatprep.subr.mxu0 0.0
    %2806 = vmatpush1.msra.mxu0 0.0
    %2807 = vmatprep.subr.mxu0 0.0
    %2808 = vmatpush1.msra.mxu0 0.0
    %2809 = vmatprep.subr.mxu0 0.0
    %2810 = vmatpush1.msra.mxu0 0.0
    %2811 = vmatprep.subr.mxu0 0.0
    %2812 = vmatpush1.msra.mxu0 0.0
    %2813 = vmatprep.subr.mxu0 0.0
    %2814 = vmatpush1.msra.mxu0 0.0
    %2815 = vmatprep.subr.mxu0 0.0
    %2816 = vmatpush1.msra.mxu0 0.0
    %2817 = vmatprep.subr.mxu0 0.0
    %2818 = vmatpush1.msra.mxu0 0.0
    %2819 = vmatprep.subr.mxu0 0.0
    %2820 = vmatpush1.msra.mxu0 0.0
    %2821 = vmatprep.subr.mxu0 0.0
    %2822 = vmatpush1.msra.mxu0 0.0
    %2823 = vmatprep.subr.mxu0 0.0
    %2824 = vmatpush1.msra.mxu0 0.0
    %2825 = vmatprep.subr.mxu0 0.0
    %2826 = vmatpush1.msra.mxu0 0.0
    %2827 = vmatprep.subr.mxu0 0.0
    %2828 = vmatpush1.msra.mxu0 0.0
    %2829 = vmatprep.subr.mxu0 0.0
    %2830 = vmatpush1.msra.mxu0 0.0
    %2831 = vmatprep.subr.mxu0 0.0
    %2832 = vmatpush1.msra.mxu0 0.0
    %2833 = vmatprep.subr.mxu0 0.0
    %2834 = vmatpush1.msra.mxu0 0.0
    %2835 = vmatprep.subr.mxu0 0.0
    %2836 = vmatpush1.msra.mxu0 0.0
    %2837 = vmatprep.subr.mxu0 0.0
    %2838 = vmatpush1.msra.mxu0 0.0
    %2839 = vmatprep.subr.mxu0 0.0
    %2840 = vmatpush1.msra.mxu0 0.0
    %2841 = vmatprep.subr.mxu0 0.0
    %2842 = vmatpush1.msra.mxu0 0.0
    %2843 = vmatprep.mubr.f32.mxu0 0.0
    %2844 = vmatmul.mubr.f32.gmra.mrb[0].mxu0 %v2777
    %v2845 = vpop.f32.mrb[0].mxu0
    %v2846 = vadd.f32 0.0, %v2845
    %v2847 = vpop.f32.mrb[0].mxu0
    %2848 = vdwg.mxu0
    %v2849 = vadd.f32 %v2773, %v2846
    %v2850 = vxor.u32 %v2849, 2147483648
    %v2851 = vmul.f32 %v2850, 1.442695
    %v2852 = vpow.pop %v2851
    %v2853 = vadd.f32 %v2852, 1.0
    %v2854 = vrcp.pop %v2853
    %v2855 = vmul.f32 1.0, %v2854
    %v2856 = vtanh.pop %v2849
    %v2857 = vmul.f32 %v2855, %v2766
    %2859 = vrot.lane.b32.xlu0 %v2856, 96
    %v2860 = vpop.permute.xlu0 %2859
    %v2862 = vmul.f32 %v2855, %v2860
    %2864 = vrot.lane.b32.xlu0 %v2862, 16
    %v2865 = vpop.permute.xlu0 %2864
    %v2867 = vadd.f32 %v2857, %v2865
    %v2868 = vtanh.pop %v2867
    %2870 = vrot.lane.b32.xlu0 %v2868, 32
    %v2871 = vpop.permute.xlu0 %2870
    %v2873 = vmul.f32 %v2855, %v2871
    %v2874 = vld [vmem:[%s1399] sm:$0xf]
    %2876 = vrot.lane.b32.xlu0 %v2873, 80
    %v2877 = vpop.permute.xlu0 %2876
    %v2878 = vsel %vm412, %v2877, 0
    %2880 = vmatprep.subr.mxu0 0.0
    %2881 = vmatpush1.msra.mxu0 %v2069
    %2882 = vmatprep.subr.mxu0 0.0
    %2883 = vmatpush1.msra.mxu0 %v2070
    %2884 = vmatprep.subr.mxu0 0.0
    %2885 = vmatpush1.msra.mxu0 0.0
    %2886 = vmatprep.subr.mxu0 0.0
    %2887 = vmatpush1.msra.mxu0 0.0
    %2888 = vmatprep.subr.mxu0 0.0
    %2889 = vmatpush1.msra.mxu0 0.0
    %2890 = vmatprep.subr.mxu0 0.0
    %2891 = vmatpush1.msra.mxu0 0.0
    %2892 = vmatprep.subr.mxu0 0.0
    %2893 = vmatpush1.msra.mxu0 0.0
    %2894 = vmatprep.subr.mxu0 0.0
    %2895 = vmatpush1.msra.mxu0 0.0
    %2896 = vmatprep.subr.mxu0 0.0
    %2897 = vmatpush1.msra.mxu0 0.0
    %2898 = vmatprep.subr.mxu0 0.0
    %2899 = vmatpush1.msra.mxu0 0.0
    %2900 = vmatprep.subr.mxu0 0.0
    %2901 = vmatpush1.msra.mxu0 0.0
    %2902 = vmatprep.subr.mxu0 0.0
    %2903 = vmatpush1.msra.mxu0 0.0
    %2904 = vmatprep.subr.mxu0 0.0
    %2905 = vmatpush1.msra.mxu0 0.0
    %2906 = vmatprep.subr.mxu0 0.0
    %2907 = vmatpush1.msra.mxu0 0.0
    %2908 = vmatprep.subr.mxu0 0.0
    %2909 = vmatpush1.msra.mxu0 0.0
    %2910 = vmatprep.subr.mxu0 0.0
    %2911 = vmatpush1.msra.mxu0 0.0
    %2912 = vmatprep.subr.mxu0 0.0
    %2913 = vmatpush1.msra.mxu0 0.0
    %2914 = vmatprep.subr.mxu0 0.0
    %2915 = vmatpush1.msra.mxu0 0.0
    %2916 = vmatprep.subr.mxu0 0.0
    %2917 = vmatpush1.msra.mxu0 0.0
    %2918 = vmatprep.subr.mxu0 0.0
    %2919 = vmatpush1.msra.mxu0 0.0
    %2920 = vmatprep.subr.mxu0 0.0
    %2921 = vmatpush1.msra.mxu0 0.0
    %2922 = vmatprep.subr.mxu0 0.0
    %2923 = vmatpush1.msra.mxu0 0.0
    %2924 = vmatprep.subr.mxu0 0.0
    %2925 = vmatpush1.msra.mxu0 0.0
    %2926 = vmatprep.subr.mxu0 0.0
    %2927 = vmatpush1.msra.mxu0 0.0
    %2928 = vmatprep.subr.mxu0 0.0
    %2929 = vmatpush1.msra.mxu0 0.0
    %2930 = vmatprep.subr.mxu0 0.0
    %2931 = vmatpush1.msra.mxu0 0.0
    %2932 = vmatprep.subr.mxu0 0.0
    %2933 = vmatpush1.msra.mxu0 0.0
    %2934 = vmatprep.subr.mxu0 0.0
    %2935 = vmatpush1.msra.mxu0 0.0
    %2936 = vmatprep.subr.mxu0 0.0
    %2937 = vmatpush1.msra.mxu0 0.0
    %2938 = vmatprep.subr.mxu0 0.0
    %2939 = vmatpush1.msra.mxu0 0.0
    %2940 = vmatprep.subr.mxu0 0.0
    %2941 = vmatpush1.msra.mxu0 0.0
    %2942 = vmatprep.subr.mxu0 0.0
    %2943 = vmatpush1.msra.mxu0 0.0
    %2944 = vmatprep.mubr.f32.mxu0 0.0
    %2945 = vmatmul.mubr.f32.gmra.mrb[0].mxu0 %v2878
    %v2946 = vpop.f32.mrb[0].mxu0
    %v2947 = vadd.f32 0.0, %v2946
    %v2948 = vpop.f32.mrb[0].mxu0
    %2949 = vdwg.mxu0
    %v2950 = vadd.f32 %v2874, %v2947
    %v2951 = vxor.u32 %v2950, 2147483648
    %v2952 = vmul.f32 %v2951, 1.442695
    %v2953 = vpow.pop %v2952
    %v2954 = vadd.f32 %v2953, 1.0
    %v2955 = vrcp.pop %v2954
    %v2956 = vmul.f32 1.0, %v2955
    %v2957 = vtanh.pop %v2950
    %v2958 = vmul.f32 %v2956, %v2867
    %2960 = vrot.lane.b32.xlu0 %v2957, 96
    %v2961 = vpop.permute.xlu0 %2960
    %v2963 = vmul.f32 %v2956, %v2961
    %2965 = vrot.lane.b32.xlu0 %v2963, 16
    %v2966 = vpop.permute.xlu0 %2965
    %v2968 = vadd.f32 %v2958, %v2966
    %v2969 = vtanh.pop %v2968
    %2971 = vrot.lane.b32.xlu0 %v2969, 32
    %v2972 = vpop.permute.xlu0 %2971
    %v2974 = vmul.f32 %v2956, %v2972
    %v2975 = vld [vmem:[%s1504] sm:$0xf]
    %2977 = vrot.lane.b32.xlu0 %v2974, 80
    %v2978 = vpop.permute.xlu0 %2977
    %v2979 = vsel %vm412, %v2978, 0
    %2981 = vmatprep.subr.mxu0 0.0
    %2982 = vmatpush1.msra.mxu0 %v2069
    %2983 = vmatprep.subr.mxu0 0.0
    %2984 = vmatpush1.msra.mxu0 %v2070
    %2985 = vmatprep.subr.mxu0 0.0
    %2986 = vmatpush1.msra.mxu0 0.0
    %2987 = vmatprep.subr.mxu0 0.0
    %2988 = vmatpush1.msra.mxu0 0.0
    %2989 = vmatprep.subr.mxu0 0.0
    %2990 = vmatpush1.msra.mxu0 0.0
    %2991 = vmatprep.subr.mxu0 0.0
    %2992 = vmatpush1.msra.mxu0 0.0
    %2993 = vmatprep.subr.mxu0 0.0
    %2994 = vmatpush1.msra.mxu0 0.0
    %2995 = vmatprep.subr.mxu0 0.0
    %2996 = vmatpush1.msra.mxu0 0.0
    %2997 = vmatprep.subr.mxu0 0.0
    %2998 = vmatpush1.msra.mxu0 0.0
    %2999 = vmatprep.subr.mxu0 0.0
    %3000 = vmatpush1.msra.mxu0 0.0
    %3001 = vmatprep.subr.mxu0 0.0
    %3002 = vmatpush1.msra.mxu0 0.0
    %3003 = vmatprep.subr.mxu0 0.0
    %3004 = vmatpush1.msra.mxu0 0.0
    %3005 = vmatprep.subr.mxu0 0.0
    %3006 = vmatpush1.msra.mxu0 0.0
    %3007 = vmatprep.subr.mxu0 0.0
    %3008 = vmatpush1.msra.mxu0 0.0
    %3009 = vmatprep.subr.mxu0 0.0
    %3010 = vmatpush1.msra.mxu0 0.0
    %3011 = vmatprep.subr.mxu0 0.0
    %3012 = vmatpush1.msra.mxu0 0.0
    %3013 = vmatprep.subr.mxu0 0.0
    %3014 = vmatpush1.msra.mxu0 0.0
    %3015 = vmatprep.subr.mxu0 0.0
    %3016 = vmatpush1.msra.mxu0 0.0
    %3017 = vmatprep.subr.mxu0 0.0
    %3018 = vmatpush1.msra.mxu0 0.0
    %3019 = vmatprep.subr.mxu0 0.0
    %3020 = vmatpush1.msra.mxu0 0.0
    %3021 = vmatprep.subr.mxu0 0.0
    %3022 = vmatpush1.msra.mxu0 0.0
    %3023 = vmatprep.subr.mxu0 0.0
    %3024 = vmatpush1.msra.mxu0 0.0
    %3025 = vmatprep.subr.mxu0 0.0
    %3026 = vmatpush1.msra.mxu0 0.0
    %3027 = vmatprep.subr.mxu0 0.0
    %3028 = vmatpush1.msra.mxu0 0.0
    %3029 = vmatprep.subr.mxu0 0.0
    %3030 = vmatpush1.msra.mxu0 0.0
    %3031 = vmatprep.subr.mxu0 0.0
    %3032 = vmatpush1.msra.mxu0 0.0
    %3033 = vmatprep.subr.mxu0 0.0
    %3034 = vmatpush1.msra.mxu0 0.0
    %3035 = vmatprep.subr.mxu0 0.0
    %3036 = vmatpush1.msra.mxu0 0.0
    %3037 = vmatprep.subr.mxu0 0.0
    %3038 = vmatpush1.msra.mxu0 0.0
    %3039 = vmatprep.subr.mxu0 0.0
    %3040 = vmatpush1.msra.mxu0 0.0
    %3041 = vmatprep.subr.mxu0 0.0
    %3042 = vmatpush1.msra.mxu0 0.0
    %3043 = vmatprep.subr.mxu0 0.0
    %3044 = vmatpush1.msra.mxu0 0.0
    %3045 = vmatprep.mubr.f32.mxu0 0.0
    %3046 = vmatmul.mubr.f32.gmra.mrb[0].mxu0 %v2979
    %v3047 = vpop.f32.mrb[0].mxu0
    %v3048 = vadd.f32 0.0, %v3047
    %v3049 = vpop.f32.mrb[0].mxu0
    %3050 = vdwg.mxu0
    %v3051 = vadd.f32 %v2975, %v3048
    %v3052 = vxor.u32 %v3051, 2147483648
    %v3053 = vmul.f32 %v3052, 1.442695
    %v3054 = vpow.pop %v3053
    %v3055 = vadd.f32 %v3054, 1.0
    %v3056 = vrcp.pop %v3055
    %v3057 = vmul.f32 1.0, %v3056
    %v3058 = vtanh.pop %v3051
    %v3059 = vmul.f32 %v3057, %v2968
    %3061 = vrot.lane.b32.xlu0 %v3058, 96
    %v3062 = vpop.permute.xlu0 %3061
    %v3064 = vmul.f32 %v3057, %v3062
    %3066 = vrot.lane.b32.xlu0 %v3064, 16
    %v3067 = vpop.permute.xlu0 %3066
    %v3069 = vadd.f32 %v3059, %v3067
    %v3070 = vtanh.pop %v3069
    %3072 = vrot.lane.b32.xlu0 %v3070, 32
    %v3073 = vpop.permute.xlu0 %3072
    %v3075 = vmul.f32 %v3057, %v3073
    %v3076 = vld [vmem:[%s1609] sm:$0xf]
    %3078 = vrot.lane.b32.xlu0 %v3075, 80
    %v3079 = vpop.permute.xlu0 %3078
    %v3080 = vsel %vm412, %v3079, 0
    %3082 = vmatprep.subr.mxu0 0.0
    %3083 = vmatpush1.msra.mxu0 %v2069
    %3084 = vmatprep.subr.mxu0 0.0
    %3085 = vmatpush1.msra.mxu0 %v2070
    %3086 = vmatprep.subr.mxu0 0.0
    %3087 = vmatpush1.msra.mxu0 0.0
    %3088 = vmatprep.subr.mxu0 0.0
    %3089 = vmatpush1.msra.mxu0 0.0
    %3090 = vmatprep.subr.mxu0 0.0
    %3091 = vmatpush1.msra.mxu0 0.0
    %3092 = vmatprep.subr.mxu0 0.0
    %3093 = vmatpush1.msra.mxu0 0.0
    %3094 = vmatprep.subr.mxu0 0.0
    %3095 = vmatpush1.msra.mxu0 0.0
    %3096 = vmatprep.subr.mxu0 0.0
    %3097 = vmatpush1.msra.mxu0 0.0
    %3098 = vmatprep.subr.mxu0 0.0
    %3099 = vmatpush1.msra.mxu0 0.0
    %3100 = vmatprep.subr.mxu0 0.0
    %3101 = vmatpush1.msra.mxu0 0.0
    %3102 = vmatprep.subr.mxu0 0.0
    %3103 = vmatpush1.msra.mxu0 0.0
    %3104 = vmatprep.subr.mxu0 0.0
    %3105 = vmatpush1.msra.mxu0 0.0
    %3106 = vmatprep.subr.mxu0 0.0
    %3107 = vmatpush1.msra.mxu0 0.0
    %3108 = vmatprep.subr.mxu0 0.0
    %3109 = vmatpush1.msra.mxu0 0.0
    %3110 = vmatprep.subr.mxu0 0.0
    %3111 = vmatpush1.msra.mxu0 0.0
    %3112 = vmatprep.subr.mxu0 0.0
    %3113 = vmatpush1.msra.mxu0 0.0
    %3114 = vmatprep.subr.mxu0 0.0
    %3115 = vmatpush1.msra.mxu0 0.0
    %3116 = vmatprep.subr.mxu0 0.0
    %3117 = vmatpush1.msra.mxu0 0.0
    %3118 = vmatprep.subr.mxu0 0.0
    %3119 = vmatpush1.msra.mxu0 0.0
    %3120 = vmatprep.subr.mxu0 0.0
    %3121 = vmatpush1.msra.mxu0 0.0
    %3122 = vmatprep.subr.mxu0 0.0
    %3123 = vmatpush1.msra.mxu0 0.0
    %3124 = vmatprep.subr.mxu0 0.0
    %3125 = vmatpush1.msra.mxu0 0.0
    %3126 = vmatprep.subr.mxu0 0.0
    %3127 = vmatpush1.msra.mxu0 0.0
    %3128 = vmatprep.subr.mxu0 0.0
    %3129 = vmatpush1.msra.mxu0 0.0
    %3130 = vmatprep.subr.mxu0 0.0
    %3131 = vmatpush1.msra.mxu0 0.0
    %3132 = vmatprep.subr.mxu0 0.0
    %3133 = vmatpush1.msra.mxu0 0.0
    %3134 = vmatprep.subr.mxu0 0.0
    %3135 = vmatpush1.msra.mxu0 0.0
    %3136 = vmatprep.subr.mxu0 0.0
    %3137 = vmatpush1.msra.mxu0 0.0
    %3138 = vmatprep.subr.mxu0 0.0
    %3139 = vmatpush1.msra.mxu0 0.0
    %3140 = vmatprep.subr.mxu0 0.0
    %3141 = vmatpush1.msra.mxu0 0.0
    %3142 = vmatprep.subr.mxu0 0.0
    %3143 = vmatpush1.msra.mxu0 0.0
    %3144 = vmatprep.subr.mxu0 0.0
    %3145 = vmatpush1.msra.mxu0 0.0
    %3146 = vmatprep.mubr.f32.mxu0 0.0
    %3147 = vmatmul.mubr.f32.gmra.mrb[0].mxu0 %v3080
    %v3148 = vpop.f32.mrb[0].mxu0
    %v3149 = vadd.f32 0.0, %v3148
    %v3150 = vpop.f32.mrb[0].mxu0
    %3151 = vdwg.mxu0
    %v3152 = vadd.f32 %v3076, %v3149
    %v3153 = vxor.u32 %v3152, 2147483648
    %v3154 = vmul.f32 %v3153, 1.442695
    %v3155 = vpow.pop %v3154
    %v3156 = vadd.f32 %v3155, 1.0
    %v3157 = vrcp.pop %v3156
    %v3158 = vmul.f32 1.0, %v3157
    %v3159 = vtanh.pop %v3152
    %v3160 = vmul.f32 %v3158, %v3069
    %3162 = vrot.lane.b32.xlu0 %v3159, 96
    %v3163 = vpop.permute.xlu0 %3162
    %v3165 = vmul.f32 %v3158, %v3163
    %3167 = vrot.lane.b32.xlu0 %v3165, 16
    %v3168 = vpop.permute.xlu0 %3167
    %v3170 = vadd.f32 %v3160, %v3168
    %v3171 = vtanh.pop %v3170
    %3173 = vrot.lane.b32.xlu0 %v3171, 32
    %v3174 = vpop.permute.xlu0 %3173
    %v3176 = vmul.f32 %v3158, %v3174
    %v3177 = vld [vmem:[%s1714] sm:$0xf]
    %3179 = vrot.lane.b32.xlu0 %v3176, 80
    %v3180 = vpop.permute.xlu0 %3179
    %v3181 = vsel %vm412, %v3180, 0
    %3183 = vmatprep.subr.mxu0 0.0
    %3184 = vmatpush1.msra.mxu0 %v2069
    %3185 = vmatprep.subr.mxu0 0.0
    %3186 = vmatpush1.msra.mxu0 %v2070
    %3187 = vmatprep.subr.mxu0 0.0
    %3188 = vmatpush1.msra.mxu0 0.0
    %3189 = vmatprep.subr.mxu0 0.0
    %3190 = vmatpush1.msra.mxu0 0.0
    %3191 = vmatprep.subr.mxu0 0.0
    %3192 = vmatpush1.msra.mxu0 0.0
    %3193 = vmatprep.subr.mxu0 0.0
    %3194 = vmatpush1.msra.mxu0 0.0
    %3195 = vmatprep.subr.mxu0 0.0
    %3196 = vmatpush1.msra.mxu0 0.0
    %3197 = vmatprep.subr.mxu0 0.0
    %3198 = vmatpush1.msra.mxu0 0.0
    %3199 = vmatprep.subr.mxu0 0.0
    %3200 = vmatpush1.msra.mxu0 0.0
    %3201 = vmatprep.subr.mxu0 0.0
    %3202 = vmatpush1.msra.mxu0 0.0
    %3203 = vmatprep.subr.mxu0 0.0
    %3204 = vmatpush1.msra.mxu0 0.0
    %3205 = vmatprep.subr.mxu0 0.0
    %3206 = vmatpush1.msra.mxu0 0.0
    %3207 = vmatprep.subr.mxu0 0.0
    %3208 = vmatpush1.msra.mxu0 0.0
    %3209 = vmatprep.subr.mxu0 0.0
    %3210 = vmatpush1.msra.mxu0 0.0
    %3211 = vmatprep.subr.mxu0 0.0
    %3212 = vmatpush1.msra.mxu0 0.0
    %3213 = vmatprep.subr.mxu0 0.0
    %3214 = vmatpush1.msra.mxu0 0.0
    %3215 = vmatprep.subr.mxu0 0.0
    %3216 = vmatpush1.msra.mxu0 0.0
    %3217 = vmatprep.subr.mxu0 0.0
    %3218 = vmatpush1.msra.mxu0 0.0
    %3219 = vmatprep.subr.mxu0 0.0
    %3220 = vmatpush1.msra.mxu0 0.0
    %3221 = vmatprep.subr.mxu0 0.0
    %3222 = vmatpush1.msra.mxu0 0.0
    %3223 = vmatprep.subr.mxu0 0.0
    %3224 = vmatpush1.msra.mxu0 0.0
    %3225 = vmatprep.subr.mxu0 0.0
    %3226 = vmatpush1.msra.mxu0 0.0
    %3227 = vmatprep.subr.mxu0 0.0
    %3228 = vmatpush1.msra.mxu0 0.0
    %3229 = vmatprep.subr.mxu0 0.0
    %3230 = vmatpush1.msra.mxu0 0.0
    %3231 = vmatprep.subr.mxu0 0.0
    %3232 = vmatpush1.msra.mxu0 0.0
    %3233 = vmatprep.subr.mxu0 0.0
    %3234 = vmatpush1.msra.mxu0 0.0
    %3235 = vmatprep.subr.mxu0 0.0
    %3236 = vmatpush1.msra.mxu0 0.0
    %3237 = vmatprep.subr.mxu0 0.0
    %3238 = vmatpush1.msra.mxu0 0.0
    %3239 = vmatprep.subr.mxu0 0.0
    %3240 = vmatpush1.msra.mxu0 0.0
    %3241 = vmatprep.subr.mxu0 0.0
    %3242 = vmatpush1.msra.mxu0 0.0
    %3243 = vmatprep.subr.mxu0 0.0
    %3244 = vmatpush1.msra.mxu0 0.0
    %3245 = vmatprep.subr.mxu0 0.0
    %3246 = vmatpush1.msra.mxu0 0.0
    %3247 = vmatprep.mubr.f32.mxu0 0.0
    %3248 = vmatmul.mubr.f32.gmra.mrb[0].mxu0 %v3181
    %v3249 = vpop.f32.mrb[0].mxu0
    %v3250 = vadd.f32 0.0, %v3249
    %v3251 = vpop.f32.mrb[0].mxu0
    %3252 = vdwg.mxu0
    %v3253 = vadd.f32 %v3177, %v3250
    %v3254 = vxor.u32 %v3253, 2147483648
    %v3255 = vmul.f32 %v3254, 1.442695
    %v3256 = vpow.pop %v3255
    %v3257 = vadd.f32 %v3256, 1.0
    %v3258 = vrcp.pop %v3257
    %v3259 = vmul.f32 1.0, %v3258
    %v3260 = vtanh.pop %v3253
    %v3261 = vmul.f32 %v3259, %v3170
    %3263 = vrot.lane.b32.xlu0 %v3260, 96
    %v3264 = vpop.permute.xlu0 %3263
    %v3266 = vmul.f32 %v3259, %v3264
    %3268 = vrot.lane.b32.xlu0 %v3266, 16
    %v3269 = vpop.permute.xlu0 %3268
    %v3271 = vadd.f32 %v3261, %v3269
    %v3272 = vtanh.pop %v3271
    %3274 = vrot.lane.b32.xlu0 %v3272, 32
    %v3275 = vpop.permute.xlu0 %3274
    %v3277 = vmul.f32 %v3259, %v3275
    %3279 = vrot.lane.b32.xlu0 %v3277, 96
    %v3280 = vpop.permute.xlu0 %3279
    %v3282 = vsel %vm412, %v1815, %v3280
    %v3283 = vmul.f32 %v3282, 0.01
    %v3284 = vmax.f32 %v3282, %v3283
    %v3285 = vld [vmem:[%s9] sm:$0xff]
    %v3286 = vld [vmem:[%s9 + $0x8] sm:$0xff]
    %v3287 = vld [vmem:[%s9 + $0x10] sm:$0xff]
    %v3288 = vld [vmem:[%s9 + $0x18] sm:$0xff]
    %v3289 = vld [vmem:[%s10] sm:$0x1]
    %v3291 = vlaneseq
    %v3292 = vshrl.u32 %v3291, 7
    %v3293 = vsub.s32 0, %v3292
    %v3294 = vrot.slane %v3289, %v3293
    %v3297 = vsel %vm1931, %v3284, 0
    %3299 = vmatprep.subr.mxu0 0.0
    %3300 = vmatpush1.msra.mxu0 %v3285
    %3301 = vmatprep.subr.mxu0 0.0
    %3302 = vmatpush1.msra.mxu0 %v3286
    %3303 = vmatprep.subr.mxu0 0.0
    %3304 = vmatpush1.msra.mxu0 %v3287
    %3305 = vmatprep.subr.mxu0 0.0
    %3306 = vmatpush1.msra.mxu0 %v3288
    %3307 = vmatprep.subr.mxu0 0.0
    %3308 = vmatpush1.msra.mxu0 0.0
    %3309 = vmatprep.subr.mxu0 0.0
    %3310 = vmatpush1.msra.mxu0 0.0
    %3311 = vmatprep.subr.mxu0 0.0
    %3312 = vmatpush1.msra.mxu0 0.0
    %3313 = vmatprep.subr.mxu0 0.0
    %3314 = vmatpush1.msra.mxu0 0.0
    %3315 = vmatprep.subr.mxu0 0.0
    %3316 = vmatpush1.msra.mxu0 0.0
    %3317 = vmatprep.subr.mxu0 0.0
    %3318 = vmatpush1.msra.mxu0 0.0
    %3319 = vmatprep.subr.mxu0 0.0
    %3320 = vmatpush1.msra.mxu0 0.0
    %3321 = vmatprep.subr.mxu0 0.0
    %3322 = vmatpush1.msra.mxu0 0.0
    %3323 = vmatprep.subr.mxu0 0.0
    %3324 = vmatpush1.msra.mxu0 0.0
    %3325 = vmatprep.subr.mxu0 0.0
    %3326 = vmatpush1.msra.mxu0 0.0
    %3327 = vmatprep.subr.mxu0 0.0
    %3328 = vmatpush1.msra.mxu0 0.0
    %3329 = vmatprep.subr.mxu0 0.0
    %3330 = vmatpush1.msra.mxu0 0.0
    %3331 = vmatprep.subr.mxu0 0.0
    %3332 = vmatpush1.msra.mxu0 0.0
    %3333 = vmatprep.subr.mxu0 0.0
    %3334 = vmatpush1.msra.mxu0 0.0
    %3335 = vmatprep.subr.mxu0 0.0
    %3336 = vmatpush1.msra.mxu0 0.0
    %3337 = vmatprep.subr.mxu0 0.0
    %3338 = vmatpush1.msra.mxu0 0.0
    %3339 = vmatprep.subr.mxu0 0.0
    %3340 = vmatpush1.msra.mxu0 0.0
    %3341 = vmatprep.subr.mxu0 0.0
    %3342 = vmatpush1.msra.mxu0 0.0
    %3343 = vmatprep.subr.mxu0 0.0
    %3344 = vmatpush1.msra.mxu0 0.0
    %3345 = vmatprep.subr.mxu0 0.0
    %3346 = vmatpush1.msra.mxu0 0.0
    %3347 = vmatprep.subr.mxu0 0.0
    %3348 = vmatpush1.msra.mxu0 0.0
    %3349 = vmatprep.subr.mxu0 0.0
    %3350 = vmatpush1.msra.mxu0 0.0
    %3351 = vmatprep.subr.mxu0 0.0
    %3352 = vmatpush1.msra.mxu0 0.0
    %3353 = vmatprep.subr.mxu0 0.0
    %3354 = vmatpush1.msra.mxu0 0.0
    %3355 = vmatprep.subr.mxu0 0.0
    %3356 = vmatpush1.msra.mxu0 0.0
    %3357 = vmatprep.subr.mxu0 0.0
    %3358 = vmatpush1.msra.mxu0 0.0
    %3359 = vmatprep.subr.mxu0 0.0
    %3360 = vmatpush1.msra.mxu0 0.0
    %3361 = vmatprep.subr.mxu0 0.0
    %3362 = vmatpush1.msra.mxu0 0.0
    %3363 = vmatprep.mubr.f32.mxu0 0.0
    %3364 = vmatmul.mubr.f32.gmra.mrb[0].mxu0 %v3297
    %v3365 = vpop.f32.mrb[0].mxu0
    %v3366 = vadd.f32 %v3294, %v3365
    %v3367 = vpop.f32.mrb[0].mxu0
    %3368 = vdwg.mxu0
    %v3369 = vld [vmem:[%s11] sm:$0x1]
    %v3370 = vld [vmem:[%s11 + $0x1] sm:$0x1]
    %v3371 = vld [vmem:[%s11 + $0x2] sm:$0x1]
    %v3372 = vld [vmem:[%s11 + $0x3] sm:$0x1]
    %v3373 = vlaneseq
    %v3374 = vshrl.u32 %v3373, 7
    %v3375 = vsub.s32 0, %v3374
    %v3376 = vrot.slane %v3371, %v3375
    %v3377 = vsub.f32 %v3366, %v3376
    %v3378 = vadd.f32 %v3372, 1e-05
    %v3379 = vrsqrt.pop %v3378
    %v3380 = vlaneseq
    %v3381 = vshrl.u32 %v3380, 7
    %v3382 = vsub.s32 0, %v3381
    %v3383 = vrot.slane %v3379, %v3382
    %v3384 = vmul.f32 %v3377, %v3383
    %v3385 = vlaneseq
    %v3386 = vshrl.u32 %v3385, 7
    %v3387 = vsub.s32 0, %v3386
    %v3388 = vrot.slane %v3369, %v3387
    %v3389 = vmul.f32 %v3384, %v3388
    %v3390 = vlaneseq
    %v3391 = vshrl.u32 %v3390, 7
    %v3392 = vsub.s32 0, %v3391
    %v3393 = vrot.slane %v3370, %v3392
    %v3394 = vadd.f32 %v3389, %v3393
    %v3395 = vmul.f32 %v3394, 0.01
    %v3396 = vmax.f32 %v3394, %v3395
    %v3397 = vld [vmem:[%s12] sm:$0xff]
    %v3398 = vld [vmem:[%s13] sm:$0x1]
    %v3400 = vlaneseq
    %v3401 = vshrl.u32 %v3400, 7
    %v3402 = vsub.s32 0, %v3401
    %v3403 = vrot.slane %v3398, %v3402
    %v3406 = vsel %vm396, %v3396, 0
    %3408 = vmatprep.subr.mxu0 0.0
    %3409 = vmatpush1.msra.mxu0 %v3397
    %3410 = vmatprep.subr.mxu0 0.0
    %3411 = vmatpush1.msra.mxu0 0.0
    %3412 = vmatprep.subr.mxu0 0.0
    %3413 = vmatpush1.msra.mxu0 0.0
    %3414 = vmatprep.subr.mxu0 0.0
    %3415 = vmatpush1.msra.mxu0 0.0
    %3416 = vmatprep.subr.mxu0 0.0
    %3417 = vmatpush1.msra.mxu0 0.0
    %3418 = vmatprep.subr.mxu0 0.0
    %3419 = vmatpush1.msra.mxu0 0.0
    %3420 = vmatprep.subr.mxu0 0.0
    %3421 = vmatpush1.msra.mxu0 0.0
    %3422 = vmatprep.subr.mxu0 0.0
    %3423 = vmatpush1.msra.mxu0 0.0
    %3424 = vmatprep.subr.mxu0 0.0
    %3425 = vmatpush1.msra.mxu0 0.0
    %3426 = vmatprep.subr.mxu0 0.0
    %3427 = vmatpush1.msra.mxu0 0.0
    %3428 = vmatprep.subr.mxu0 0.0
    %3429 = vmatpush1.msra.mxu0 0.0
    %3430 = vmatprep.subr.mxu0 0.0
    %3431 = vmatpush1.msra.mxu0 0.0
    %3432 = vmatprep.subr.mxu0 0.0
    %3433 = vmatpush1.msra.mxu0 0.0
    %3434 = vmatprep.subr.mxu0 0.0
    %3435 = vmatpush1.msra.mxu0 0.0
    %3436 = vmatprep.subr.mxu0 0.0
    %3437 = vmatpush1.msra.mxu0 0.0
    %3438 = vmatprep.subr.mxu0 0.0
    %3439 = vmatpush1.msra.mxu0 0.0
    %3440 = vmatprep.subr.mxu0 0.0
    %3441 = vmatpush1.msra.mxu0 0.0
    %3442 = vmatprep.subr.mxu0 0.0
    %3443 = vmatpush1.msra.mxu0 0.0
    %3444 = vmatprep.subr.mxu0 0.0
    %3445 = vmatpush1.msra.mxu0 0.0
    %3446 = vmatprep.subr.mxu0 0.0
    %3447 = vmatpush1.msra.mxu0 0.0
    %3448 = vmatprep.subr.mxu0 0.0
    %3449 = vmatpush1.msra.mxu0 0.0
    %3450 = vmatprep.subr.mxu0 0.0
    %3451 = vmatpush1.msra.mxu0 0.0
    %3452 = vmatprep.subr.mxu0 0.0
    %3453 = vmatpush1.msra.mxu0 0.0
    %3454 = vmatprep.subr.mxu0 0.0
    %3455 = vmatpush1.msra.mxu0 0.0
    %3456 = vmatprep.subr.mxu0 0.0
    %3457 = vmatpush1.msra.mxu0 0.0
    %3458 = vmatprep.subr.mxu0 0.0
    %3459 = vmatpush1.msra.mxu0 0.0
    %3460 = vmatprep.subr.mxu0 0.0
    %3461 = vmatpush1.msra.mxu0 0.0
    %3462 = vmatprep.subr.mxu0 0.0
    %3463 = vmatpush1.msra.mxu0 0.0
    %3464 = vmatprep.subr.mxu0 0.0
    %3465 = vmatpush1.msra.mxu0 0.0
    %3466 = vmatprep.subr.mxu0 0.0
    %3467 = vmatpush1.msra.mxu0 0.0
    %3468 = vmatprep.subr.mxu0 0.0
    %3469 = vmatpush1.msra.mxu0 0.0
    %3470 = vmatprep.subr.mxu0 0.0
    %3471 = vmatpush1.msra.mxu0 0.0
    %3472 = vmatprep.mubr.f32.mxu0 0.0
    %3473 = vmatmul.mubr.f32.gmra.mrb[0].mxu0 %v3406
    %v3474 = vpop.f32.mrb[0].mxu0
    %v3475 = vadd.f32 %v3403, %v3474
    %v3476 = vpop.f32.mrb[0].mxu0
    %3477 = vdwg.mxu0
    %vm3478 = vcmask 35840
    %v3479 = vsel %vm3478, %v3475, -inf
    %3480 = vmax.xlane.f32.xlu0 %v3479
    %v3481 = vpop.xlane.xlu0 %3480
    %v3482 = vsub.f32 %v3475, %v3481
    %v3483 = vmul.f32 %v3482, 1.442695
    %v3484 = vpow.pop %v3483
    %v3485 = vsel %vm3478, %v3484, 0.0
    %3486 = vadd.xlane.f32.xlu0 %v3485
    %v3487 = vpop.xlane.xlu0 %3486
    %v3488 = vrcp.pop %v3487
    %v3489 = vmul.f32 %v3484, %v3488
    %3490 = vst.msk [vmem:[#allocation4] sm:$0xf] %vm3478, %v3489
    // Predicated region
    $region58: #{_lambda_.1} parent=1 // pred_check
      _
    $region59: #{_lambda_.1} parent=1 // pred_check_branch
      %3492 = sbr.rel (0) target = $region61
    $region60: #{_lambda_.1} parent=1 // pred_region
      %s3494 = ssub.s32 64, 64
      %3495 = vsyncadd [#allocation5], %s3494
      %s3497 = sshll.u32 [#allocation4], 4
      %s3498 = int_to_ptr.vmem [resolvable:$true] %s3497
      %3500 = dma.vmem_to_hbm [thread:$0]  %s3498, 64, %s14, [#allocation5]
    $region61: #{_lambda_.1} parent=1 // pred_fallthru
      _
    // Predicated region
    $region62: #{_lambda_.1} parent=1 // pred_check
      _
    $region63: #{_lambda_.1} parent=1 // pred_check_branch
      %3502 = sbr.rel (0) target = $region65
    $region64: #{_lambda_.1} parent=1 // pred_region
      %3503 = dma.done [#allocation5], 64
    $region65: #{_lambda_.1} parent=1 // pred_fallthru
      _
    %3504 = vsyncpa [#allocation5], 1

</llo_original>
